<compile_context>
chip_gen: v6e
topology: v6e:2x2x1
jax: 0.10.0
libtpu: 0.0.40
codegen_flags: <defaults>
</compile_context>

<pallas_src>
import functools

import jax
import jax.numpy as jnp
from jax.experimental import pallas as pl
from jax.experimental.pallas import tpu as pltpu

LEAKY_SLOPE = 0.01  # F.leaky_relu default negative_slope


def _leaky_relu(x):
    return jnp.where(x >= 0, x, LEAKY_SLOPE * x)


def nu_xz_kernel(z_ref, enc_ref,
                 w1z_ref, w1e_ref, b1_ref,
                 w2_ref, b2_ref,
                 w3_ref, b3_ref,
                 w4_ref, b4_ref,
                 o_ref):
    # Layer 1: fused concat -> split matmul, f32 accumulation on the MXU.
    h = jnp.dot(z_ref[...], w1z_ref[...], preferred_element_type=jnp.float32)
    h = h + jnp.dot(enc_ref[...], w1e_ref[...],
                    preferred_element_type=jnp.float32)
    h = _leaky_relu(h + b1_ref[...])

    # Layer 2.
    h = jnp.dot(h.astype(jnp.bfloat16), w2_ref[...],
                preferred_element_type=jnp.float32)
    h = _leaky_relu(h + b2_ref[...])

    # Layer 3.
    h = jnp.dot(h.astype(jnp.bfloat16), w3_ref[...],
                preferred_element_type=jnp.float32)
    h = _leaky_relu(h + b3_ref[...])

    # Layer 4 (512 -> 1): VPU multiply + lane (XLU) reduction instead of an
    # N=1 MXU matmul; avoids wasting the systolic array on a single column.
    w4 = w4_ref[...].astype(jnp.float32)               # (1, 512) row
    out = jnp.sum(h * w4, axis=-1, keepdims=True) + b4_ref[...]
    o_ref[...] = out.astype(o_ref.dtype)


def nu_xz_forward(z, enc, params, *, block_b=256):
    """z: (B, latent_dim), enc: (B, enc_h_dim) -> (B, 1) float32.

    params: [(w1, b1), (w2, b2), (w3, b3), (w4, b4)] with PyTorch Linear
    weights already transposed to (in, out) and biases as (1, out) rows.
    """
    (w1, b1), (w2, b2), (w3, b3), (w4, b4) = params
    B, latent = z.shape
    enc_h = enc.shape[1]
    assert w1.shape == (latent + enc_h, 512)

    # Split w1 along its input dim so the concat happens "for free" inside the
    # kernel; cast big operands to bf16 (f32 accumulation preserved in-kernel).
    w1_z = w1[:latent].astype(jnp.bfloat16)            # (latent, 512)
    w1_e = w1[latent:].astype(jnp.bfloat16)            # (enc_h, 512)
    w2b = w2.astype(jnp.bfloat16)
    w3b = w3.astype(jnp.bfloat16)
    w4_row = w4.reshape(1, 512).astype(jnp.bfloat16)   # (1, 512) row for VPU
    zb = z.astype(jnp.bfloat16)
    encb = enc.astype(jnp.bfloat16)

    # Batch tiling: one grid axis over B; weights stay resident across steps.
    tm = B if B <= block_b else block_b
    grid = (pl.cdiv(B, tm),)

    tile = lambda shape: pl.BlockSpec(shape, lambda i: (i, 0))        # per-batch tile
    resident = lambda shape: pl.BlockSpec(shape, lambda i: (0, 0))    # constant block

    return pl.pallas_call(
        nu_xz_kernel,
        out_shape=jax.ShapeDtypeStruct((B, 1), jnp.float32),
        grid=grid,
        in_specs=[
            tile((tm, latent)),
            tile((tm, enc_h)),
            resident(w1_z.shape), resident(w1_e.shape), resident(b1.shape),
            resident(w2b.shape), resident(b2.shape),
            resident(w3b.shape), resident(b3.shape),
            resident(w4_row.shape), resident(b4.shape),
        ],
        out_specs=tile((tm, 1)),
        compiler_params=pltpu.CompilerParams(
            dimension_semantics=("parallel",)),
    )(zb, encb, w1_z, w1_e, b1, w2b, b2, w3b, b3, w4_row, b4)


def init_params(key, enc_h_dim=1024, latent_dim=32):
    """Deterministic synthetic init matching nn.Linear shapes (stored transposed)."""
    dims = [(latent_dim + enc_h_dim, 512), (512, 512), (512, 512), (512, 1)]
    params = []
    for (din, dout) in dims:
        key, kw, kb = jax.random.split(key, 3)
        bound = 1.0 / jnp.sqrt(din)
        w = jax.random.uniform(kw, (din, dout), jnp.float32, -bound, bound)
        b = jax.random.uniform(kb, (1, dout), jnp.float32, -bound, bound)
        params.append((w, b))
    return params


def nu_xz_reference(z, enc, params):
    """Pure-JAX reference mirroring the kernel's numerics (bf16 operands,
    f32 accumulation) so the comparison isolates kernel bugs, not dtype drift."""
    (w1, b1), (w2, b2), (w3, b3), (w4, b4) = params
    latent = z.shape[1]
    dot = functools.partial(jnp.dot, preferred_element_type=jnp.float32)
    bf = lambda a: a.astype(jnp.bfloat16)

    h = dot(bf(z), bf(w1[:latent])) + dot(bf(enc), bf(w1[latent:]))
    h = _leaky_relu(h + b1)
    h = _leaky_relu(dot(bf(h), bf(w2)) + b2)
    h = _leaky_relu(dot(bf(h), bf(w3)) + b3)
    out = jnp.sum(h * bf(w4).reshape(1, 512).astype(jnp.float32),
                  axis=-1, keepdims=True) + b4
    return out


if __name__ == "__main__":
    key = jax.random.PRNGKey(0)
    B, ENC_H, LATENT = 8, 1024, 32

    kz, kenc, kp = jax.random.split(key, 3)
    z = jax.random.normal(kz, (B, LATENT), jnp.float32)
    enc = jax.random.normal(kenc, (B, ENC_H), jnp.float32)
    params = init_params(kp, enc_h_dim=ENC_H, latent_dim=LATENT)

    out = nu_xz_forward(z, enc, params)
    out = jax.block_until_ready(out)

    ref = nu_xz_reference(z, enc, params)
    assert out.shape == (B, 1)
    assert jnp.allclose(out, ref, atol=5e-3, rtol=5e-3), (
        jnp.max(jnp.abs(out - ref)))

    print("KERNEL_OK")
</pallas_src>

<mosaic_0001>
module attributes {stable_mosaic.version = 11 : i64} {
  func.func @nu_xz_kernel(%arg0: i32, %arg1: memref<8x32xbf16, #tpu.memory_space<vmem>>, %arg2: memref<8x1024xbf16, #tpu.memory_space<vmem>>, %arg3: memref<32x512xbf16, #tpu.memory_space<vmem>>, %arg4: memref<1024x512xbf16, #tpu.memory_space<vmem>>, %arg5: memref<1x512xf32, #tpu.memory_space<vmem>>, %arg6: memref<512x512xbf16, #tpu.memory_space<vmem>>, %arg7: memref<1x512xf32, #tpu.memory_space<vmem>>, %arg8: memref<512x512xbf16, #tpu.memory_space<vmem>>, %arg9: memref<1x512xf32, #tpu.memory_space<vmem>>, %arg10: memref<1x512xbf16, #tpu.memory_space<vmem>>, %arg11: memref<1x1xf32, #tpu.memory_space<vmem>>, %arg12: memref<8x1xf32, #tpu.memory_space<vmem>>) attributes {dimension_semantics = [#tpu.dimension_semantics<parallel>], iteration_bounds = array<i64: 1>, scalar_prefetch = 0 : i64, scratch_operands = 0 : i64, tpu.core_type = #tpu.core_type<tc>, window_params = [{transform_indices = @transform_0, window_bounds = array<i64: 8, 32>}, {transform_indices = @transform_1, window_bounds = array<i64: 8, 1024>}, {pipeline_mode = #tpu.pipeline_mode<synchronous>, transform_indices = @transform_2, window_bounds = array<i64: 32, 512>}, {pipeline_mode = #tpu.pipeline_mode<synchronous>, transform_indices = @transform_3, window_bounds = array<i64: 1024, 512>}, {pipeline_mode = #tpu.pipeline_mode<synchronous>, transform_indices = @transform_4, window_bounds = array<i64: 1, 512>}, {pipeline_mode = #tpu.pipeline_mode<synchronous>, transform_indices = @transform_5, window_bounds = array<i64: 512, 512>}, {pipeline_mode = #tpu.pipeline_mode<synchronous>, transform_indices = @transform_6, window_bounds = array<i64: 1, 512>}, {pipeline_mode = #tpu.pipeline_mode<synchronous>, transform_indices = @transform_7, window_bounds = array<i64: 512, 512>}, {pipeline_mode = #tpu.pipeline_mode<synchronous>, transform_indices = @transform_8, window_bounds = array<i64: 1, 512>}, {pipeline_mode = #tpu.pipeline_mode<synchronous>, transform_indices = @transform_9, window_bounds = array<i64: 1, 512>}, {pipeline_mode = #tpu.pipeline_mode<synchronous>, transform_indices = @transform_10, window_bounds = array<i64: 1, 1>}, {transform_indices = @transform_11, window_bounds = array<i64: 8, 1>}]} {
    %c0 = arith.constant 0 : index
    %c0_0 = arith.constant 0 : index
    %0 = vector.load %arg1[%c0, %c0_0] : memref<8x32xbf16, #tpu.memory_space<vmem>>, vector<8x32xbf16>
    %c0_1 = arith.constant 0 : index
    %c0_2 = arith.constant 0 : index
    %1 = vector.load %arg3[%c0_1, %c0_2] : memref<32x512xbf16, #tpu.memory_space<vmem>>, vector<32x512xbf16>
    %cst = arith.constant dense<0.000000e+00> : vector<8x512xf32>
    %2 = tpu.matmul %0, %1, %cst {dimension_numbers = #tpu.dot_dimension_numbers<[1], [0], [0], [1], [0, 0, 1, 1], [], []>} : vector<8x32xbf16>, vector<32x512xbf16>, vector<8x512xf32> -> vector<8x512xf32>
    %c0_3 = arith.constant 0 : index
    %c0_4 = arith.constant 0 : index
    %3 = vector.load %arg2[%c0_3, %c0_4] : memref<8x1024xbf16, #tpu.memory_space<vmem>>, vector<8x1024xbf16>
    %c0_5 = arith.constant 0 : index
    %c0_6 = arith.constant 0 : index
    %4 = vector.load %arg4[%c0_5, %c0_6] : memref<1024x512xbf16, #tpu.memory_space<vmem>>, vector<1024x512xbf16>
    %cst_7 = arith.constant dense<0.000000e+00> : vector<8x512xf32>
    %5 = tpu.matmul %3, %4, %cst_7 {dimension_numbers = #tpu.dot_dimension_numbers<[1], [0], [0], [1], [0, 0, 1, 1], [], []>} : vector<8x1024xbf16>, vector<1024x512xbf16>, vector<8x512xf32> -> vector<8x512xf32>
    %6 = arith.addf %2, %5 : vector<8x512xf32>
    %c0_8 = arith.constant 0 : index
    %c0_9 = arith.constant 0 : index
    %7 = vector.load %arg5[%c0_8, %c0_9] : memref<1x512xf32, #tpu.memory_space<vmem>>, vector<1x512xf32>
    %8 = vector.broadcast %7 : vector<1x512xf32> to vector<8x512xf32>
    %9 = arith.addf %6, %8 : vector<8x512xf32>
    %cst_10 = arith.constant 0.000000e+00 : f32
    %10 = vector.broadcast %cst_10 : f32 to vector<8x512xf32>
    %11 = arith.cmpf oge, %9, %10 : vector<8x512xf32>
    %cst_11 = arith.constant 0.00999999977 : f32
    %12 = vector.broadcast %cst_11 : f32 to vector<8x512xf32>
    %13 = arith.mulf %12, %9 : vector<8x512xf32>
    %14 = arith.select %11, %9, %13 : vector<8x512xi1>, vector<8x512xf32>
    %15 = arith.truncf %14 : vector<8x512xf32> to vector<8x512xbf16>
    %c0_12 = arith.constant 0 : index
    %c0_13 = arith.constant 0 : index
    %16 = vector.load %arg6[%c0_12, %c0_13] : memref<512x512xbf16, #tpu.memory_space<vmem>>, vector<512x512xbf16>
    %cst_14 = arith.constant dense<0.000000e+00> : vector<8x512xf32>
    %17 = tpu.matmul %15, %16, %cst_14 {dimension_numbers = #tpu.dot_dimension_numbers<[1], [0], [0], [1], [0, 0, 1, 1], [], []>} : vector<8x512xbf16>, vector<512x512xbf16>, vector<8x512xf32> -> vector<8x512xf32>
    %c0_15 = arith.constant 0 : index
    %c0_16 = arith.constant 0 : index
    %18 = vector.load %arg7[%c0_15, %c0_16] : memref<1x512xf32, #tpu.memory_space<vmem>>, vector<1x512xf32>
    %19 = vector.broadcast %18 : vector<1x512xf32> to vector<8x512xf32>
    %20 = arith.addf %17, %19 : vector<8x512xf32>
    %cst_17 = arith.constant 0.000000e+00 : f32
    %21 = vector.broadcast %cst_17 : f32 to vector<8x512xf32>
    %22 = arith.cmpf oge, %20, %21 : vector<8x512xf32>
    %cst_18 = arith.constant 0.00999999977 : f32
    %23 = vector.broadcast %cst_18 : f32 to vector<8x512xf32>
    %24 = arith.mulf %23, %20 : vector<8x512xf32>
    %25 = arith.select %22, %20, %24 : vector<8x512xi1>, vector<8x512xf32>
    %26 = arith.truncf %25 : vector<8x512xf32> to vector<8x512xbf16>
    %c0_19 = arith.constant 0 : index
    %c0_20 = arith.constant 0 : index
    %27 = vector.load %arg8[%c0_19, %c0_20] : memref<512x512xbf16, #tpu.memory_space<vmem>>, vector<512x512xbf16>
    %cst_21 = arith.constant dense<0.000000e+00> : vector<8x512xf32>
    %28 = tpu.matmul %26, %27, %cst_21 {dimension_numbers = #tpu.dot_dimension_numbers<[1], [0], [0], [1], [0, 0, 1, 1], [], []>} : vector<8x512xbf16>, vector<512x512xbf16>, vector<8x512xf32> -> vector<8x512xf32>
    %c0_22 = arith.constant 0 : index
    %c0_23 = arith.constant 0 : index
    %29 = vector.load %arg9[%c0_22, %c0_23] : memref<1x512xf32, #tpu.memory_space<vmem>>, vector<1x512xf32>
    %30 = vector.broadcast %29 : vector<1x512xf32> to vector<8x512xf32>
    %31 = arith.addf %28, %30 : vector<8x512xf32>
    %cst_24 = arith.constant 0.000000e+00 : f32
    %32 = vector.broadcast %cst_24 : f32 to vector<8x512xf32>
    %33 = arith.cmpf oge, %31, %32 : vector<8x512xf32>
    %cst_25 = arith.constant 0.00999999977 : f32
    %34 = vector.broadcast %cst_25 : f32 to vector<8x512xf32>
    %35 = arith.mulf %34, %31 : vector<8x512xf32>
    %36 = arith.select %33, %31, %35 : vector<8x512xi1>, vector<8x512xf32>
    %c0_26 = arith.constant 0 : index
    %c0_27 = arith.constant 0 : index
    %37 = vector.load %arg10[%c0_26, %c0_27] : memref<1x512xbf16, #tpu.memory_space<vmem>>, vector<1x512xbf16>
    %38 = arith.extf %37 : vector<1x512xbf16> to vector<1x512xf32>
    %39 = vector.broadcast %38 : vector<1x512xf32> to vector<8x512xf32>
    %40 = arith.mulf %36, %39 : vector<8x512xf32>
    %cst_28 = arith.constant dense<0.000000e+00> : vector<8xf32>
    %41 = vector.multi_reduction <add>, %40, %cst_28 [1] : vector<8x512xf32> to vector<8xf32>
    %42 = vector.shape_cast %41 : vector<8xf32> to vector<8x1xf32>
    %c0_29 = arith.constant 0 : index
    %c0_30 = arith.constant 0 : index
    %43 = vector.load %arg11[%c0_29, %c0_30] : memref<1x1xf32, #tpu.memory_space<vmem>>, vector<1x1xf32>
    %44 = vector.broadcast %43 : vector<1x1xf32> to vector<8x1xf32>
    %45 = arith.addf %42, %44 : vector<8x1xf32>
    %c0_31 = arith.constant 0 : index
    %c0_32 = arith.constant 0 : index
    %46 = vector.load %arg12[%c0_31, %c0_32] : memref<8x1xf32, #tpu.memory_space<vmem>>, vector<8x1xf32>
    tpu.vector_store %arg12[%c0_31, %c0_32], %45 {strides = array<i32>} : memref<8x1xf32, #tpu.memory_space<vmem>>, vector<8x1xf32>,
    return
  }
  func.func @transform_0(%arg0: i32) -> (i32, i32) {
    %c0_i32 = arith.constant 0 : i32
    %c0_i32_0 = arith.constant 0 : i32
    return %arg0, %c0_i32 : i32, i32
  }
  func.func @transform_1(%arg0: i32) -> (i32, i32) {
    %c0_i32 = arith.constant 0 : i32
    %c0_i32_0 = arith.constant 0 : i32
    return %arg0, %c0_i32 : i32, i32
  }
  func.func @transform_2(%arg0: i32) -> (i32, i32) {
    %c0_i32 = arith.constant 0 : i32
    %c0_i32_0 = arith.constant 0 : i32
    %c0_i32_1 = arith.constant 0 : i32
    return %c0_i32, %c0_i32_0 : i32, i32
  }
  func.func @transform_3(%arg0: i32) -> (i32, i32) {
    %c0_i32 = arith.constant 0 : i32
    %c0_i32_0 = arith.constant 0 : i32
    %c0_i32_1 = arith.constant 0 : i32
    return %c0_i32, %c0_i32_0 : i32, i32
  }
  func.func @transform_4(%arg0: i32) -> (i32, i32) {
    %c0_i32 = arith.constant 0 : i32
    %c0_i32_0 = arith.constant 0 : i32
    %c0_i32_1 = arith.constant 0 : i32
    return %c0_i32, %c0_i32_0 : i32, i32
  }
  func.func @transform_5(%arg0: i32) -> (i32, i32) {
    %c0_i32 = arith.constant 0 : i32
    %c0_i32_0 = arith.constant 0 : i32
    %c0_i32_1 = arith.constant 0 : i32
    return %c0_i32, %c0_i32_0 : i32, i32
  }
  func.func @transform_6(%arg0: i32) -> (i32, i32) {
    %c0_i32 = arith.constant 0 : i32
    %c0_i32_0 = arith.constant 0 : i32
    %c0_i32_1 = arith.constant 0 : i32
    return %c0_i32, %c0_i32_0 : i32, i32
  }
  func.func @transform_7(%arg0: i32) -> (i32, i32) {
    %c0_i32 = arith.constant 0 : i32
    %c0_i32_0 = arith.constant 0 : i32
    %c0_i32_1 = arith.constant 0 : i32
    return %c0_i32, %c0_i32_0 : i32, i32
  }
  func.func @transform_8(%arg0: i32) -> (i32, i32) {
    %c0_i32 = arith.constant 0 : i32
    %c0_i32_0 = arith.constant 0 : i32
    %c0_i32_1 = arith.constant 0 : i32
    return %c0_i32, %c0_i32_0 : i32, i32
  }
  func.func @transform_9(%arg0: i32) -> (i32, i32) {
    %c0_i32 = arith.constant 0 : i32
    %c0_i32_0 = arith.constant 0 : i32
    %c0_i32_1 = arith.constant 0 : i32
    return %c0_i32, %c0_i32_0 : i32, i32
  }
  func.func @transform_10(%arg0: i32) -> (i32, i32) {
    %c0_i32 = arith.constant 0 : i32
    %c0_i32_0 = arith.constant 0 : i32
    %c0_i32_1 = arith.constant 0 : i32
    return %c0_i32, %c0_i32_0 : i32, i32
  }
  func.func @transform_11(%arg0: i32) -> (i32, i32) {
    %c0_i32 = arith.constant 0 : i32
    %c0_i32_0 = arith.constant 0 : i32
    return %arg0, %c0_i32 : i32, i32
  }
}

</mosaic_0001>

<llo_original>
// kernel: tpu_custom_call.1
$region0: #{tpu_custom_call.1}
  #allocation0 [shape = 'u32[]', space=smem, size = 0x4, offset = 0x4, fixed_abs, tag = 'smem constant byte address 0x4 - core index']
  #allocation1 [shape = 'u32[144,128]{1,0:T(1,128)}', space=vmem, size = 0x12000, scoped, tag = 'internal scratch']
  #allocation2 [shape = 'f32[1,1]{1,0:T(1,128)S(1)}', space=vmem, size = 0x200, scoped, tag = 'scoped memory for tpu_custom_call.1']
  %s0 = inlined_call_operand.hbm [shape: bf16[8,32], index: 0, kind: input, shape index: {}]
  %s1 = inlined_call_operand.hbm [shape: bf16[8,1024], index: 1, kind: input, shape index: {}]
  %s2 = inlined_call_operand.hbm [shape: bf16[32,512], index: 2, kind: input, shape index: {}]
  %s3 = inlined_call_operand.hbm [shape: bf16[1024,512], index: 3, kind: input, shape index: {}]
  %s4 = inlined_call_operand.vmem [shape: f32[1,512], index: 4, kind: input, shape index: {}]
  %s5 = inlined_call_operand.hbm [shape: bf16[512,512], index: 5, kind: input, shape index: {}]
  %s6 = inlined_call_operand.vmem [shape: f32[1,512], index: 6, kind: input, shape index: {}]
  %s7 = inlined_call_operand.hbm [shape: bf16[512,512], index: 7, kind: input, shape index: {}]
  %s8 = inlined_call_operand.vmem [shape: f32[1,512], index: 8, kind: input, shape index: {}]
  %s9 = inlined_call_operand.vmem [shape: bf16[1,512], index: 9, kind: input, shape index: {}]
  %s10 = inlined_call_operand.<no memory space> [shape: f32[1,1], index: 10, kind: input, shape index: {}]
  %s11 = inlined_call_operand.vmem [shape: f32[8,1], index: 11, kind: output, shape index: {}]
  %s12 = sld [smem:[#allocation0]]
  $region78: #{tpu_custom_call.1} parent=0
    _
  %s14 = ssub.s32 1, %s12
  %s15 = scalar_select 0, %s14, %s12
  %v16 = vstv %s10
  %17 = vst [vmem:[#allocation2] sm:$0x1] %v16
  $region1: #{tpu_custom_call.1} parent=0
    #allocation3 [shape = 'u8[2048]{0}', space=vmem, size = 0x800, scoped, tag = 'input window, operand 0, single buffered']
    #allocation4 [shape = 's32[1]{0}', space=sflag, size = 0x4, scoped, tag = 'scoped memory for tpu_custom_call.1']
    #allocation5 [shape = 'u8[16384]{0}', space=vmem, size = 0x4000, scoped, tag = 'input window, operand 1, single buffered']
    #allocation6 [shape = 's32[1]{0}', space=sflag, size = 0x4, scoped, tag = 'scoped memory for tpu_custom_call.1']
    #allocation7 [shape = 'u8[32768]{0}', space=vmem, size = 0x8000, scoped, tag = 'input window, operand 2, single buffered']
    #allocation8 [shape = 'u8[1048576]{0}', space=vmem, size = 0x100000, scoped, tag = 'input window, operand 3, single buffered']
    #allocation9 [shape = 's32[1]{0}', space=sflag, size = 0x4, scoped, tag = 'scoped memory for tpu_custom_call.1']
    #allocation10 [shape = 'u8[524288]{0}', space=vmem, size = 0x80000, scoped, tag = 'input window, operand 5, single buffered']
    #allocation11 [shape = 'u8[524288]{0}', space=vmem, size = 0x80000, scoped, tag = 'input window, operand 7, single buffered']
    #allocation12 [shape = 's32[1]{0}', space=sflag, size = 0x4, scoped, tag = 'scoped memory for tpu_custom_call.1']
    %18 = vsyncpa [#allocation4], 0
    %19 = vsyncpa [#allocation6], 0
    %20 = vsyncpa [#allocation9], 0
    %21 = vsyncpa [#allocation12], 0
    // Predicated region
    $region2: #{tpu_custom_call.1} parent=1 // pred_check
      _
    $region3: #{tpu_custom_call.1} parent=1 // pred_check_branch
      %23 = sbr.rel (0) target = $region5
    $region4: #{tpu_custom_call.1} parent=1 // pred_region
      %s25 = ssub.s32 64, 64
      %26 = vsyncadd [#allocation4], %s25
      %s28 = sshll.u32 [#allocation3], 4
      %s29 = int_to_ptr.vmem [resolvable:$true] %s28
      %31 = dma.hbm_to_vmem [thread:$0]  %s0, 64, %s29, [#allocation4]
    $region5: #{tpu_custom_call.1} parent=1 // pred_fallthru
      _
    // Predicated region
    $region6: #{tpu_custom_call.1} parent=1 // pred_check
      _
    $region7: #{tpu_custom_call.1} parent=1 // pred_check_branch
      %33 = sbr.rel (0) target = $region9
    $region8: #{tpu_custom_call.1} parent=1 // pred_region
      %s35 = ssub.s32 512, 512
      %36 = vsyncadd [#allocation6], %s35
      %s38 = sshll.u32 [#allocation5], 4
      %s39 = int_to_ptr.vmem [resolvable:$true] %s38
      %41 = dma.hbm_to_vmem [thread:$0]  %s1, 512, %s39, [#allocation6]
    $region9: #{tpu_custom_call.1} parent=1 // pred_fallthru
      _
    // Predicated region
    $region10: #{tpu_custom_call.1} parent=1 // pred_check
      _
    $region11: #{tpu_custom_call.1} parent=1 // pred_check_branch
      %43 = sbr.rel (0) target = $region13
    $region12: #{tpu_custom_call.1} parent=1 // pred_region
      %s45 = ssub.s32 1024, 1024
      %46 = vsyncadd [#allocation6], %s45
      %s47 = sshll.u32 [#allocation7], 4
      %s48 = int_to_ptr.vmem [resolvable:$true] %s47
      %53 = dma.hbm_to_vmem [thread:$0]  %s2, 1024, %s48, [#allocation6], 256, 256, 16
    $region13: #{tpu_custom_call.1} parent=1 // pred_fallthru
      _
    // Predicated region
    $region14: #{tpu_custom_call.1} parent=1 // pred_check
      _
    $region15: #{tpu_custom_call.1} parent=1 // pred_check_branch
      %55 = sbr.rel (0) target = $region17
    $region16: #{tpu_custom_call.1} parent=1 // pred_region
      %s57 = ssub.s32 32768, 32768
      %58 = vsyncadd [#allocation9], %s57
      %s59 = sshll.u32 [#allocation8], 4
      %s60 = int_to_ptr.vmem [resolvable:$true] %s59
      %65 = dma.hbm_to_vmem [thread:$0]  %s3, 32768, %s60, [#allocation9], 256, 256, 16
    $region17: #{tpu_custom_call.1} parent=1 // pred_fallthru
      _
    // Predicated region
    $region18: #{tpu_custom_call.1} parent=1 // pred_check
      _
    $region19: #{tpu_custom_call.1} parent=1 // pred_check_branch
      %67 = sbr.rel (0) target = $region21
    $region20: #{tpu_custom_call.1} parent=1 // pred_region
      _
    $region21: #{tpu_custom_call.1} parent=1 // pred_fallthru
      _
    // Predicated region
    $region22: #{tpu_custom_call.1} parent=1 // pred_check
      _
    $region23: #{tpu_custom_call.1} parent=1 // pred_check_branch
      %69 = sbr.rel (0) target = $region25
    $region24: #{tpu_custom_call.1} parent=1 // pred_region
      %s71 = ssub.s32 16384, 16384
      %72 = vsyncadd [#allocation9], %s71
      %s73 = sshll.u32 [#allocation10], 4
      %s74 = int_to_ptr.vmem [resolvable:$true] %s73
      %79 = dma.hbm_to_vmem [thread:$0]  %s5, 16384, %s74, [#allocation9], 256, 256, 16
    $region25: #{tpu_custom_call.1} parent=1 // pred_fallthru
      _
    // Predicated region
    $region26: #{tpu_custom_call.1} parent=1 // pred_check
      _
    $region27: #{tpu_custom_call.1} parent=1 // pred_check_branch
      %81 = sbr.rel (0) target = $region29
    $region28: #{tpu_custom_call.1} parent=1 // pred_region
      _
    $region29: #{tpu_custom_call.1} parent=1 // pred_fallthru
      _
    // Predicated region
    $region30: #{tpu_custom_call.1} parent=1 // pred_check
      _
    $region31: #{tpu_custom_call.1} parent=1 // pred_check_branch
      %83 = sbr.rel (0) target = $region33
    $region32: #{tpu_custom_call.1} parent=1 // pred_region
      %s85 = ssub.s32 16384, 16384
      %86 = vsyncadd [#allocation12], %s85
      %s87 = sshll.u32 [#allocation11], 4
      %s88 = int_to_ptr.vmem [resolvable:$true] %s87
      %93 = dma.hbm_to_vmem [thread:$0]  %s7, 16384, %s88, [#allocation12], 256, 256, 16
    $region33: #{tpu_custom_call.1} parent=1 // pred_fallthru
      _
    // Predicated region
    $region34: #{tpu_custom_call.1} parent=1 // pred_check
      _
    $region35: #{tpu_custom_call.1} parent=1 // pred_check_branch
      %95 = sbr.rel (0) target = $region37
    $region36: #{tpu_custom_call.1} parent=1 // pred_region
      _
    $region37: #{tpu_custom_call.1} parent=1 // pred_fallthru
      _
    // Predicated region
    $region38: #{tpu_custom_call.1} parent=1 // pred_check
      _
    $region39: #{tpu_custom_call.1} parent=1 // pred_check_branch
      %97 = sbr.rel (0) target = $region41
    $region40: #{tpu_custom_call.1} parent=1 // pred_region
      _
    $region41: #{tpu_custom_call.1} parent=1 // pred_fallthru
      _
    // Predicated region
    $region42: #{tpu_custom_call.1} parent=1 // pred_check
      _
    $region43: #{tpu_custom_call.1} parent=1 // pred_check_branch
      %99 = sbr.rel (0) target = $region45
    $region44: #{tpu_custom_call.1} parent=1 // pred_region
      _
    $region45: #{tpu_custom_call.1} parent=1 // pred_fallthru
      _
    // Predicated region
    $region46: #{tpu_custom_call.1} parent=1 // pred_check
      _
    $region47: #{tpu_custom_call.1} parent=1 // pred_check_branch
      %101 = sbr.rel (0) target = $region49
    $region48: #{tpu_custom_call.1} parent=1 // pred_region
      %102 = dma.done [#allocation4], 64
    $region49: #{tpu_custom_call.1} parent=1 // pred_fallthru
      _
    // Predicated region
    $region50: #{tpu_custom_call.1} parent=1 // pred_check
      _
    $region51: #{tpu_custom_call.1} parent=1 // pred_check_branch
      %104 = sbr.rel (0) target = $region53
    $region52: #{tpu_custom_call.1} parent=1 // pred_region
      %105 = dma.done [#allocation6], 512
    $region53: #{tpu_custom_call.1} parent=1 // pred_fallthru
      _
    // Predicated region
    $region54: #{tpu_custom_call.1} parent=1 // pred_check
      _
    $region55: #{tpu_custom_call.1} parent=1 // pred_check_branch
      %107 = sbr.rel (0) target = $region57
    $region56: #{tpu_custom_call.1} parent=1 // pred_region
      %108 = dma.done [#allocation6], 1024
    $region57: #{tpu_custom_call.1} parent=1 // pred_fallthru
      _
    // Predicated region
    $region58: #{tpu_custom_call.1} parent=1 // pred_check
      _
    $region59: #{tpu_custom_call.1} parent=1 // pred_check_branch
      %110 = sbr.rel (0) target = $region61
    $region60: #{tpu_custom_call.1} parent=1 // pred_region
      %111 = dma.done [#allocation9], 32768
    $region61: #{tpu_custom_call.1} parent=1 // pred_fallthru
      _
    // Predicated region
    $region62: #{tpu_custom_call.1} parent=1 // pred_check
      _
    $region63: #{tpu_custom_call.1} parent=1 // pred_check_branch
      %113 = sbr.rel (0) target = $region65
    $region64: #{tpu_custom_call.1} parent=1 // pred_region
      %114 = dma.done [#allocation9], 16384
    $region65: #{tpu_custom_call.1} parent=1 // pred_fallthru
      _
    // Predicated region
    $region66: #{tpu_custom_call.1} parent=1 // pred_check
      _
    $region67: #{tpu_custom_call.1} parent=1 // pred_check_branch
      %116 = sbr.rel (0) target = $region69
    $region68: #{tpu_custom_call.1} parent=1 // pred_region
      %117 = dma.done [#allocation12], 16384
    $region69: #{tpu_custom_call.1} parent=1 // pred_fallthru
      _
    %v119 = vld [vmem:[#allocation3] sm:$0xf]
    %v120 = vld [vmem:[#allocation7] sm:$0xff]
    %v121 = vld [vmem:[#allocation7 + $0x8] sm:$0xff]
    %v122 = vld [vmem:[#allocation7 + $0x10] sm:$0xff]
    %v123 = vld [vmem:[#allocation7 + $0x18] sm:$0xff]
    %v124 = vld [vmem:[#allocation7 + $0x20] sm:$0xff]
    %v125 = vld [vmem:[#allocation7 + $0x28] sm:$0xff]
    %v126 = vld [vmem:[#allocation7 + $0x30] sm:$0xff]
    %v127 = vld [vmem:[#allocation7 + $0x38] sm:$0xff]
    %v128 = vld [vmem:[#allocation5] sm:$0xff]
    %v129 = vld [vmem:[#allocation5 + $0x8] sm:$0xff]
    %v130 = vld [vmem:[#allocation5 + $0x10] sm:$0xff]
    %v131 = vld [vmem:[#allocation5 + $0x18] sm:$0xff]
    %v132 = vld [vmem:[#allocation8] sm:$0xff]
    %v133 = vld [vmem:[#allocation8 + $0x8] sm:$0xff]
    %v134 = vld [vmem:[#allocation8 + $0x10] sm:$0xff]
    %v135 = vld [vmem:[#allocation8 + $0x18] sm:$0xff]
    %v136 = vld [vmem:[#allocation8 + $0x20] sm:$0xff]
    %v137 = vld [vmem:[#allocation8 + $0x28] sm:$0xff]
    %v138 = vld [vmem:[#allocation8 + $0x30] sm:$0xff]
    %v139 = vld [vmem:[#allocation8 + $0x38] sm:$0xff]
    %v140 = vld [vmem:[#allocation8 + $0x40] sm:$0xff]
    %v141 = vld [vmem:[#allocation8 + $0x48] sm:$0xff]
    %v142 = vld [vmem:[#allocation8 + $0x50] sm:$0xff]
    %v143 = vld [vmem:[#allocation8 + $0x58] sm:$0xff]
    %v144 = vld [vmem:[#allocation8 + $0x60] sm:$0xff]
    %v145 = vld [vmem:[#allocation8 + $0x68] sm:$0xff]
    %v146 = vld [vmem:[#allocation8 + $0x70] sm:$0xff]
    %v147 = vld [vmem:[#allocation8 + $0x78] sm:$0xff]
    %v148 = vld [vmem:[#allocation8 + $0x80] sm:$0xff]
    %v149 = vld [vmem:[#allocation8 + $0x88] sm:$0xff]
    %v150 = vld [vmem:[#allocation8 + $0x90] sm:$0xff]
    %v151 = vld [vmem:[#allocation8 + $0x98] sm:$0xff]
    %v152 = vld [vmem:[#allocation8 + $0xa0] sm:$0xff]
    %v153 = vld [vmem:[#allocation8 + $0xa8] sm:$0xff]
    %v154 = vld [vmem:[#allocation8 + $0xb0] sm:$0xff]
    %v155 = vld [vmem:[#allocation8 + $0xb8] sm:$0xff]
    %v156 = vld [vmem:[#allocation8 + $0xc0] sm:$0xff]
    %v157 = vld [vmem:[#allocation8 + $0xc8] sm:$0xff]
    %v158 = vld [vmem:[#allocation8 + $0xd0] sm:$0xff]
    %v159 = vld [vmem:[#allocation8 + $0xd8] sm:$0xff]
    %v160 = vld [vmem:[#allocation8 + $0xe0] sm:$0xff]
    %v161 = vld [vmem:[#allocation8 + $0xe8] sm:$0xff]
    %v162 = vld [vmem:[#allocation8 + $0xf0] sm:$0xff]
    %v163 = vld [vmem:[#allocation8 + $0xf8] sm:$0xff]
    %v164 = vld [vmem:[#allocation8 + $0x100] sm:$0xff]
    %v165 = vld [vmem:[#allocation8 + $0x108] sm:$0xff]
    %v166 = vld [vmem:[#allocation8 + $0x110] sm:$0xff]
    %v167 = vld [vmem:[#allocation8 + $0x118] sm:$0xff]
    %v168 = vld [vmem:[#allocation8 + $0x120] sm:$0xff]
    %v169 = vld [vmem:[#allocation8 + $0x128] sm:$0xff]
    %v170 = vld [vmem:[#allocation8 + $0x130] sm:$0xff]
    %v171 = vld [vmem:[#allocation8 + $0x138] sm:$0xff]
    %v172 = vld [vmem:[#allocation8 + $0x140] sm:$0xff]
    %v173 = vld [vmem:[#allocation8 + $0x148] sm:$0xff]
    %v174 = vld [vmem:[#allocation8 + $0x150] sm:$0xff]
    %v175 = vld [vmem:[#allocation8 + $0x158] sm:$0xff]
    %v176 = vld [vmem:[#allocation8 + $0x160] sm:$0xff]
    %v177 = vld [vmem:[#allocation8 + $0x168] sm:$0xff]
    %v178 = vld [vmem:[#allocation8 + $0x170] sm:$0xff]
    %v179 = vld [vmem:[#allocation8 + $0x178] sm:$0xff]
    %v180 = vld [vmem:[#allocation8 + $0x180] sm:$0xff]
    %v181 = vld [vmem:[#allocation8 + $0x188] sm:$0xff]
    %v182 = vld [vmem:[#allocation8 + $0x190] sm:$0xff]
    %v183 = vld [vmem:[#allocation8 + $0x198] sm:$0xff]
    %v184 = vld [vmem:[#allocation8 + $0x1a0] sm:$0xff]
    %v185 = vld [vmem:[#allocation8 + $0x1a8] sm:$0xff]
    %v186 = vld [vmem:[#allocation8 + $0x1b0] sm:$0xff]
    %v187 = vld [vmem:[#allocation8 + $0x1b8] sm:$0xff]
    %v188 = vld [vmem:[#allocation8 + $0x1c0] sm:$0xff]
    %v189 = vld [vmem:[#allocation8 + $0x1c8] sm:$0xff]
    %v190 = vld [vmem:[#allocation8 + $0x1d0] sm:$0xff]
    %v191 = vld [vmem:[#allocation8 + $0x1d8] sm:$0xff]
    %v192 = vld [vmem:[#allocation8 + $0x1e0] sm:$0xff]
    %v193 = vld [vmem:[#allocation8 + $0x1e8] sm:$0xff]
    %v194 = vld [vmem:[#allocation8 + $0x1f0] sm:$0xff]
    %v195 = vld [vmem:[#allocation8 + $0x1f8] sm:$0xff]
    %v196 = vld [vmem:[#allocation8 + $0x200] sm:$0xff]
    %v197 = vld [vmem:[#allocation8 + $0x208] sm:$0xff]
    %v198 = vld [vmem:[#allocation8 + $0x210] sm:$0xff]
    %v199 = vld [vmem:[#allocation8 + $0x218] sm:$0xff]
    %v200 = vld [vmem:[#allocation8 + $0x220] sm:$0xff]
    %v201 = vld [vmem:[#allocation8 + $0x228] sm:$0xff]
    %v202 = vld [vmem:[#allocation8 + $0x230] sm:$0xff]
    %v203 = vld [vmem:[#allocation8 + $0x238] sm:$0xff]
    %v204 = vld [vmem:[#allocation8 + $0x240] sm:$0xff]
    %v205 = vld [vmem:[#allocation8 + $0x248] sm:$0xff]
    %v206 = vld [vmem:[#allocation8 + $0x250] sm:$0xff]
    %v207 = vld [vmem:[#allocation8 + $0x258] sm:$0xff]
    %v208 = vld [vmem:[#allocation8 + $0x260] sm:$0xff]
    %v209 = vld [vmem:[#allocation8 + $0x268] sm:$0xff]
    %v210 = vld [vmem:[#allocation8 + $0x270] sm:$0xff]
    %v211 = vld [vmem:[#allocation8 + $0x278] sm:$0xff]
    %v212 = vld [vmem:[#allocation8 + $0x280] sm:$0xff]
    %v213 = vld [vmem:[#allocation8 + $0x288] sm:$0xff]
    %v214 = vld [vmem:[#allocation8 + $0x290] sm:$0xff]
    %v215 = vld [vmem:[#allocation8 + $0x298] sm:$0xff]
    %v216 = vld [vmem:[#allocation8 + $0x2a0] sm:$0xff]
    %v217 = vld [vmem:[#allocation8 + $0x2a8] sm:$0xff]
    %v218 = vld [vmem:[#allocation8 + $0x2b0] sm:$0xff]
    %v219 = vld [vmem:[#allocation8 + $0x2b8] sm:$0xff]
    %v220 = vld [vmem:[#allocation8 + $0x2c0] sm:$0xff]
    %v221 = vld [vmem:[#allocation8 + $0x2c8] sm:$0xff]
    %v222 = vld [vmem:[#allocation8 + $0x2d0] sm:$0xff]
    %v223 = vld [vmem:[#allocation8 + $0x2d8] sm:$0xff]
    %v224 = vld [vmem:[#allocation8 + $0x2e0] sm:$0xff]
    %v225 = vld [vmem:[#allocation8 + $0x2e8] sm:$0xff]
    %v226 = vld [vmem:[#allocation8 + $0x2f0] sm:$0xff]
    %v227 = vld [vmem:[#allocation8 + $0x2f8] sm:$0xff]
    %v228 = vld [vmem:[#allocation8 + $0x300] sm:$0xff]
    %v229 = vld [vmem:[#allocation8 + $0x308] sm:$0xff]
    %v230 = vld [vmem:[#allocation8 + $0x310] sm:$0xff]
    %v231 = vld [vmem:[#allocation8 + $0x318] sm:$0xff]
    %v232 = vld [vmem:[#allocation8 + $0x320] sm:$0xff]
    %v233 = vld [vmem:[#allocation8 + $0x328] sm:$0xff]
    %v234 = vld [vmem:[#allocation8 + $0x330] sm:$0xff]
    %v235 = vld [vmem:[#allocation8 + $0x338] sm:$0xff]
    %v236 = vld [vmem:[#allocation8 + $0x340] sm:$0xff]
    %v237 = vld [vmem:[#allocation8 + $0x348] sm:$0xff]
    %v238 = vld [vmem:[#allocation8 + $0x350] sm:$0xff]
    %v239 = vld [vmem:[#allocation8 + $0x358] sm:$0xff]
    %v240 = vld [vmem:[#allocation8 + $0x360] sm:$0xff]
    %v241 = vld [vmem:[#allocation8 + $0x368] sm:$0xff]
    %v242 = vld [vmem:[#allocation8 + $0x370] sm:$0xff]
    %v243 = vld [vmem:[#allocation8 + $0x378] sm:$0xff]
    %v244 = vld [vmem:[#allocation8 + $0x380] sm:$0xff]
    %v245 = vld [vmem:[#allocation8 + $0x388] sm:$0xff]
    %v246 = vld [vmem:[#allocation8 + $0x390] sm:$0xff]
    %v247 = vld [vmem:[#allocation8 + $0x398] sm:$0xff]
    %v248 = vld [vmem:[#allocation8 + $0x3a0] sm:$0xff]
    %v249 = vld [vmem:[#allocation8 + $0x3a8] sm:$0xff]
    %v250 = vld [vmem:[#allocation8 + $0x3b0] sm:$0xff]
    %v251 = vld [vmem:[#allocation8 + $0x3b8] sm:$0xff]
    %v252 = vld [vmem:[#allocation8 + $0x3c0] sm:$0xff]
    %v253 = vld [vmem:[#allocation8 + $0x3c8] sm:$0xff]
    %v254 = vld [vmem:[#allocation8 + $0x3d0] sm:$0xff]
    %v255 = vld [vmem:[#allocation8 + $0x3d8] sm:$0xff]
    %v256 = vld [vmem:[#allocation8 + $0x3e0] sm:$0xff]
    %v257 = vld [vmem:[#allocation8 + $0x3e8] sm:$0xff]
    %v258 = vld [vmem:[#allocation8 + $0x3f0] sm:$0xff]
    %v259 = vld [vmem:[#allocation8 + $0x3f8] sm:$0xff]
    %v260 = vld [vmem:[#allocation8 + $0x400] sm:$0xff]
    %v261 = vld [vmem:[#allocation8 + $0x408] sm:$0xff]
    %v262 = vld [vmem:[#allocation8 + $0x410] sm:$0xff]
    %v263 = vld [vmem:[#allocation8 + $0x418] sm:$0xff]
    %v264 = vld [vmem:[#allocation8 + $0x420] sm:$0xff]
    %v265 = vld [vmem:[#allocation8 + $0x428] sm:$0xff]
    %v266 = vld [vmem:[#allocation8 + $0x430] sm:$0xff]
    %v267 = vld [vmem:[#allocation8 + $0x438] sm:$0xff]
    %v268 = vld [vmem:[#allocation8 + $0x440] sm:$0xff]
    %v269 = vld [vmem:[#allocation8 + $0x448] sm:$0xff]
    %v270 = vld [vmem:[#allocation8 + $0x450] sm:$0xff]
    %v271 = vld [vmem:[#allocation8 + $0x458] sm:$0xff]
    %v272 = vld [vmem:[#allocation8 + $0x460] sm:$0xff]
    %v273 = vld [vmem:[#allocation8 + $0x468] sm:$0xff]
    %v274 = vld [vmem:[#allocation8 + $0x470] sm:$0xff]
    %v275 = vld [vmem:[#allocation8 + $0x478] sm:$0xff]
    %v276 = vld [vmem:[#allocation8 + $0x480] sm:$0xff]
    %v277 = vld [vmem:[#allocation8 + $0x488] sm:$0xff]
    %v278 = vld [vmem:[#allocation8 + $0x490] sm:$0xff]
    %v279 = vld [vmem:[#allocation8 + $0x498] sm:$0xff]
    %v280 = vld [vmem:[#allocation8 + $0x4a0] sm:$0xff]
    %v281 = vld [vmem:[#allocation8 + $0x4a8] sm:$0xff]
    %v282 = vld [vmem:[#allocation8 + $0x4b0] sm:$0xff]
    %v283 = vld [vmem:[#allocation8 + $0x4b8] sm:$0xff]
    %v284 = vld [vmem:[#allocation8 + $0x4c0] sm:$0xff]
    %v285 = vld [vmem:[#allocation8 + $0x4c8] sm:$0xff]
    %v286 = vld [vmem:[#allocation8 + $0x4d0] sm:$0xff]
    %v287 = vld [vmem:[#allocation8 + $0x4d8] sm:$0xff]
    %v288 = vld [vmem:[#allocation8 + $0x4e0] sm:$0xff]
    %v289 = vld [vmem:[#allocation8 + $0x4e8] sm:$0xff]
    %v290 = vld [vmem:[#allocation8 + $0x4f0] sm:$0xff]
    %v291 = vld [vmem:[#allocation8 + $0x4f8] sm:$0xff]
    %v292 = vld [vmem:[#allocation8 + $0x500] sm:$0xff]
    %v293 = vld [vmem:[#allocation8 + $0x508] sm:$0xff]
    %v294 = vld [vmem:[#allocation8 + $0x510] sm:$0xff]
    %v295 = vld [vmem:[#allocation8 + $0x518] sm:$0xff]
    %v296 = vld [vmem:[#allocation8 + $0x520] sm:$0xff]
    %v297 = vld [vmem:[#allocation8 + $0x528] sm:$0xff]
    %v298 = vld [vmem:[#allocation8 + $0x530] sm:$0xff]
    %v299 = vld [vmem:[#allocation8 + $0x538] sm:$0xff]
    %v300 = vld [vmem:[#allocation8 + $0x540] sm:$0xff]
    %v301 = vld [vmem:[#allocation8 + $0x548] sm:$0xff]
    %v302 = vld [vmem:[#allocation8 + $0x550] sm:$0xff]
    %v303 = vld [vmem:[#allocation8 + $0x558] sm:$0xff]
    %v304 = vld [vmem:[#allocation8 + $0x560] sm:$0xff]
    %v305 = vld [vmem:[#allocation8 + $0x568] sm:$0xff]
    %v306 = vld [vmem:[#allocation8 + $0x570] sm:$0xff]
    %v307 = vld [vmem:[#allocation8 + $0x578] sm:$0xff]
    %v308 = vld [vmem:[#allocation8 + $0x580] sm:$0xff]
    %v309 = vld [vmem:[#allocation8 + $0x588] sm:$0xff]
    %v310 = vld [vmem:[#allocation8 + $0x590] sm:$0xff]
    %v311 = vld [vmem:[#allocation8 + $0x598] sm:$0xff]
    %v312 = vld [vmem:[#allocation8 + $0x5a0] sm:$0xff]
    %v313 = vld [vmem:[#allocation8 + $0x5a8] sm:$0xff]
    %v314 = vld [vmem:[#allocation8 + $0x5b0] sm:$0xff]
    %v315 = vld [vmem:[#allocation8 + $0x5b8] sm:$0xff]
    %v316 = vld [vmem:[#allocation8 + $0x5c0] sm:$0xff]
    %v317 = vld [vmem:[#allocation8 + $0x5c8] sm:$0xff]
    %v318 = vld [vmem:[#allocation8 + $0x5d0] sm:$0xff]
    %v319 = vld [vmem:[#allocation8 + $0x5d8] sm:$0xff]
    %v320 = vld [vmem:[#allocation8 + $0x5e0] sm:$0xff]
    %v321 = vld [vmem:[#allocation8 + $0x5e8] sm:$0xff]
    %v322 = vld [vmem:[#allocation8 + $0x5f0] sm:$0xff]
    %v323 = vld [vmem:[#allocation8 + $0x5f8] sm:$0xff]
    %v324 = vld [vmem:[#allocation8 + $0x600] sm:$0xff]
    %v325 = vld [vmem:[#allocation8 + $0x608] sm:$0xff]
    %v326 = vld [vmem:[#allocation8 + $0x610] sm:$0xff]
    %v327 = vld [vmem:[#allocation8 + $0x618] sm:$0xff]
    %v328 = vld [vmem:[#allocation8 + $0x620] sm:$0xff]
    %v329 = vld [vmem:[#allocation8 + $0x628] sm:$0xff]
    %v330 = vld [vmem:[#allocation8 + $0x630] sm:$0xff]
    %v331 = vld [vmem:[#allocation8 + $0x638] sm:$0xff]
    %v332 = vld [vmem:[#allocation8 + $0x640] sm:$0xff]
    %v333 = vld [vmem:[#allocation8 + $0x648] sm:$0xff]
    %v334 = vld [vmem:[#allocation8 + $0x650] sm:$0xff]
    %v335 = vld [vmem:[#allocation8 + $0x658] sm:$0xff]
    %v336 = vld [vmem:[#allocation8 + $0x660] sm:$0xff]
    %v337 = vld [vmem:[#allocation8 + $0x668] sm:$0xff]
    %v338 = vld [vmem:[#allocation8 + $0x670] sm:$0xff]
    %v339 = vld [vmem:[#allocation8 + $0x678] sm:$0xff]
    %v340 = vld [vmem:[#allocation8 + $0x680] sm:$0xff]
    %v341 = vld [vmem:[#allocation8 + $0x688] sm:$0xff]
    %v342 = vld [vmem:[#allocation8 + $0x690] sm:$0xff]
    %v343 = vld [vmem:[#allocation8 + $0x698] sm:$0xff]
    %v344 = vld [vmem:[#allocation8 + $0x6a0] sm:$0xff]
    %v345 = vld [vmem:[#allocation8 + $0x6a8] sm:$0xff]
    %v346 = vld [vmem:[#allocation8 + $0x6b0] sm:$0xff]
    %v347 = vld [vmem:[#allocation8 + $0x6b8] sm:$0xff]
    %v348 = vld [vmem:[#allocation8 + $0x6c0] sm:$0xff]
    %v349 = vld [vmem:[#allocation8 + $0x6c8] sm:$0xff]
    %v350 = vld [vmem:[#allocation8 + $0x6d0] sm:$0xff]
    %v351 = vld [vmem:[#allocation8 + $0x6d8] sm:$0xff]
    %v352 = vld [vmem:[#allocation8 + $0x6e0] sm:$0xff]
    %v353 = vld [vmem:[#allocation8 + $0x6e8] sm:$0xff]
    %v354 = vld [vmem:[#allocation8 + $0x6f0] sm:$0xff]
    %v355 = vld [vmem:[#allocation8 + $0x6f8] sm:$0xff]
    %v356 = vld [vmem:[#allocation8 + $0x700] sm:$0xff]
    %v357 = vld [vmem:[#allocation8 + $0x708] sm:$0xff]
    %v358 = vld [vmem:[#allocation8 + $0x710] sm:$0xff]
    %v359 = vld [vmem:[#allocation8 + $0x718] sm:$0xff]
    %v360 = vld [vmem:[#allocation8 + $0x720] sm:$0xff]
    %v361 = vld [vmem:[#allocation8 + $0x728] sm:$0xff]
    %v362 = vld [vmem:[#allocation8 + $0x730] sm:$0xff]
    %v363 = vld [vmem:[#allocation8 + $0x738] sm:$0xff]
    %v364 = vld [vmem:[#allocation8 + $0x740] sm:$0xff]
    %v365 = vld [vmem:[#allocation8 + $0x748] sm:$0xff]
    %v366 = vld [vmem:[#allocation8 + $0x750] sm:$0xff]
    %v367 = vld [vmem:[#allocation8 + $0x758] sm:$0xff]
    %v368 = vld [vmem:[#allocation8 + $0x760] sm:$0xff]
    %v369 = vld [vmem:[#allocation8 + $0x768] sm:$0xff]
    %v370 = vld [vmem:[#allocation8 + $0x770] sm:$0xff]
    %v371 = vld [vmem:[#allocation8 + $0x778] sm:$0xff]
    %v372 = vld [vmem:[#allocation8 + $0x780] sm:$0xff]
    %v373 = vld [vmem:[#allocation8 + $0x788] sm:$0xff]
    %v374 = vld [vmem:[#allocation8 + $0x790] sm:$0xff]
    %v375 = vld [vmem:[#allocation8 + $0x798] sm:$0xff]
    %v376 = vld [vmem:[#allocation8 + $0x7a0] sm:$0xff]
    %v377 = vld [vmem:[#allocation8 + $0x7a8] sm:$0xff]
    %v378 = vld [vmem:[#allocation8 + $0x7b0] sm:$0xff]
    %v379 = vld [vmem:[#allocation8 + $0x7b8] sm:$0xff]
    %v380 = vld [vmem:[#allocation8 + $0x7c0] sm:$0xff]
    %v381 = vld [vmem:[#allocation8 + $0x7c8] sm:$0xff]
    %v382 = vld [vmem:[#allocation8 + $0x7d0] sm:$0xff]
    %v383 = vld [vmem:[#allocation8 + $0x7d8] sm:$0xff]
    %v384 = vld [vmem:[#allocation8 + $0x7e0] sm:$0xff]
    %v385 = vld [vmem:[#allocation8 + $0x7e8] sm:$0xff]
    %v386 = vld [vmem:[#allocation8 + $0x7f0] sm:$0xff]
    %v387 = vld [vmem:[#allocation8 + $0x7f8] sm:$0xff]
    %v392 = vunpack.c.l.b16 %v128
    %v393 = vunpack.c.h.b16 %v128
    %v394 = vunpack.c.l.b16 %v129
    %v395 = vunpack.c.h.b16 %v129
    %v396 = vunpack.c.l.b16 %v130
    %v397 = vunpack.c.h.b16 %v130
    %v398 = vunpack.c.l.b16 %v131
    %v399 = vunpack.c.h.b16 %v131
    %v400 = vpack.c.b16 %v392, %v392
    %v401 = vpack.c.b16 %v393, %v393
    %v402 = vpack.c.b16 %v394, %v394
    %v403 = vpack.c.b16 %v395, %v395
    %v404 = vpack.c.b16 %v396, %v396
    %v405 = vpack.c.b16 %v397, %v397
    %v406 = vpack.c.b16 %v398, %v398
    %v407 = vpack.c.b16 %v399, %v399
    %v672 = vunpack.c.l.b16 %v132
    %v673 = vunpack.c.h.b16 %v132
    %v674 = vunpack.c.l.b16 %v133
    %v675 = vunpack.c.h.b16 %v133
    %v676 = vunpack.c.l.b16 %v134
    %v677 = vunpack.c.h.b16 %v134
    %v678 = vunpack.c.l.b16 %v135
    %v679 = vunpack.c.h.b16 %v135
    %v680 = vunpack.c.l.b16 %v136
    %v681 = vunpack.c.h.b16 %v136
    %v682 = vunpack.c.l.b16 %v137
    %v683 = vunpack.c.h.b16 %v137
    %v684 = vunpack.c.l.b16 %v138
    %v685 = vunpack.c.h.b16 %v138
    %v686 = vunpack.c.l.b16 %v139
    %v687 = vunpack.c.h.b16 %v139
    %v688 = vunpack.c.l.b16 %v140
    %v689 = vunpack.c.h.b16 %v140
    %v690 = vunpack.c.l.b16 %v141
    %v691 = vunpack.c.h.b16 %v141
    %v692 = vunpack.c.l.b16 %v142
    %v693 = vunpack.c.h.b16 %v142
    %v694 = vunpack.c.l.b16 %v143
    %v695 = vunpack.c.h.b16 %v143
    %v696 = vunpack.c.l.b16 %v144
    %v697 = vunpack.c.h.b16 %v144
    %v698 = vunpack.c.l.b16 %v145
    %v699 = vunpack.c.h.b16 %v145
    %v700 = vunpack.c.l.b16 %v146
    %v701 = vunpack.c.h.b16 %v146
    %v702 = vunpack.c.l.b16 %v147
    %v703 = vunpack.c.h.b16 %v147
    %v704 = vunpack.c.l.b16 %v148
    %v705 = vunpack.c.h.b16 %v148
    %v706 = vunpack.c.l.b16 %v149
    %v707 = vunpack.c.h.b16 %v149
    %v708 = vunpack.c.l.b16 %v150
    %v709 = vunpack.c.h.b16 %v150
    %v710 = vunpack.c.l.b16 %v151
    %v711 = vunpack.c.h.b16 %v151
    %v712 = vunpack.c.l.b16 %v152
    %v713 = vunpack.c.h.b16 %v152
    %v714 = vunpack.c.l.b16 %v153
    %v715 = vunpack.c.h.b16 %v153
    %v716 = vunpack.c.l.b16 %v154
    %v717 = vunpack.c.h.b16 %v154
    %v718 = vunpack.c.l.b16 %v155
    %v719 = vunpack.c.h.b16 %v155
    %v720 = vunpack.c.l.b16 %v156
    %v721 = vunpack.c.h.b16 %v156
    %v722 = vunpack.c.l.b16 %v157
    %v723 = vunpack.c.h.b16 %v157
    %v724 = vunpack.c.l.b16 %v158
    %v725 = vunpack.c.h.b16 %v158
    %v726 = vunpack.c.l.b16 %v159
    %v727 = vunpack.c.h.b16 %v159
    %v728 = vunpack.c.l.b16 %v160
    %v729 = vunpack.c.h.b16 %v160
    %v730 = vunpack.c.l.b16 %v161
    %v731 = vunpack.c.h.b16 %v161
    %v732 = vunpack.c.l.b16 %v162
    %v733 = vunpack.c.h.b16 %v162
    %v734 = vunpack.c.l.b16 %v163
    %v735 = vunpack.c.h.b16 %v163
    %v736 = vunpack.c.l.b16 %v164
    %v737 = vunpack.c.h.b16 %v164
    %v738 = vunpack.c.l.b16 %v165
    %v739 = vunpack.c.h.b16 %v165
    %v740 = vunpack.c.l.b16 %v166
    %v741 = vunpack.c.h.b16 %v166
    %v742 = vunpack.c.l.b16 %v167
    %v743 = vunpack.c.h.b16 %v167
    %v744 = vunpack.c.l.b16 %v168
    %v745 = vunpack.c.h.b16 %v168
    %v746 = vunpack.c.l.b16 %v169
    %v747 = vunpack.c.h.b16 %v169
    %v748 = vunpack.c.l.b16 %v170
    %v749 = vunpack.c.h.b16 %v170
    %v750 = vunpack.c.l.b16 %v171
    %v751 = vunpack.c.h.b16 %v171
    %v752 = vunpack.c.l.b16 %v172
    %v753 = vunpack.c.h.b16 %v172
    %v754 = vunpack.c.l.b16 %v173
    %v755 = vunpack.c.h.b16 %v173
    %v756 = vunpack.c.l.b16 %v174
    %v757 = vunpack.c.h.b16 %v174
    %v758 = vunpack.c.l.b16 %v175
    %v759 = vunpack.c.h.b16 %v175
    %v760 = vunpack.c.l.b16 %v176
    %v761 = vunpack.c.h.b16 %v176
    %v762 = vunpack.c.l.b16 %v177
    %v763 = vunpack.c.h.b16 %v177
    %v764 = vunpack.c.l.b16 %v178
    %v765 = vunpack.c.h.b16 %v178
    %v766 = vunpack.c.l.b16 %v179
    %v767 = vunpack.c.h.b16 %v179
    %v768 = vunpack.c.l.b16 %v180
    %v769 = vunpack.c.h.b16 %v180
    %v770 = vunpack.c.l.b16 %v181
    %v771 = vunpack.c.h.b16 %v181
    %v772 = vunpack.c.l.b16 %v182
    %v773 = vunpack.c.h.b16 %v182
    %v774 = vunpack.c.l.b16 %v183
    %v775 = vunpack.c.h.b16 %v183
    %v776 = vunpack.c.l.b16 %v184
    %v777 = vunpack.c.h.b16 %v184
    %v778 = vunpack.c.l.b16 %v185
    %v779 = vunpack.c.h.b16 %v185
    %v780 = vunpack.c.l.b16 %v186
    %v781 = vunpack.c.h.b16 %v186
    %v782 = vunpack.c.l.b16 %v187
    %v783 = vunpack.c.h.b16 %v187
    %v784 = vunpack.c.l.b16 %v188
    %v785 = vunpack.c.h.b16 %v188
    %v786 = vunpack.c.l.b16 %v189
    %v787 = vunpack.c.h.b16 %v189
    %v788 = vunpack.c.l.b16 %v190
    %v789 = vunpack.c.h.b16 %v190
    %v790 = vunpack.c.l.b16 %v191
    %v791 = vunpack.c.h.b16 %v191
    %v792 = vunpack.c.l.b16 %v192
    %v793 = vunpack.c.h.b16 %v192
    %v794 = vunpack.c.l.b16 %v193
    %v795 = vunpack.c.h.b16 %v193
    %v796 = vunpack.c.l.b16 %v194
    %v797 = vunpack.c.h.b16 %v194
    %v798 = vunpack.c.l.b16 %v195
    %v799 = vunpack.c.h.b16 %v195
    %v800 = vunpack.c.l.b16 %v196
    %v801 = vunpack.c.h.b16 %v196
    %v802 = vunpack.c.l.b16 %v197
    %v803 = vunpack.c.h.b16 %v197
    %v804 = vunpack.c.l.b16 %v198
    %v805 = vunpack.c.h.b16 %v198
    %v806 = vunpack.c.l.b16 %v199
    %v807 = vunpack.c.h.b16 %v199
    %v808 = vunpack.c.l.b16 %v200
    %v809 = vunpack.c.h.b16 %v200
    %v810 = vunpack.c.l.b16 %v201
    %v811 = vunpack.c.h.b16 %v201
    %v812 = vunpack.c.l.b16 %v202
    %v813 = vunpack.c.h.b16 %v202
    %v814 = vunpack.c.l.b16 %v203
    %v815 = vunpack.c.h.b16 %v203
    %v816 = vunpack.c.l.b16 %v204
    %v817 = vunpack.c.h.b16 %v204
    %v818 = vunpack.c.l.b16 %v205
    %v819 = vunpack.c.h.b16 %v205
    %v820 = vunpack.c.l.b16 %v206
    %v821 = vunpack.c.h.b16 %v206
    %v822 = vunpack.c.l.b16 %v207
    %v823 = vunpack.c.h.b16 %v207
    %v824 = vunpack.c.l.b16 %v208
    %v825 = vunpack.c.h.b16 %v208
    %v826 = vunpack.c.l.b16 %v209
    %v827 = vunpack.c.h.b16 %v209
    %v828 = vunpack.c.l.b16 %v210
    %v829 = vunpack.c.h.b16 %v210
    %v830 = vunpack.c.l.b16 %v211
    %v831 = vunpack.c.h.b16 %v211
    %v832 = vunpack.c.l.b16 %v212
    %v833 = vunpack.c.h.b16 %v212
    %v834 = vunpack.c.l.b16 %v213
    %v835 = vunpack.c.h.b16 %v213
    %v836 = vunpack.c.l.b16 %v214
    %v837 = vunpack.c.h.b16 %v214
    %v838 = vunpack.c.l.b16 %v215
    %v839 = vunpack.c.h.b16 %v215
    %v840 = vunpack.c.l.b16 %v216
    %v841 = vunpack.c.h.b16 %v216
    %v842 = vunpack.c.l.b16 %v217
    %v843 = vunpack.c.h.b16 %v217
    %v844 = vunpack.c.l.b16 %v218
    %v845 = vunpack.c.h.b16 %v218
    %v846 = vunpack.c.l.b16 %v219
    %v847 = vunpack.c.h.b16 %v219
    %v848 = vunpack.c.l.b16 %v220
    %v849 = vunpack.c.h.b16 %v220
    %v850 = vunpack.c.l.b16 %v221
    %v851 = vunpack.c.h.b16 %v221
    %v852 = vunpack.c.l.b16 %v222
    %v853 = vunpack.c.h.b16 %v222
    %v854 = vunpack.c.l.b16 %v223
    %v855 = vunpack.c.h.b16 %v223
    %v856 = vunpack.c.l.b16 %v224
    %v857 = vunpack.c.h.b16 %v224
    %v858 = vunpack.c.l.b16 %v225
    %v859 = vunpack.c.h.b16 %v225
    %v860 = vunpack.c.l.b16 %v226
    %v861 = vunpack.c.h.b16 %v226
    %v862 = vunpack.c.l.b16 %v227
    %v863 = vunpack.c.h.b16 %v227
    %v864 = vunpack.c.l.b16 %v228
    %v865 = vunpack.c.h.b16 %v228
    %v866 = vunpack.c.l.b16 %v229
    %v867 = vunpack.c.h.b16 %v229
    %v868 = vunpack.c.l.b16 %v230
    %v869 = vunpack.c.h.b16 %v230
    %v870 = vunpack.c.l.b16 %v231
    %v871 = vunpack.c.h.b16 %v231
    %v872 = vunpack.c.l.b16 %v232
    %v873 = vunpack.c.h.b16 %v232
    %v874 = vunpack.c.l.b16 %v233
    %v875 = vunpack.c.h.b16 %v233
    %v876 = vunpack.c.l.b16 %v234
    %v877 = vunpack.c.h.b16 %v234
    %v878 = vunpack.c.l.b16 %v235
    %v879 = vunpack.c.h.b16 %v235
    %v880 = vunpack.c.l.b16 %v236
    %v881 = vunpack.c.h.b16 %v236
    %v882 = vunpack.c.l.b16 %v237
    %v883 = vunpack.c.h.b16 %v237
    %v884 = vunpack.c.l.b16 %v238
    %v885 = vunpack.c.h.b16 %v238
    %v886 = vunpack.c.l.b16 %v239
    %v887 = vunpack.c.h.b16 %v239
    %v888 = vunpack.c.l.b16 %v240
    %v889 = vunpack.c.h.b16 %v240
    %v890 = vunpack.c.l.b16 %v241
    %v891 = vunpack.c.h.b16 %v241
    %v892 = vunpack.c.l.b16 %v242
    %v893 = vunpack.c.h.b16 %v242
    %v894 = vunpack.c.l.b16 %v243
    %v895 = vunpack.c.h.b16 %v243
    %v896 = vunpack.c.l.b16 %v244
    %v897 = vunpack.c.h.b16 %v244
    %v898 = vunpack.c.l.b16 %v245
    %v899 = vunpack.c.h.b16 %v245
    %v900 = vunpack.c.l.b16 %v246
    %v901 = vunpack.c.h.b16 %v246
    %v902 = vunpack.c.l.b16 %v247
    %v903 = vunpack.c.h.b16 %v247
    %v904 = vunpack.c.l.b16 %v248
    %v905 = vunpack.c.h.b16 %v248
    %v906 = vunpack.c.l.b16 %v249
    %v907 = vunpack.c.h.b16 %v249
    %v908 = vunpack.c.l.b16 %v250
    %v909 = vunpack.c.h.b16 %v250
    %v910 = vunpack.c.l.b16 %v251
    %v911 = vunpack.c.h.b16 %v251
    %v912 = vunpack.c.l.b16 %v252
    %v913 = vunpack.c.h.b16 %v252
    %v914 = vunpack.c.l.b16 %v253
    %v915 = vunpack.c.h.b16 %v253
    %v916 = vunpack.c.l.b16 %v254
    %v917 = vunpack.c.h.b16 %v254
    %v918 = vunpack.c.l.b16 %v255
    %v919 = vunpack.c.h.b16 %v255
    %v920 = vunpack.c.l.b16 %v256
    %v921 = vunpack.c.h.b16 %v256
    %v922 = vunpack.c.l.b16 %v257
    %v923 = vunpack.c.h.b16 %v257
    %v924 = vunpack.c.l.b16 %v258
    %v925 = vunpack.c.h.b16 %v258
    %v926 = vunpack.c.l.b16 %v259
    %v927 = vunpack.c.h.b16 %v259
    %v928 = vunpack.c.l.b16 %v260
    %v929 = vunpack.c.h.b16 %v260
    %v930 = vunpack.c.l.b16 %v261
    %v931 = vunpack.c.h.b16 %v261
    %v932 = vunpack.c.l.b16 %v262
    %v933 = vunpack.c.h.b16 %v262
    %v934 = vunpack.c.l.b16 %v263
    %v935 = vunpack.c.h.b16 %v263
    %v936 = vunpack.c.l.b16 %v264
    %v937 = vunpack.c.h.b16 %v264
    %v938 = vunpack.c.l.b16 %v265
    %v939 = vunpack.c.h.b16 %v265
    %v940 = vunpack.c.l.b16 %v266
    %v941 = vunpack.c.h.b16 %v266
    %v942 = vunpack.c.l.b16 %v267
    %v943 = vunpack.c.h.b16 %v267
    %v944 = vunpack.c.l.b16 %v268
    %v945 = vunpack.c.h.b16 %v268
    %v946 = vunpack.c.l.b16 %v269
    %v947 = vunpack.c.h.b16 %v269
    %v948 = vunpack.c.l.b16 %v270
    %v949 = vunpack.c.h.b16 %v270
    %v950 = vunpack.c.l.b16 %v271
    %v951 = vunpack.c.h.b16 %v271
    %v952 = vunpack.c.l.b16 %v272
    %v953 = vunpack.c.h.b16 %v272
    %v954 = vunpack.c.l.b16 %v273
    %v955 = vunpack.c.h.b16 %v273
    %v956 = vunpack.c.l.b16 %v274
    %v957 = vunpack.c.h.b16 %v274
    %v958 = vunpack.c.l.b16 %v275
    %v959 = vunpack.c.h.b16 %v275
    %v960 = vunpack.c.l.b16 %v276
    %v961 = vunpack.c.h.b16 %v276
    %v962 = vunpack.c.l.b16 %v277
    %v963 = vunpack.c.h.b16 %v277
    %v964 = vunpack.c.l.b16 %v278
    %v965 = vunpack.c.h.b16 %v278
    %v966 = vunpack.c.l.b16 %v279
    %v967 = vunpack.c.h.b16 %v279
    %v968 = vunpack.c.l.b16 %v280
    %v969 = vunpack.c.h.b16 %v280
    %v970 = vunpack.c.l.b16 %v281
    %v971 = vunpack.c.h.b16 %v281
    %v972 = vunpack.c.l.b16 %v282
    %v973 = vunpack.c.h.b16 %v282
    %v974 = vunpack.c.l.b16 %v283
    %v975 = vunpack.c.h.b16 %v283
    %v976 = vunpack.c.l.b16 %v284
    %v977 = vunpack.c.h.b16 %v284
    %v978 = vunpack.c.l.b16 %v285
    %v979 = vunpack.c.h.b16 %v285
    %v980 = vunpack.c.l.b16 %v286
    %v981 = vunpack.c.h.b16 %v286
    %v982 = vunpack.c.l.b16 %v287
    %v983 = vunpack.c.h.b16 %v287
    %v984 = vunpack.c.l.b16 %v288
    %v985 = vunpack.c.h.b16 %v288
    %v986 = vunpack.c.l.b16 %v289
    %v987 = vunpack.c.h.b16 %v289
    %v988 = vunpack.c.l.b16 %v290
    %v989 = vunpack.c.h.b16 %v290
    %v990 = vunpack.c.l.b16 %v291
    %v991 = vunpack.c.h.b16 %v291
    %v992 = vunpack.c.l.b16 %v292
    %v993 = vunpack.c.h.b16 %v292
    %v994 = vunpack.c.l.b16 %v293
    %v995 = vunpack.c.h.b16 %v293
    %v996 = vunpack.c.l.b16 %v294
    %v997 = vunpack.c.h.b16 %v294
    %v998 = vunpack.c.l.b16 %v295
    %v999 = vunpack.c.h.b16 %v295
    %v1000 = vunpack.c.l.b16 %v296
    %v1001 = vunpack.c.h.b16 %v296
    %v1002 = vunpack.c.l.b16 %v297
    %v1003 = vunpack.c.h.b16 %v297
    %v1004 = vunpack.c.l.b16 %v298
    %v1005 = vunpack.c.h.b16 %v298
    %v1006 = vunpack.c.l.b16 %v299
    %v1007 = vunpack.c.h.b16 %v299
    %v1008 = vunpack.c.l.b16 %v300
    %v1009 = vunpack.c.h.b16 %v300
    %v1010 = vunpack.c.l.b16 %v301
    %v1011 = vunpack.c.h.b16 %v301
    %v1012 = vunpack.c.l.b16 %v302
    %v1013 = vunpack.c.h.b16 %v302
    %v1014 = vunpack.c.l.b16 %v303
    %v1015 = vunpack.c.h.b16 %v303
    %v1016 = vunpack.c.l.b16 %v304
    %v1017 = vunpack.c.h.b16 %v304
    %v1018 = vunpack.c.l.b16 %v305
    %v1019 = vunpack.c.h.b16 %v305
    %v1020 = vunpack.c.l.b16 %v306
    %v1021 = vunpack.c.h.b16 %v306
    %v1022 = vunpack.c.l.b16 %v307
    %v1023 = vunpack.c.h.b16 %v307
    %v1024 = vunpack.c.l.b16 %v308
    %v1025 = vunpack.c.h.b16 %v308
    %v1026 = vunpack.c.l.b16 %v309
    %v1027 = vunpack.c.h.b16 %v309
    %v1028 = vunpack.c.l.b16 %v310
    %v1029 = vunpack.c.h.b16 %v310
    %v1030 = vunpack.c.l.b16 %v311
    %v1031 = vunpack.c.h.b16 %v311
    %v1032 = vunpack.c.l.b16 %v312
    %v1033 = vunpack.c.h.b16 %v312
    %v1034 = vunpack.c.l.b16 %v313
    %v1035 = vunpack.c.h.b16 %v313
    %v1036 = vunpack.c.l.b16 %v314
    %v1037 = vunpack.c.h.b16 %v314
    %v1038 = vunpack.c.l.b16 %v315
    %v1039 = vunpack.c.h.b16 %v315
    %v1040 = vunpack.c.l.b16 %v316
    %v1041 = vunpack.c.h.b16 %v316
    %v1042 = vunpack.c.l.b16 %v317
    %v1043 = vunpack.c.h.b16 %v317
    %v1044 = vunpack.c.l.b16 %v318
    %v1045 = vunpack.c.h.b16 %v318
    %v1046 = vunpack.c.l.b16 %v319
    %v1047 = vunpack.c.h.b16 %v319
    %v1048 = vunpack.c.l.b16 %v320
    %v1049 = vunpack.c.h.b16 %v320
    %v1050 = vunpack.c.l.b16 %v321
    %v1051 = vunpack.c.h.b16 %v321
    %v1052 = vunpack.c.l.b16 %v322
    %v1053 = vunpack.c.h.b16 %v322
    %v1054 = vunpack.c.l.b16 %v323
    %v1055 = vunpack.c.h.b16 %v323
    %v1056 = vunpack.c.l.b16 %v324
    %v1057 = vunpack.c.h.b16 %v324
    %v1058 = vunpack.c.l.b16 %v325
    %v1059 = vunpack.c.h.b16 %v325
    %v1060 = vunpack.c.l.b16 %v326
    %v1061 = vunpack.c.h.b16 %v326
    %v1062 = vunpack.c.l.b16 %v327
    %v1063 = vunpack.c.h.b16 %v327
    %v1064 = vunpack.c.l.b16 %v328
    %v1065 = vunpack.c.h.b16 %v328
    %v1066 = vunpack.c.l.b16 %v329
    %v1067 = vunpack.c.h.b16 %v329
    %v1068 = vunpack.c.l.b16 %v330
    %v1069 = vunpack.c.h.b16 %v330
    %v1070 = vunpack.c.l.b16 %v331
    %v1071 = vunpack.c.h.b16 %v331
    %v1072 = vunpack.c.l.b16 %v332
    %v1073 = vunpack.c.h.b16 %v332
    %v1074 = vunpack.c.l.b16 %v333
    %v1075 = vunpack.c.h.b16 %v333
    %v1076 = vunpack.c.l.b16 %v334
    %v1077 = vunpack.c.h.b16 %v334
    %v1078 = vunpack.c.l.b16 %v335
    %v1079 = vunpack.c.h.b16 %v335
    %v1080 = vunpack.c.l.b16 %v336
    %v1081 = vunpack.c.h.b16 %v336
    %v1082 = vunpack.c.l.b16 %v337
    %v1083 = vunpack.c.h.b16 %v337
    %v1084 = vunpack.c.l.b16 %v338
    %v1085 = vunpack.c.h.b16 %v338
    %v1086 = vunpack.c.l.b16 %v339
    %v1087 = vunpack.c.h.b16 %v339
    %v1088 = vunpack.c.l.b16 %v340
    %v1089 = vunpack.c.h.b16 %v340
    %v1090 = vunpack.c.l.b16 %v341
    %v1091 = vunpack.c.h.b16 %v341
    %v1092 = vunpack.c.l.b16 %v342
    %v1093 = vunpack.c.h.b16 %v342
    %v1094 = vunpack.c.l.b16 %v343
    %v1095 = vunpack.c.h.b16 %v343
    %v1096 = vunpack.c.l.b16 %v344
    %v1097 = vunpack.c.h.b16 %v344
    %v1098 = vunpack.c.l.b16 %v345
    %v1099 = vunpack.c.h.b16 %v345
    %v1100 = vunpack.c.l.b16 %v346
    %v1101 = vunpack.c.h.b16 %v346
    %v1102 = vunpack.c.l.b16 %v347
    %v1103 = vunpack.c.h.b16 %v347
    %v1104 = vunpack.c.l.b16 %v348
    %v1105 = vunpack.c.h.b16 %v348
    %v1106 = vunpack.c.l.b16 %v349
    %v1107 = vunpack.c.h.b16 %v349
    %v1108 = vunpack.c.l.b16 %v350
    %v1109 = vunpack.c.h.b16 %v350
    %v1110 = vunpack.c.l.b16 %v351
    %v1111 = vunpack.c.h.b16 %v351
    %v1112 = vunpack.c.l.b16 %v352
    %v1113 = vunpack.c.h.b16 %v352
    %v1114 = vunpack.c.l.b16 %v353
    %v1115 = vunpack.c.h.b16 %v353
    %v1116 = vunpack.c.l.b16 %v354
    %v1117 = vunpack.c.h.b16 %v354
    %v1118 = vunpack.c.l.b16 %v355
    %v1119 = vunpack.c.h.b16 %v355
    %v1120 = vunpack.c.l.b16 %v356
    %v1121 = vunpack.c.h.b16 %v356
    %v1122 = vunpack.c.l.b16 %v357
    %v1123 = vunpack.c.h.b16 %v357
    %v1124 = vunpack.c.l.b16 %v358
    %v1125 = vunpack.c.h.b16 %v358
    %v1126 = vunpack.c.l.b16 %v359
    %v1127 = vunpack.c.h.b16 %v359
    %v1128 = vunpack.c.l.b16 %v360
    %v1129 = vunpack.c.h.b16 %v360
    %v1130 = vunpack.c.l.b16 %v361
    %v1131 = vunpack.c.h.b16 %v361
    %v1132 = vunpack.c.l.b16 %v362
    %v1133 = vunpack.c.h.b16 %v362
    %v1134 = vunpack.c.l.b16 %v363
    %v1135 = vunpack.c.h.b16 %v363
    %v1136 = vunpack.c.l.b16 %v364
    %v1137 = vunpack.c.h.b16 %v364
    %v1138 = vunpack.c.l.b16 %v365
    %v1139 = vunpack.c.h.b16 %v365
    %v1140 = vunpack.c.l.b16 %v366
    %v1141 = vunpack.c.h.b16 %v366
    %v1142 = vunpack.c.l.b16 %v367
    %v1143 = vunpack.c.h.b16 %v367
    %v1144 = vunpack.c.l.b16 %v368
    %v1145 = vunpack.c.h.b16 %v368
    %v1146 = vunpack.c.l.b16 %v369
    %v1147 = vunpack.c.h.b16 %v369
    %v1148 = vunpack.c.l.b16 %v370
    %v1149 = vunpack.c.h.b16 %v370
    %v1150 = vunpack.c.l.b16 %v371
    %v1151 = vunpack.c.h.b16 %v371
    %v1152 = vunpack.c.l.b16 %v372
    %v1153 = vunpack.c.h.b16 %v372
    %v1154 = vunpack.c.l.b16 %v373
    %v1155 = vunpack.c.h.b16 %v373
    %v1156 = vunpack.c.l.b16 %v374
    %v1157 = vunpack.c.h.b16 %v374
    %v1158 = vunpack.c.l.b16 %v375
    %v1159 = vunpack.c.h.b16 %v375
    %v1160 = vunpack.c.l.b16 %v376
    %v1161 = vunpack.c.h.b16 %v376
    %v1162 = vunpack.c.l.b16 %v377
    %v1163 = vunpack.c.h.b16 %v377
    %v1164 = vunpack.c.l.b16 %v378
    %v1165 = vunpack.c.h.b16 %v378
    %v1166 = vunpack.c.l.b16 %v379
    %v1167 = vunpack.c.h.b16 %v379
    %v1168 = vunpack.c.l.b16 %v380
    %v1169 = vunpack.c.h.b16 %v380
    %v1170 = vunpack.c.l.b16 %v381
    %v1171 = vunpack.c.h.b16 %v381
    %v1172 = vunpack.c.l.b16 %v382
    %v1173 = vunpack.c.h.b16 %v382
    %v1174 = vunpack.c.l.b16 %v383
    %v1175 = vunpack.c.h.b16 %v383
    %v1176 = vunpack.c.l.b16 %v384
    %v1177 = vunpack.c.h.b16 %v384
    %v1178 = vunpack.c.l.b16 %v385
    %v1179 = vunpack.c.h.b16 %v385
    %v1180 = vunpack.c.l.b16 %v386
    %v1181 = vunpack.c.h.b16 %v386
    %v1182 = vunpack.c.l.b16 %v387
    %v1183 = vunpack.c.h.b16 %v387
    %v1184 = vpack.c.b16 %v676, %v672
    %v1185 = vpack.c.b16 %v677, %v673
    %v1186 = vpack.c.b16 %v678, %v674
    %v1187 = vpack.c.b16 %v679, %v675
    %v1188 = vpack.c.b16 %v684, %v680
    %v1189 = vpack.c.b16 %v685, %v681
    %v1190 = vpack.c.b16 %v686, %v682
    %v1191 = vpack.c.b16 %v687, %v683
    %v1192 = vpack.c.b16 %v692, %v688
    %v1193 = vpack.c.b16 %v693, %v689
    %v1194 = vpack.c.b16 %v694, %v690
    %v1195 = vpack.c.b16 %v695, %v691
    %v1196 = vpack.c.b16 %v700, %v696
    %v1197 = vpack.c.b16 %v701, %v697
    %v1198 = vpack.c.b16 %v702, %v698
    %v1199 = vpack.c.b16 %v703, %v699
    %v1200 = vpack.c.b16 %v708, %v704
    %v1201 = vpack.c.b16 %v709, %v705
    %v1202 = vpack.c.b16 %v710, %v706
    %v1203 = vpack.c.b16 %v711, %v707
    %v1204 = vpack.c.b16 %v716, %v712
    %v1205 = vpack.c.b16 %v717, %v713
    %v1206 = vpack.c.b16 %v718, %v714
    %v1207 = vpack.c.b16 %v719, %v715
    %v1208 = vpack.c.b16 %v724, %v720
    %v1209 = vpack.c.b16 %v725, %v721
    %v1210 = vpack.c.b16 %v726, %v722
    %v1211 = vpack.c.b16 %v727, %v723
    %v1212 = vpack.c.b16 %v732, %v728
    %v1213 = vpack.c.b16 %v733, %v729
    %v1214 = vpack.c.b16 %v734, %v730
    %v1215 = vpack.c.b16 %v735, %v731
    %v1216 = vpack.c.b16 %v740, %v736
    %v1217 = vpack.c.b16 %v741, %v737
    %v1218 = vpack.c.b16 %v742, %v738
    %v1219 = vpack.c.b16 %v743, %v739
    %v1220 = vpack.c.b16 %v748, %v744
    %v1221 = vpack.c.b16 %v749, %v745
    %v1222 = vpack.c.b16 %v750, %v746
    %v1223 = vpack.c.b16 %v751, %v747
    %v1224 = vpack.c.b16 %v756, %v752
    %v1225 = vpack.c.b16 %v757, %v753
    %v1226 = vpack.c.b16 %v758, %v754
    %v1227 = vpack.c.b16 %v759, %v755
    %v1228 = vpack.c.b16 %v764, %v760
    %v1229 = vpack.c.b16 %v765, %v761
    %v1230 = vpack.c.b16 %v766, %v762
    %v1231 = vpack.c.b16 %v767, %v763
    %v1232 = vpack.c.b16 %v772, %v768
    %v1233 = vpack.c.b16 %v773, %v769
    %v1234 = vpack.c.b16 %v774, %v770
    %v1235 = vpack.c.b16 %v775, %v771
    %v1236 = vpack.c.b16 %v780, %v776
    %v1237 = vpack.c.b16 %v781, %v777
    %v1238 = vpack.c.b16 %v782, %v778
    %v1239 = vpack.c.b16 %v783, %v779
    %v1240 = vpack.c.b16 %v788, %v784
    %v1241 = vpack.c.b16 %v789, %v785
    %v1242 = vpack.c.b16 %v790, %v786
    %v1243 = vpack.c.b16 %v791, %v787
    %v1244 = vpack.c.b16 %v796, %v792
    %v1245 = vpack.c.b16 %v797, %v793
    %v1246 = vpack.c.b16 %v798, %v794
    %v1247 = vpack.c.b16 %v799, %v795
    %v1248 = vpack.c.b16 %v804, %v800
    %v1249 = vpack.c.b16 %v805, %v801
    %v1250 = vpack.c.b16 %v806, %v802
    %v1251 = vpack.c.b16 %v807, %v803
    %v1252 = vpack.c.b16 %v812, %v808
    %v1253 = vpack.c.b16 %v813, %v809
    %v1254 = vpack.c.b16 %v814, %v810
    %v1255 = vpack.c.b16 %v815, %v811
    %v1256 = vpack.c.b16 %v820, %v816
    %v1257 = vpack.c.b16 %v821, %v817
    %v1258 = vpack.c.b16 %v822, %v818
    %v1259 = vpack.c.b16 %v823, %v819
    %v1260 = vpack.c.b16 %v828, %v824
    %v1261 = vpack.c.b16 %v829, %v825
    %v1262 = vpack.c.b16 %v830, %v826
    %v1263 = vpack.c.b16 %v831, %v827
    %v1264 = vpack.c.b16 %v836, %v832
    %v1265 = vpack.c.b16 %v837, %v833
    %v1266 = vpack.c.b16 %v838, %v834
    %v1267 = vpack.c.b16 %v839, %v835
    %v1268 = vpack.c.b16 %v844, %v840
    %v1269 = vpack.c.b16 %v845, %v841
    %v1270 = vpack.c.b16 %v846, %v842
    %v1271 = vpack.c.b16 %v847, %v843
    %v1272 = vpack.c.b16 %v852, %v848
    %v1273 = vpack.c.b16 %v853, %v849
    %v1274 = vpack.c.b16 %v854, %v850
    %v1275 = vpack.c.b16 %v855, %v851
    %v1276 = vpack.c.b16 %v860, %v856
    %v1277 = vpack.c.b16 %v861, %v857
    %v1278 = vpack.c.b16 %v862, %v858
    %v1279 = vpack.c.b16 %v863, %v859
    %v1280 = vpack.c.b16 %v868, %v864
    %v1281 = vpack.c.b16 %v869, %v865
    %v1282 = vpack.c.b16 %v870, %v866
    %v1283 = vpack.c.b16 %v871, %v867
    %v1284 = vpack.c.b16 %v876, %v872
    %v1285 = vpack.c.b16 %v877, %v873
    %v1286 = vpack.c.b16 %v878, %v874
    %v1287 = vpack.c.b16 %v879, %v875
    %v1288 = vpack.c.b16 %v884, %v880
    %v1289 = vpack.c.b16 %v885, %v881
    %v1290 = vpack.c.b16 %v886, %v882
    %v1291 = vpack.c.b16 %v887, %v883
    %v1292 = vpack.c.b16 %v892, %v888
    %v1293 = vpack.c.b16 %v893, %v889
    %v1294 = vpack.c.b16 %v894, %v890
    %v1295 = vpack.c.b16 %v895, %v891
    %v1296 = vpack.c.b16 %v900, %v896
    %v1297 = vpack.c.b16 %v901, %v897
    %v1298 = vpack.c.b16 %v902, %v898
    %v1299 = vpack.c.b16 %v903, %v899
    %v1300 = vpack.c.b16 %v908, %v904
    %v1301 = vpack.c.b16 %v909, %v905
    %v1302 = vpack.c.b16 %v910, %v906
    %v1303 = vpack.c.b16 %v911, %v907
    %v1304 = vpack.c.b16 %v916, %v912
    %v1305 = vpack.c.b16 %v917, %v913
    %v1306 = vpack.c.b16 %v918, %v914
    %v1307 = vpack.c.b16 %v919, %v915
    %v1308 = vpack.c.b16 %v924, %v920
    %v1309 = vpack.c.b16 %v925, %v921
    %v1310 = vpack.c.b16 %v926, %v922
    %v1311 = vpack.c.b16 %v927, %v923
    %v1312 = vpack.c.b16 %v932, %v928
    %v1313 = vpack.c.b16 %v933, %v929
    %v1314 = vpack.c.b16 %v934, %v930
    %v1315 = vpack.c.b16 %v935, %v931
    %v1316 = vpack.c.b16 %v940, %v936
    %v1317 = vpack.c.b16 %v941, %v937
    %v1318 = vpack.c.b16 %v942, %v938
    %v1319 = vpack.c.b16 %v943, %v939
    %v1320 = vpack.c.b16 %v948, %v944
    %v1321 = vpack.c.b16 %v949, %v945
    %v1322 = vpack.c.b16 %v950, %v946
    %v1323 = vpack.c.b16 %v951, %v947
    %v1324 = vpack.c.b16 %v956, %v952
    %v1325 = vpack.c.b16 %v957, %v953
    %v1326 = vpack.c.b16 %v958, %v954
    %v1327 = vpack.c.b16 %v959, %v955
    %v1328 = vpack.c.b16 %v964, %v960
    %v1329 = vpack.c.b16 %v965, %v961
    %v1330 = vpack.c.b16 %v966, %v962
    %v1331 = vpack.c.b16 %v967, %v963
    %v1332 = vpack.c.b16 %v972, %v968
    %v1333 = vpack.c.b16 %v973, %v969
    %v1334 = vpack.c.b16 %v974, %v970
    %v1335 = vpack.c.b16 %v975, %v971
    %v1336 = vpack.c.b16 %v980, %v976
    %v1337 = vpack.c.b16 %v981, %v977
    %v1338 = vpack.c.b16 %v982, %v978
    %v1339 = vpack.c.b16 %v983, %v979
    %v1340 = vpack.c.b16 %v988, %v984
    %v1341 = vpack.c.b16 %v989, %v985
    %v1342 = vpack.c.b16 %v990, %v986
    %v1343 = vpack.c.b16 %v991, %v987
    %v1344 = vpack.c.b16 %v996, %v992
    %v1345 = vpack.c.b16 %v997, %v993
    %v1346 = vpack.c.b16 %v998, %v994
    %v1347 = vpack.c.b16 %v999, %v995
    %v1348 = vpack.c.b16 %v1004, %v1000
    %v1349 = vpack.c.b16 %v1005, %v1001
    %v1350 = vpack.c.b16 %v1006, %v1002
    %v1351 = vpack.c.b16 %v1007, %v1003
    %v1352 = vpack.c.b16 %v1012, %v1008
    %v1353 = vpack.c.b16 %v1013, %v1009
    %v1354 = vpack.c.b16 %v1014, %v1010
    %v1355 = vpack.c.b16 %v1015, %v1011
    %v1356 = vpack.c.b16 %v1020, %v1016
    %v1357 = vpack.c.b16 %v1021, %v1017
    %v1358 = vpack.c.b16 %v1022, %v1018
    %v1359 = vpack.c.b16 %v1023, %v1019
    %v1360 = vpack.c.b16 %v1028, %v1024
    %v1361 = vpack.c.b16 %v1029, %v1025
    %v1362 = vpack.c.b16 %v1030, %v1026
    %v1363 = vpack.c.b16 %v1031, %v1027
    %v1364 = vpack.c.b16 %v1036, %v1032
    %v1365 = vpack.c.b16 %v1037, %v1033
    %v1366 = vpack.c.b16 %v1038, %v1034
    %v1367 = vpack.c.b16 %v1039, %v1035
    %v1368 = vpack.c.b16 %v1044, %v1040
    %v1369 = vpack.c.b16 %v1045, %v1041
    %v1370 = vpack.c.b16 %v1046, %v1042
    %v1371 = vpack.c.b16 %v1047, %v1043
    %v1372 = vpack.c.b16 %v1052, %v1048
    %v1373 = vpack.c.b16 %v1053, %v1049
    %v1374 = vpack.c.b16 %v1054, %v1050
    %v1375 = vpack.c.b16 %v1055, %v1051
    %v1376 = vpack.c.b16 %v1060, %v1056
    %v1377 = vpack.c.b16 %v1061, %v1057
    %v1378 = vpack.c.b16 %v1062, %v1058
    %v1379 = vpack.c.b16 %v1063, %v1059
    %v1380 = vpack.c.b16 %v1068, %v1064
    %v1381 = vpack.c.b16 %v1069, %v1065
    %v1382 = vpack.c.b16 %v1070, %v1066
    %v1383 = vpack.c.b16 %v1071, %v1067
    %v1384 = vpack.c.b16 %v1076, %v1072
    %v1385 = vpack.c.b16 %v1077, %v1073
    %v1386 = vpack.c.b16 %v1078, %v1074
    %v1387 = vpack.c.b16 %v1079, %v1075
    %v1388 = vpack.c.b16 %v1084, %v1080
    %v1389 = vpack.c.b16 %v1085, %v1081
    %v1390 = vpack.c.b16 %v1086, %v1082
    %v1391 = vpack.c.b16 %v1087, %v1083
    %v1392 = vpack.c.b16 %v1092, %v1088
    %v1393 = vpack.c.b16 %v1093, %v1089
    %v1394 = vpack.c.b16 %v1094, %v1090
    %v1395 = vpack.c.b16 %v1095, %v1091
    %v1396 = vpack.c.b16 %v1100, %v1096
    %v1397 = vpack.c.b16 %v1101, %v1097
    %v1398 = vpack.c.b16 %v1102, %v1098
    %v1399 = vpack.c.b16 %v1103, %v1099
    %v1400 = vpack.c.b16 %v1108, %v1104
    %v1401 = vpack.c.b16 %v1109, %v1105
    %v1402 = vpack.c.b16 %v1110, %v1106
    %v1403 = vpack.c.b16 %v1111, %v1107
    %v1404 = vpack.c.b16 %v1116, %v1112
    %v1405 = vpack.c.b16 %v1117, %v1113
    %v1406 = vpack.c.b16 %v1118, %v1114
    %v1407 = vpack.c.b16 %v1119, %v1115
    %v1408 = vpack.c.b16 %v1124, %v1120
    %v1409 = vpack.c.b16 %v1125, %v1121
    %v1410 = vpack.c.b16 %v1126, %v1122
    %v1411 = vpack.c.b16 %v1127, %v1123
    %v1412 = vpack.c.b16 %v1132, %v1128
    %v1413 = vpack.c.b16 %v1133, %v1129
    %v1414 = vpack.c.b16 %v1134, %v1130
    %v1415 = vpack.c.b16 %v1135, %v1131
    %v1416 = vpack.c.b16 %v1140, %v1136
    %v1417 = vpack.c.b16 %v1141, %v1137
    %v1418 = vpack.c.b16 %v1142, %v1138
    %v1419 = vpack.c.b16 %v1143, %v1139
    %v1420 = vpack.c.b16 %v1148, %v1144
    %v1421 = vpack.c.b16 %v1149, %v1145
    %v1422 = vpack.c.b16 %v1150, %v1146
    %v1423 = vpack.c.b16 %v1151, %v1147
    %v1424 = vpack.c.b16 %v1156, %v1152
    %v1425 = vpack.c.b16 %v1157, %v1153
    %v1426 = vpack.c.b16 %v1158, %v1154
    %v1427 = vpack.c.b16 %v1159, %v1155
    %v1428 = vpack.c.b16 %v1164, %v1160
    %v1429 = vpack.c.b16 %v1165, %v1161
    %v1430 = vpack.c.b16 %v1166, %v1162
    %v1431 = vpack.c.b16 %v1167, %v1163
    %v1432 = vpack.c.b16 %v1172, %v1168
    %v1433 = vpack.c.b16 %v1173, %v1169
    %v1434 = vpack.c.b16 %v1174, %v1170
    %v1435 = vpack.c.b16 %v1175, %v1171
    %v1436 = vpack.c.b16 %v1180, %v1176
    %v1437 = vpack.c.b16 %v1181, %v1177
    %v1438 = vpack.c.b16 %v1182, %v1178
    %v1439 = vpack.c.b16 %v1183, %v1179
    %1696 = vmatprep.subr.bf16.mxu0 %v1213
    %1697 = vmatpush1.bf16.msra.mxu0 %v1212
    %1698 = vmatprep.subr.bf16.mxu0 %v1209
    %1699 = vmatpush1.bf16.msra.mxu0 %v1208
    %1700 = vmatprep.subr.bf16.mxu0 %v1205
    %1701 = vmatpush1.bf16.msra.mxu0 %v1204
    %1702 = vmatprep.subr.bf16.mxu0 %v1201
    %1703 = vmatpush1.bf16.msra.mxu0 %v1200
    %1704 = vmatprep.subr.bf16.mxu0 %v1197
    %1705 = vmatpush1.bf16.msra.mxu0 %v1196
    %1706 = vmatprep.subr.bf16.mxu0 %v1193
    %1707 = vmatpush1.bf16.msra.mxu0 %v1192
    %1708 = vmatprep.subr.bf16.mxu0 %v1189
    %1709 = vmatpush1.bf16.msra.mxu0 %v1188
    %1710 = vmatprep.subr.bf16.mxu0 %v1185
    %1711 = vmatpush1.bf16.msra.mxu0 %v1184
    %1712 = vmatprep.subr.bf16.mxu0 %v1245
    %1713 = vmatpush2.bf16.msra.mxu0 %v1244
    %1714 = vmatprep.subr.bf16.mxu0 %v1241
    %1715 = vmatpush2.bf16.msra.mxu0 %v1240
    %1716 = vmatprep.subr.bf16.mxu0 %v1237
    %1717 = vmatpush2.bf16.msra.mxu0 %v1236
    %1718 = vmatprep.subr.bf16.mxu0 %v1233
    %1719 = vmatpush2.bf16.msra.mxu0 %v1232
    %1720 = vmatprep.subr.bf16.mxu0 %v1229
    %1721 = vmatpush2.bf16.msra.mxu0 %v1228
    %1722 = vmatprep.subr.bf16.mxu0 %v1225
    %1723 = vmatpush2.bf16.msra.mxu0 %v1224
    %1724 = vmatprep.subr.bf16.mxu0 %v1221
    %1725 = vmatpush2.bf16.msra.mxu0 %v1220
    %1726 = vmatprep.subr.bf16.mxu0 %v1217
    %1727 = vmatpush2.bf16.msra.mxu0 %v1216
    %1728 = vmatprep.mubr.bf16.mxu0 %v401
    %1729 = vmatmul.mubr.bf16.gmra.mxu0 %v400
    %v1730 = vpop.f32.mrf.mxu0
    %v1731 = vadd.f32 0.0, %v1730
    %v1732 = vpop.f32.mrf.mxu0
    %v1733 = vadd.f32 0.0, %v1732
    %v1734 = vpop.f32.mrf.mxu0
    %v1735 = vpop.f32.mrf.mxu0
    %1736 = vdwg.mxu0
    %1737 = vmatprep.subr.bf16.mxu0 %v1277
    %1738 = vmatpush1.bf16.msra.mxu0 %v1276
    %1739 = vmatprep.subr.bf16.mxu0 %v1273
    %1740 = vmatpush1.bf16.msra.mxu0 %v1272
    %1741 = vmatprep.subr.bf16.mxu0 %v1269
    %1742 = vmatpush1.bf16.msra.mxu0 %v1268
    %1743 = vmatprep.subr.bf16.mxu0 %v1265
    %1744 = vmatpush1.bf16.msra.mxu0 %v1264
    %1745 = vmatprep.subr.bf16.mxu0 %v1261
    %1746 = vmatpush1.bf16.msra.mxu0 %v1260
    %1747 = vmatprep.subr.bf16.mxu0 %v1257
    %1748 = vmatpush1.bf16.msra.mxu0 %v1256
    %1749 = vmatprep.subr.bf16.mxu0 %v1253
    %1750 = vmatpush1.bf16.msra.mxu0 %v1252
    %1751 = vmatprep.subr.bf16.mxu0 %v1249
    %1752 = vmatpush1.bf16.msra.mxu0 %v1248
    %1753 = vmatprep.subr.bf16.mxu0 %v1309
    %1754 = vmatpush2.bf16.msra.mxu0 %v1308
    %1755 = vmatprep.subr.bf16.mxu0 %v1305
    %1756 = vmatpush2.bf16.msra.mxu0 %v1304
    %1757 = vmatprep.subr.bf16.mxu0 %v1301
    %1758 = vmatpush2.bf16.msra.mxu0 %v1300
    %1759 = vmatprep.subr.bf16.mxu0 %v1297
    %1760 = vmatpush2.bf16.msra.mxu0 %v1296
    %1761 = vmatprep.subr.bf16.mxu0 %v1293
    %1762 = vmatpush2.bf16.msra.mxu0 %v1292
    %1763 = vmatprep.subr.bf16.mxu0 %v1289
    %1764 = vmatpush2.bf16.msra.mxu0 %v1288
    %1765 = vmatprep.subr.bf16.mxu0 %v1285
    %1766 = vmatpush2.bf16.msra.mxu0 %v1284
    %1767 = vmatprep.subr.bf16.mxu0 %v1281
    %1768 = vmatpush2.bf16.msra.mxu0 %v1280
    %1769 = vmatprep.mubr.bf16.mxu0 %v403
    %1770 = vmatmul.mubr.bf16.gmra.mxu0 %v402
    %v1771 = vpop.f32.mrf.mxu0
    %v1772 = vadd.f32 %v1731, %v1771
    %v1773 = vpop.f32.mrf.mxu0
    %v1774 = vadd.f32 %v1733, %v1773
    %v1775 = vpop.f32.mrf.mxu0
    %v1776 = vpop.f32.mrf.mxu0
    %1777 = vdwg.mxu0
    %1778 = vmatprep.subr.bf16.mxu0 %v1341
    %1779 = vmatpush1.bf16.msra.mxu0 %v1340
    %1780 = vmatprep.subr.bf16.mxu0 %v1337
    %1781 = vmatpush1.bf16.msra.mxu0 %v1336
    %1782 = vmatprep.subr.bf16.mxu0 %v1333
    %1783 = vmatpush1.bf16.msra.mxu0 %v1332
    %1784 = vmatprep.subr.bf16.mxu0 %v1329
    %1785 = vmatpush1.bf16.msra.mxu0 %v1328
    %1786 = vmatprep.subr.bf16.mxu0 %v1325
    %1787 = vmatpush1.bf16.msra.mxu0 %v1324
    %1788 = vmatprep.subr.bf16.mxu0 %v1321
    %1789 = vmatpush1.bf16.msra.mxu0 %v1320
    %1790 = vmatprep.subr.bf16.mxu0 %v1317
    %1791 = vmatpush1.bf16.msra.mxu0 %v1316
    %1792 = vmatprep.subr.bf16.mxu0 %v1313
    %1793 = vmatpush1.bf16.msra.mxu0 %v1312
    %1794 = vmatprep.subr.bf16.mxu0 %v1373
    %1795 = vmatpush2.bf16.msra.mxu0 %v1372
    %1796 = vmatprep.subr.bf16.mxu0 %v1369
    %1797 = vmatpush2.bf16.msra.mxu0 %v1368
    %1798 = vmatprep.subr.bf16.mxu0 %v1365
    %1799 = vmatpush2.bf16.msra.mxu0 %v1364
    %1800 = vmatprep.subr.bf16.mxu0 %v1361
    %1801 = vmatpush2.bf16.msra.mxu0 %v1360
    %1802 = vmatprep.subr.bf16.mxu0 %v1357
    %1803 = vmatpush2.bf16.msra.mxu0 %v1356
    %1804 = vmatprep.subr.bf16.mxu0 %v1353
    %1805 = vmatpush2.bf16.msra.mxu0 %v1352
    %1806 = vmatprep.subr.bf16.mxu0 %v1349
    %1807 = vmatpush2.bf16.msra.mxu0 %v1348
    %1808 = vmatprep.subr.bf16.mxu0 %v1345
    %1809 = vmatpush2.bf16.msra.mxu0 %v1344
    %1810 = vmatprep.mubr.bf16.mxu0 %v405
    %1811 = vmatmul.mubr.bf16.gmra.mxu0 %v404
    %v1812 = vpop.f32.mrf.mxu0
    %v1813 = vadd.f32 %v1772, %v1812
    %v1814 = vpop.f32.mrf.mxu0
    %v1815 = vadd.f32 %v1774, %v1814
    %v1816 = vpop.f32.mrf.mxu0
    %v1817 = vpop.f32.mrf.mxu0
    %1818 = vdwg.mxu0
    %1819 = vmatprep.subr.bf16.mxu0 %v1405
    %1820 = vmatpush1.bf16.msra.mxu0 %v1404
    %1821 = vmatprep.subr.bf16.mxu0 %v1401
    %1822 = vmatpush1.bf16.msra.mxu0 %v1400
    %1823 = vmatprep.subr.bf16.mxu0 %v1397
    %1824 = vmatpush1.bf16.msra.mxu0 %v1396
    %1825 = vmatprep.subr.bf16.mxu0 %v1393
    %1826 = vmatpush1.bf16.msra.mxu0 %v1392
    %1827 = vmatprep.subr.bf16.mxu0 %v1389
    %1828 = vmatpush1.bf16.msra.mxu0 %v1388
    %1829 = vmatprep.subr.bf16.mxu0 %v1385
    %1830 = vmatpush1.bf16.msra.mxu0 %v1384
    %1831 = vmatprep.subr.bf16.mxu0 %v1381
    %1832 = vmatpush1.bf16.msra.mxu0 %v1380
    %1833 = vmatprep.subr.bf16.mxu0 %v1377
    %1834 = vmatpush1.bf16.msra.mxu0 %v1376
    %1835 = vmatprep.subr.bf16.mxu0 %v1437
    %1836 = vmatpush2.bf16.msra.mxu0 %v1436
    %1837 = vmatprep.subr.bf16.mxu0 %v1433
    %1838 = vmatpush2.bf16.msra.mxu0 %v1432
    %1839 = vmatprep.subr.bf16.mxu0 %v1429
    %1840 = vmatpush2.bf16.msra.mxu0 %v1428
    %1841 = vmatprep.subr.bf16.mxu0 %v1425
    %1842 = vmatpush2.bf16.msra.mxu0 %v1424
    %1843 = vmatprep.subr.bf16.mxu0 %v1421
    %1844 = vmatpush2.bf16.msra.mxu0 %v1420
    %1845 = vmatprep.subr.bf16.mxu0 %v1417
    %1846 = vmatpush2.bf16.msra.mxu0 %v1416
    %1847 = vmatprep.subr.bf16.mxu0 %v1413
    %1848 = vmatpush2.bf16.msra.mxu0 %v1412
    %1849 = vmatprep.subr.bf16.mxu0 %v1409
    %1850 = vmatpush2.bf16.msra.mxu0 %v1408
    %1851 = vmatprep.mubr.bf16.mxu0 %v407
    %1852 = vmatmul.mubr.bf16.gmra.mxu0 %v406
    %v1853 = vpop.f32.mrf.mxu0
    %v1854 = vadd.f32 %v1813, %v1853
    %v1855 = vpop.f32.mrf.mxu0
    %v1856 = vadd.f32 %v1815, %v1855
    %v1857 = vpop.f32.mrf.mxu0
    %v1858 = vpop.f32.mrf.mxu0
    %1859 = vdwg.mxu0
    %1860 = vmatprep.subr.bf16.mxu0 %v1215
    %1861 = vmatpush1.bf16.msra.mxu0 %v1214
    %1862 = vmatprep.subr.bf16.mxu0 %v1211
    %1863 = vmatpush1.bf16.msra.mxu0 %v1210
    %1864 = vmatprep.subr.bf16.mxu0 %v1207
    %1865 = vmatpush1.bf16.msra.mxu0 %v1206
    %1866 = vmatprep.subr.bf16.mxu0 %v1203
    %1867 = vmatpush1.bf16.msra.mxu0 %v1202
    %1868 = vmatprep.subr.bf16.mxu0 %v1199
    %1869 = vmatpush1.bf16.msra.mxu0 %v1198
    %1870 = vmatprep.subr.bf16.mxu0 %v1195
    %1871 = vmatpush1.bf16.msra.mxu0 %v1194
    %1872 = vmatprep.subr.bf16.mxu0 %v1191
    %1873 = vmatpush1.bf16.msra.mxu0 %v1190
    %1874 = vmatprep.subr.bf16.mxu0 %v1187
    %1875 = vmatpush1.bf16.msra.mxu0 %v1186
    %1876 = vmatprep.subr.bf16.mxu0 %v1247
    %1877 = vmatpush2.bf16.msra.mxu0 %v1246
    %1878 = vmatprep.subr.bf16.mxu0 %v1243
    %1879 = vmatpush2.bf16.msra.mxu0 %v1242
    %1880 = vmatprep.subr.bf16.mxu0 %v1239
    %1881 = vmatpush2.bf16.msra.mxu0 %v1238
    %1882 = vmatprep.subr.bf16.mxu0 %v1235
    %1883 = vmatpush2.bf16.msra.mxu0 %v1234
    %1884 = vmatprep.subr.bf16.mxu0 %v1231
    %1885 = vmatpush2.bf16.msra.mxu0 %v1230
    %1886 = vmatprep.subr.bf16.mxu0 %v1227
    %1887 = vmatpush2.bf16.msra.mxu0 %v1226
    %1888 = vmatprep.subr.bf16.mxu0 %v1223
    %1889 = vmatpush2.bf16.msra.mxu0 %v1222
    %1890 = vmatprep.subr.bf16.mxu0 %v1219
    %1891 = vmatpush2.bf16.msra.mxu0 %v1218
    %1892 = vmatprep.mubr.bf16.mxu0 %v401
    %1893 = vmatmul.mubr.bf16.gmra.mxu0 %v400
    %v1894 = vpop.f32.mrf.mxu0
    %v1895 = vadd.f32 0.0, %v1894
    %v1896 = vpop.f32.mrf.mxu0
    %v1897 = vadd.f32 0.0, %v1896
    %v1898 = vpop.f32.mrf.mxu0
    %v1899 = vpop.f32.mrf.mxu0
    %1900 = vdwg.mxu0
    %1901 = vmatprep.subr.bf16.mxu0 %v1279
    %1902 = vmatpush1.bf16.msra.mxu0 %v1278
    %1903 = vmatprep.subr.bf16.mxu0 %v1275
    %1904 = vmatpush1.bf16.msra.mxu0 %v1274
    %1905 = vmatprep.subr.bf16.mxu0 %v1271
    %1906 = vmatpush1.bf16.msra.mxu0 %v1270
    %1907 = vmatprep.subr.bf16.mxu0 %v1267
    %1908 = vmatpush1.bf16.msra.mxu0 %v1266
    %1909 = vmatprep.subr.bf16.mxu0 %v1263
    %1910 = vmatpush1.bf16.msra.mxu0 %v1262
    %1911 = vmatprep.subr.bf16.mxu0 %v1259
    %1912 = vmatpush1.bf16.msra.mxu0 %v1258
    %1913 = vmatprep.subr.bf16.mxu0 %v1255
    %1914 = vmatpush1.bf16.msra.mxu0 %v1254
    %1915 = vmatprep.subr.bf16.mxu0 %v1251
    %1916 = vmatpush1.bf16.msra.mxu0 %v1250
    %1917 = vmatprep.subr.bf16.mxu0 %v1311
    %1918 = vmatpush2.bf16.msra.mxu0 %v1310
    %1919 = vmatprep.subr.bf16.mxu0 %v1307
    %1920 = vmatpush2.bf16.msra.mxu0 %v1306
    %1921 = vmatprep.subr.bf16.mxu0 %v1303
    %1922 = vmatpush2.bf16.msra.mxu0 %v1302
    %1923 = vmatprep.subr.bf16.mxu0 %v1299
    %1924 = vmatpush2.bf16.msra.mxu0 %v1298
    %1925 = vmatprep.subr.bf16.mxu0 %v1295
    %1926 = vmatpush2.bf16.msra.mxu0 %v1294
    %1927 = vmatprep.subr.bf16.mxu0 %v1291
    %1928 = vmatpush2.bf16.msra.mxu0 %v1290
    %1929 = vmatprep.subr.bf16.mxu0 %v1287
    %1930 = vmatpush2.bf16.msra.mxu0 %v1286
    %1931 = vmatprep.subr.bf16.mxu0 %v1283
    %1932 = vmatpush2.bf16.msra.mxu0 %v1282
    %1933 = vmatprep.mubr.bf16.mxu0 %v403
    %1934 = vmatmul.mubr.bf16.gmra.mxu0 %v402
    %v1935 = vpop.f32.mrf.mxu0
    %v1936 = vadd.f32 %v1895, %v1935
    %v1937 = vpop.f32.mrf.mxu0
    %v1938 = vadd.f32 %v1897, %v1937
    %v1939 = vpop.f32.mrf.mxu0
    %v1940 = vpop.f32.mrf.mxu0
    %1941 = vdwg.mxu0
    %1942 = vmatprep.subr.bf16.mxu0 %v1343
    %1943 = vmatpush1.bf16.msra.mxu0 %v1342
    %1944 = vmatprep.subr.bf16.mxu0 %v1339
    %1945 = vmatpush1.bf16.msra.mxu0 %v1338
    %1946 = vmatprep.subr.bf16.mxu0 %v1335
    %1947 = vmatpush1.bf16.msra.mxu0 %v1334
    %1948 = vmatprep.subr.bf16.mxu0 %v1331
    %1949 = vmatpush1.bf16.msra.mxu0 %v1330
    %1950 = vmatprep.subr.bf16.mxu0 %v1327
    %1951 = vmatpush1.bf16.msra.mxu0 %v1326
    %1952 = vmatprep.subr.bf16.mxu0 %v1323
    %1953 = vmatpush1.bf16.msra.mxu0 %v1322
    %1954 = vmatprep.subr.bf16.mxu0 %v1319
    %1955 = vmatpush1.bf16.msra.mxu0 %v1318
    %1956 = vmatprep.subr.bf16.mxu0 %v1315
    %1957 = vmatpush1.bf16.msra.mxu0 %v1314
    %1958 = vmatprep.subr.bf16.mxu0 %v1375
    %1959 = vmatpush2.bf16.msra.mxu0 %v1374
    %1960 = vmatprep.subr.bf16.mxu0 %v1371
    %1961 = vmatpush2.bf16.msra.mxu0 %v1370
    %1962 = vmatprep.subr.bf16.mxu0 %v1367
    %1963 = vmatpush2.bf16.msra.mxu0 %v1366
    %1964 = vmatprep.subr.bf16.mxu0 %v1363
    %1965 = vmatpush2.bf16.msra.mxu0 %v1362
    %1966 = vmatprep.subr.bf16.mxu0 %v1359
    %1967 = vmatpush2.bf16.msra.mxu0 %v1358
    %1968 = vmatprep.subr.bf16.mxu0 %v1355
    %1969 = vmatpush2.bf16.msra.mxu0 %v1354
    %1970 = vmatprep.subr.bf16.mxu0 %v1351
    %1971 = vmatpush2.bf16.msra.mxu0 %v1350
    %1972 = vmatprep.subr.bf16.mxu0 %v1347
    %1973 = vmatpush2.bf16.msra.mxu0 %v1346
    %1974 = vmatprep.mubr.bf16.mxu0 %v405
    %1975 = vmatmul.mubr.bf16.gmra.mxu0 %v404
    %v1976 = vpop.f32.mrf.mxu0
    %v1977 = vadd.f32 %v1936, %v1976
    %v1978 = vpop.f32.mrf.mxu0
    %v1979 = vadd.f32 %v1938, %v1978
    %v1980 = vpop.f32.mrf.mxu0
    %v1981 = vpop.f32.mrf.mxu0
    %1982 = vdwg.mxu0
    %1983 = vmatprep.subr.bf16.mxu0 %v1407
    %1984 = vmatpush1.bf16.msra.mxu0 %v1406
    %1985 = vmatprep.subr.bf16.mxu0 %v1403
    %1986 = vmatpush1.bf16.msra.mxu0 %v1402
    %1987 = vmatprep.subr.bf16.mxu0 %v1399
    %1988 = vmatpush1.bf16.msra.mxu0 %v1398
    %1989 = vmatprep.subr.bf16.mxu0 %v1395
    %1990 = vmatpush1.bf16.msra.mxu0 %v1394
    %1991 = vmatprep.subr.bf16.mxu0 %v1391
    %1992 = vmatpush1.bf16.msra.mxu0 %v1390
    %1993 = vmatprep.subr.bf16.mxu0 %v1387
    %1994 = vmatpush1.bf16.msra.mxu0 %v1386
    %1995 = vmatprep.subr.bf16.mxu0 %v1383
    %1996 = vmatpush1.bf16.msra.mxu0 %v1382
    %1997 = vmatprep.subr.bf16.mxu0 %v1379
    %1998 = vmatpush1.bf16.msra.mxu0 %v1378
    %1999 = vmatprep.subr.bf16.mxu0 %v1439
    %2000 = vmatpush2.bf16.msra.mxu0 %v1438
    %2001 = vmatprep.subr.bf16.mxu0 %v1435
    %2002 = vmatpush2.bf16.msra.mxu0 %v1434
    %2003 = vmatprep.subr.bf16.mxu0 %v1431
    %2004 = vmatpush2.bf16.msra.mxu0 %v1430
    %2005 = vmatprep.subr.bf16.mxu0 %v1427
    %2006 = vmatpush2.bf16.msra.mxu0 %v1426
    %2007 = vmatprep.subr.bf16.mxu0 %v1423
    %2008 = vmatpush2.bf16.msra.mxu0 %v1422
    %2009 = vmatprep.subr.bf16.mxu0 %v1419
    %2010 = vmatpush2.bf16.msra.mxu0 %v1418
    %2011 = vmatprep.subr.bf16.mxu0 %v1415
    %2012 = vmatpush2.bf16.msra.mxu0 %v1414
    %2013 = vmatprep.subr.bf16.mxu0 %v1411
    %2014 = vmatpush2.bf16.msra.mxu0 %v1410
    %2015 = vmatprep.mubr.bf16.mxu0 %v407
    %2016 = vmatmul.mubr.bf16.gmra.mxu0 %v406
    %v2017 = vpop.f32.mrf.mxu0
    %v2018 = vadd.f32 %v1977, %v2017
    %v2019 = vpop.f32.mrf.mxu0
    %v2020 = vadd.f32 %v1979, %v2019
    %v2021 = vpop.f32.mrf.mxu0
    %v2022 = vpop.f32.mrf.mxu0
    %2023 = vdwg.mxu0
    %v2032 = vunpack.c.l.b16 %v120
    %v2033 = vunpack.c.h.b16 %v120
    %v2034 = vunpack.c.l.b16 %v121
    %v2035 = vunpack.c.h.b16 %v121
    %v2036 = vunpack.c.l.b16 %v122
    %v2037 = vunpack.c.h.b16 %v122
    %v2038 = vunpack.c.l.b16 %v123
    %v2039 = vunpack.c.h.b16 %v123
    %v2040 = vunpack.c.l.b16 %v124
    %v2041 = vunpack.c.h.b16 %v124
    %v2042 = vunpack.c.l.b16 %v125
    %v2043 = vunpack.c.h.b16 %v125
    %v2044 = vunpack.c.l.b16 %v126
    %v2045 = vunpack.c.h.b16 %v126
    %v2046 = vunpack.c.l.b16 %v127
    %v2047 = vunpack.c.h.b16 %v127
    %v2048 = vpack.c.b16 %v2036, %v2032
    %v2049 = vpack.c.b16 %v2037, %v2033
    %v2050 = vpack.c.b16 %v2038, %v2034
    %v2051 = vpack.c.b16 %v2039, %v2035
    %v2052 = vpack.c.b16 %v2044, %v2040
    %v2053 = vpack.c.b16 %v2045, %v2041
    %v2054 = vpack.c.b16 %v2046, %v2042
    %v2055 = vpack.c.b16 %v2047, %v2043
    %vm2064 = vcmask 261120
    %v2066 = vsel %vm2064, %v119, 0
    %2068 = vmatprep.subr.bf16.mxu0 0
    %2069 = vmatpush1.bf16.msra.mxu0 0
    %2070 = vmatprep.subr.bf16.mxu0 0
    %2071 = vmatpush1.bf16.msra.mxu0 0
    %2072 = vmatprep.subr.bf16.mxu0 0
    %2073 = vmatpush1.bf16.msra.mxu0 0
    %2074 = vmatprep.subr.bf16.mxu0 0
    %2075 = vmatpush1.bf16.msra.mxu0 0
    %2076 = vmatprep.subr.bf16.mxu0 0
    %2077 = vmatpush1.bf16.msra.mxu0 0
    %2078 = vmatprep.subr.bf16.mxu0 0
    %2079 = vmatpush1.bf16.msra.mxu0 0
    %2080 = vmatprep.subr.bf16.mxu0 %v2053
    %2081 = vmatpush1.bf16.msra.mxu0 %v2052
    %2082 = vmatprep.subr.bf16.mxu0 %v2049
    %2083 = vmatpush1.bf16.msra.mxu0 %v2048
    %2084 = vmatprep.subr.bf16.mxu0 0
    %2085 = vmatpush2.bf16.msra.mxu0 0
    %2086 = vmatprep.subr.bf16.mxu0 0
    %2087 = vmatpush2.bf16.msra.mxu0 0
    %2088 = vmatprep.subr.bf16.mxu0 0
    %2089 = vmatpush2.bf16.msra.mxu0 0
    %2090 = vmatprep.subr.bf16.mxu0 0
    %2091 = vmatpush2.bf16.msra.mxu0 0
    %2092 = vmatprep.subr.bf16.mxu0 0
    %2093 = vmatpush2.bf16.msra.mxu0 0
    %2094 = vmatprep.subr.bf16.mxu0 0
    %2095 = vmatpush2.bf16.msra.mxu0 0
    %2096 = vmatprep.subr.bf16.mxu0 0
    %2097 = vmatpush2.bf16.msra.mxu0 0
    %2098 = vmatprep.subr.bf16.mxu0 0
    %2099 = vmatpush2.bf16.msra.mxu0 0
    %2100 = vmatprep.mubr.bf16.mxu0 0
    %2101 = vmatmul.mubr.bf16.gmra.mxu0 %v2066
    %v2102 = vpop.f32.mrf.mxu0
    %v2103 = vadd.f32 %v1854, %v2102
    %v2104 = vpop.f32.mrf.mxu0
    %v2105 = vadd.f32 %v1856, %v2104
    %v2106 = vpop.f32.mrf.mxu0
    %v2107 = vpop.f32.mrf.mxu0
    %2108 = vdwg.mxu0
    %2109 = vmatprep.subr.bf16.mxu0 0
    %2110 = vmatpush1.bf16.msra.mxu0 0
    %2111 = vmatprep.subr.bf16.mxu0 0
    %2112 = vmatpush1.bf16.msra.mxu0 0
    %2113 = vmatprep.subr.bf16.mxu0 0
    %2114 = vmatpush1.bf16.msra.mxu0 0
    %2115 = vmatprep.subr.bf16.mxu0 0
    %2116 = vmatpush1.bf16.msra.mxu0 0
    %2117 = vmatprep.subr.bf16.mxu0 0
    %2118 = vmatpush1.bf16.msra.mxu0 0
    %2119 = vmatprep.subr.bf16.mxu0 0
    %2120 = vmatpush1.bf16.msra.mxu0 0
    %2121 = vmatprep.subr.bf16.mxu0 %v2055
    %2122 = vmatpush1.bf16.msra.mxu0 %v2054
    %2123 = vmatprep.subr.bf16.mxu0 %v2051
    %2124 = vmatpush1.bf16.msra.mxu0 %v2050
    %2125 = vmatprep.subr.bf16.mxu0 0
    %2126 = vmatpush2.bf16.msra.mxu0 0
    %2127 = vmatprep.subr.bf16.mxu0 0
    %2128 = vmatpush2.bf16.msra.mxu0 0
    %2129 = vmatprep.subr.bf16.mxu0 0
    %2130 = vmatpush2.bf16.msra.mxu0 0
    %2131 = vmatprep.subr.bf16.mxu0 0
    %2132 = vmatpush2.bf16.msra.mxu0 0
    %2133 = vmatprep.subr.bf16.mxu0 0
    %2134 = vmatpush2.bf16.msra.mxu0 0
    %2135 = vmatprep.subr.bf16.mxu0 0
    %2136 = vmatpush2.bf16.msra.mxu0 0
    %2137 = vmatprep.subr.bf16.mxu0 0
    %2138 = vmatpush2.bf16.msra.mxu0 0
    %2139 = vmatprep.subr.bf16.mxu0 0
    %2140 = vmatpush2.bf16.msra.mxu0 0
    %2141 = vmatprep.mubr.bf16.mxu0 0
    %2142 = vmatmul.mubr.bf16.gmra.mxu0 %v2066
    %v2143 = vpop.f32.mrf.mxu0
    %v2144 = vadd.f32 %v2018, %v2143
    %v2145 = vpop.f32.mrf.mxu0
    %v2146 = vadd.f32 %v2020, %v2145
    %v2147 = vpop.f32.mrf.mxu0
    %v2148 = vpop.f32.mrf.mxu0
    %2149 = vdwg.mxu0
    %v2150 = vld [vmem:[%s4] sm:$0xf]
    %v2152 = vlaneseq
    %v2153 = vshrl.u32 %v2152, 7
    %v2154 = vsub.s32 0, %v2153
    %v2155 = vrot.slane %v2150, %v2154
    %v2156 = vlaneseq
    %v2157 = vshrl.u32 %v2156, 7
    %v2158 = vsub.s32 1, %v2157
    %v2159 = vrot.slane %v2150, %v2158
    %v2160 = vlaneseq
    %v2161 = vshrl.u32 %v2160, 7
    %v2162 = vsub.s32 2, %v2161
    %v2163 = vrot.slane %v2150, %v2162
    %v2164 = vlaneseq
    %v2165 = vshrl.u32 %v2164, 7
    %v2166 = vsub.s32 3, %v2165
    %v2167 = vrot.slane %v2150, %v2166
    %v2172 = vadd.f32 %v2103, %v2155
    %v2173 = vadd.f32 %v2105, %v2159
    %v2174 = vadd.f32 %v2144, %v2163
    %v2175 = vadd.f32 %v2146, %v2167
    %vm2176 = vcmp.ge.f32.partialorder %v2172, 0.0
    %vm2177 = vcmp.ge.f32.partialorder %v2173, 0.0
    %vm2178 = vcmp.ge.f32.partialorder %v2174, 0.0
    %vm2179 = vcmp.ge.f32.partialorder %v2175, 0.0
    %v2180 = vmul.f32 %v2172, 0.01
    %v2181 = vmul.f32 %v2173, 0.01
    %v2182 = vmul.f32 %v2174, 0.01
    %v2183 = vmul.f32 %v2175, 0.01
    %v2184 = vsel %vm2176, %v2172, %v2180
    %v2185 = vsel %vm2177, %v2173, %v2181
    %v2186 = vsel %vm2178, %v2174, %v2182
    %v2187 = vsel %vm2179, %v2175, %v2183
    %v2188 = vpack.c.bf16 %v2184, %v2184
    %v2189 = vpack.c.bf16 %v2185, %v2185
    %v2190 = vpack.c.bf16 %v2186, %v2186
    %v2191 = vpack.c.bf16 %v2187, %v2187
    %v2192 = vld [vmem:[#allocation10] sm:$0xff]
    %v2193 = vld [vmem:[#allocation10 + $0x8] sm:$0xff]
    %v2194 = vld [vmem:[#allocation10 + $0x10] sm:$0xff]
    %v2195 = vld [vmem:[#allocation10 + $0x18] sm:$0xff]
    %v2196 = vld [vmem:[#allocation10 + $0x20] sm:$0xff]
    %v2197 = vld [vmem:[#allocation10 + $0x28] sm:$0xff]
    %v2198 = vld [vmem:[#allocation10 + $0x30] sm:$0xff]
    %v2199 = vld [vmem:[#allocation10 + $0x38] sm:$0xff]
    %v2200 = vld [vmem:[#allocation10 + $0x40] sm:$0xff]
    %v2201 = vld [vmem:[#allocation10 + $0x48] sm:$0xff]
    %v2202 = vld [vmem:[#allocation10 + $0x50] sm:$0xff]
    %v2203 = vld [vmem:[#allocation10 + $0x58] sm:$0xff]
    %v2204 = vld [vmem:[#allocation10 + $0x60] sm:$0xff]
    %v2205 = vld [vmem:[#allocation10 + $0x68] sm:$0xff]
    %v2206 = vld [vmem:[#allocation10 + $0x70] sm:$0xff]
    %v2207 = vld [vmem:[#allocation10 + $0x78] sm:$0xff]
    %v2208 = vld [vmem:[#allocation10 + $0x80] sm:$0xff]
    %v2209 = vld [vmem:[#allocation10 + $0x88] sm:$0xff]
    %v2210 = vld [vmem:[#allocation10 + $0x90] sm:$0xff]
    %v2211 = vld [vmem:[#allocation10 + $0x98] sm:$0xff]
    %v2212 = vld [vmem:[#allocation10 + $0xa0] sm:$0xff]
    %v2213 = vld [vmem:[#allocation10 + $0xa8] sm:$0xff]
    %v2214 = vld [vmem:[#allocation10 + $0xb0] sm:$0xff]
    %v2215 = vld [vmem:[#allocation10 + $0xb8] sm:$0xff]
    %v2216 = vld [vmem:[#allocation10 + $0xc0] sm:$0xff]
    %v2217 = vld [vmem:[#allocation10 + $0xc8] sm:$0xff]
    %v2218 = vld [vmem:[#allocation10 + $0xd0] sm:$0xff]
    %v2219 = vld [vmem:[#allocation10 + $0xd8] sm:$0xff]
    %v2220 = vld [vmem:[#allocation10 + $0xe0] sm:$0xff]
    %v2221 = vld [vmem:[#allocation10 + $0xe8] sm:$0xff]
    %v2222 = vld [vmem:[#allocation10 + $0xf0] sm:$0xff]
    %v2223 = vld [vmem:[#allocation10 + $0xf8] sm:$0xff]
    %v2224 = vld [vmem:[#allocation10 + $0x100] sm:$0xff]
    %v2225 = vld [vmem:[#allocation10 + $0x108] sm:$0xff]
    %v2226 = vld [vmem:[#allocation10 + $0x110] sm:$0xff]
    %v2227 = vld [vmem:[#allocation10 + $0x118] sm:$0xff]
    %v2228 = vld [vmem:[#allocation10 + $0x120] sm:$0xff]
    %v2229 = vld [vmem:[#allocation10 + $0x128] sm:$0xff]
    %v2230 = vld [vmem:[#allocation10 + $0x130] sm:$0xff]
    %v2231 = vld [vmem:[#allocation10 + $0x138] sm:$0xff]
    %v2232 = vld [vmem:[#allocation10 + $0x140] sm:$0xff]
    %v2233 = vld [vmem:[#allocation10 + $0x148] sm:$0xff]
    %v2234 = vld [vmem:[#allocation10 + $0x150] sm:$0xff]
    %v2235 = vld [vmem:[#allocation10 + $0x158] sm:$0xff]
    %v2236 = vld [vmem:[#allocation10 + $0x160] sm:$0xff]
    %v2237 = vld [vmem:[#allocation10 + $0x168] sm:$0xff]
    %v2238 = vld [vmem:[#allocation10 + $0x170] sm:$0xff]
    %v2239 = vld [vmem:[#allocation10 + $0x178] sm:$0xff]
    %v2240 = vld [vmem:[#allocation10 + $0x180] sm:$0xff]
    %v2241 = vld [vmem:[#allocation10 + $0x188] sm:$0xff]
    %v2242 = vld [vmem:[#allocation10 + $0x190] sm:$0xff]
    %v2243 = vld [vmem:[#allocation10 + $0x198] sm:$0xff]
    %v2244 = vld [vmem:[#allocation10 + $0x1a0] sm:$0xff]
    %v2245 = vld [vmem:[#allocation10 + $0x1a8] sm:$0xff]
    %v2246 = vld [vmem:[#allocation10 + $0x1b0] sm:$0xff]
    %v2247 = vld [vmem:[#allocation10 + $0x1b8] sm:$0xff]
    %v2248 = vld [vmem:[#allocation10 + $0x1c0] sm:$0xff]
    %v2249 = vld [vmem:[#allocation10 + $0x1c8] sm:$0xff]
    %v2250 = vld [vmem:[#allocation10 + $0x1d0] sm:$0xff]
    %v2251 = vld [vmem:[#allocation10 + $0x1d8] sm:$0xff]
    %v2252 = vld [vmem:[#allocation10 + $0x1e0] sm:$0xff]
    %v2253 = vld [vmem:[#allocation10 + $0x1e8] sm:$0xff]
    %v2254 = vld [vmem:[#allocation10 + $0x1f0] sm:$0xff]
    %v2255 = vld [vmem:[#allocation10 + $0x1f8] sm:$0xff]
    %v2256 = vld [vmem:[#allocation10 + $0x200] sm:$0xff]
    %v2257 = vld [vmem:[#allocation10 + $0x208] sm:$0xff]
    %v2258 = vld [vmem:[#allocation10 + $0x210] sm:$0xff]
    %v2259 = vld [vmem:[#allocation10 + $0x218] sm:$0xff]
    %v2260 = vld [vmem:[#allocation10 + $0x220] sm:$0xff]
    %v2261 = vld [vmem:[#allocation10 + $0x228] sm:$0xff]
    %v2262 = vld [vmem:[#allocation10 + $0x230] sm:$0xff]
    %v2263 = vld [vmem:[#allocation10 + $0x238] sm:$0xff]
    %v2264 = vld [vmem:[#allocation10 + $0x240] sm:$0xff]
    %v2265 = vld [vmem:[#allocation10 + $0x248] sm:$0xff]
    %v2266 = vld [vmem:[#allocation10 + $0x250] sm:$0xff]
    %v2267 = vld [vmem:[#allocation10 + $0x258] sm:$0xff]
    %v2268 = vld [vmem:[#allocation10 + $0x260] sm:$0xff]
    %v2269 = vld [vmem:[#allocation10 + $0x268] sm:$0xff]
    %v2270 = vld [vmem:[#allocation10 + $0x270] sm:$0xff]
    %v2271 = vld [vmem:[#allocation10 + $0x278] sm:$0xff]
    %v2272 = vld [vmem:[#allocation10 + $0x280] sm:$0xff]
    %v2273 = vld [vmem:[#allocation10 + $0x288] sm:$0xff]
    %v2274 = vld [vmem:[#allocation10 + $0x290] sm:$0xff]
    %v2275 = vld [vmem:[#allocation10 + $0x298] sm:$0xff]
    %v2276 = vld [vmem:[#allocation10 + $0x2a0] sm:$0xff]
    %v2277 = vld [vmem:[#allocation10 + $0x2a8] sm:$0xff]
    %v2278 = vld [vmem:[#allocation10 + $0x2b0] sm:$0xff]
    %v2279 = vld [vmem:[#allocation10 + $0x2b8] sm:$0xff]
    %v2280 = vld [vmem:[#allocation10 + $0x2c0] sm:$0xff]
    %v2281 = vld [vmem:[#allocation10 + $0x2c8] sm:$0xff]
    %v2282 = vld [vmem:[#allocation10 + $0x2d0] sm:$0xff]
    %v2283 = vld [vmem:[#allocation10 + $0x2d8] sm:$0xff]
    %v2284 = vld [vmem:[#allocation10 + $0x2e0] sm:$0xff]
    %v2285 = vld [vmem:[#allocation10 + $0x2e8] sm:$0xff]
    %v2286 = vld [vmem:[#allocation10 + $0x2f0] sm:$0xff]
    %v2287 = vld [vmem:[#allocation10 + $0x2f8] sm:$0xff]
    %v2288 = vld [vmem:[#allocation10 + $0x300] sm:$0xff]
    %v2289 = vld [vmem:[#allocation10 + $0x308] sm:$0xff]
    %v2290 = vld [vmem:[#allocation10 + $0x310] sm:$0xff]
    %v2291 = vld [vmem:[#allocation10 + $0x318] sm:$0xff]
    %v2292 = vld [vmem:[#allocation10 + $0x320] sm:$0xff]
    %v2293 = vld [vmem:[#allocation10 + $0x328] sm:$0xff]
    %v2294 = vld [vmem:[#allocation10 + $0x330] sm:$0xff]
    %v2295 = vld [vmem:[#allocation10 + $0x338] sm:$0xff]
    %v2296 = vld [vmem:[#allocation10 + $0x340] sm:$0xff]
    %v2297 = vld [vmem:[#allocation10 + $0x348] sm:$0xff]
    %v2298 = vld [vmem:[#allocation10 + $0x350] sm:$0xff]
    %v2299 = vld [vmem:[#allocation10 + $0x358] sm:$0xff]
    %v2300 = vld [vmem:[#allocation10 + $0x360] sm:$0xff]
    %v2301 = vld [vmem:[#allocation10 + $0x368] sm:$0xff]
    %v2302 = vld [vmem:[#allocation10 + $0x370] sm:$0xff]
    %v2303 = vld [vmem:[#allocation10 + $0x378] sm:$0xff]
    %v2304 = vld [vmem:[#allocation10 + $0x380] sm:$0xff]
    %v2305 = vld [vmem:[#allocation10 + $0x388] sm:$0xff]
    %v2306 = vld [vmem:[#allocation10 + $0x390] sm:$0xff]
    %v2307 = vld [vmem:[#allocation10 + $0x398] sm:$0xff]
    %v2308 = vld [vmem:[#allocation10 + $0x3a0] sm:$0xff]
    %v2309 = vld [vmem:[#allocation10 + $0x3a8] sm:$0xff]
    %v2310 = vld [vmem:[#allocation10 + $0x3b0] sm:$0xff]
    %v2311 = vld [vmem:[#allocation10 + $0x3b8] sm:$0xff]
    %v2312 = vld [vmem:[#allocation10 + $0x3c0] sm:$0xff]
    %v2313 = vld [vmem:[#allocation10 + $0x3c8] sm:$0xff]
    %v2314 = vld [vmem:[#allocation10 + $0x3d0] sm:$0xff]
    %v2315 = vld [vmem:[#allocation10 + $0x3d8] sm:$0xff]
    %v2316 = vld [vmem:[#allocation10 + $0x3e0] sm:$0xff]
    %v2317 = vld [vmem:[#allocation10 + $0x3e8] sm:$0xff]
    %v2318 = vld [vmem:[#allocation10 + $0x3f0] sm:$0xff]
    %v2319 = vld [vmem:[#allocation10 + $0x3f8] sm:$0xff]
    %v2320 = vld [vmem:[%s6] sm:$0xf]
    %v2322 = vlaneseq
    %v2323 = vshrl.u32 %v2322, 7
    %v2324 = vsub.s32 0, %v2323
    %v2325 = vrot.slane %v2320, %v2324
    %v2326 = vlaneseq
    %v2327 = vshrl.u32 %v2326, 7
    %v2328 = vsub.s32 1, %v2327
    %v2329 = vrot.slane %v2320, %v2328
    %v2330 = vlaneseq
    %v2331 = vshrl.u32 %v2330, 7
    %v2332 = vsub.s32 2, %v2331
    %v2333 = vrot.slane %v2320, %v2332
    %v2334 = vlaneseq
    %v2335 = vshrl.u32 %v2334, 7
    %v2336 = vsub.s32 3, %v2335
    %v2337 = vrot.slane %v2320, %v2336
    %v2470 = vunpack.c.l.b16 %v2192
    %v2471 = vunpack.c.h.b16 %v2192
    %v2472 = vunpack.c.l.b16 %v2193
    %v2473 = vunpack.c.h.b16 %v2193
    %v2474 = vunpack.c.l.b16 %v2194
    %v2475 = vunpack.c.h.b16 %v2194
    %v2476 = vunpack.c.l.b16 %v2195
    %v2477 = vunpack.c.h.b16 %v2195
    %v2478 = vunpack.c.l.b16 %v2196
    %v2479 = vunpack.c.h.b16 %v2196
    %v2480 = vunpack.c.l.b16 %v2197
    %v2481 = vunpack.c.h.b16 %v2197
    %v2482 = vunpack.c.l.b16 %v2198
    %v2483 = vunpack.c.h.b16 %v2198
    %v2484 = vunpack.c.l.b16 %v2199
    %v2485 = vunpack.c.h.b16 %v2199
    %v2486 = vunpack.c.l.b16 %v2200
    %v2487 = vunpack.c.h.b16 %v2200
    %v2488 = vunpack.c.l.b16 %v2201
    %v2489 = vunpack.c.h.b16 %v2201
    %v2490 = vunpack.c.l.b16 %v2202
    %v2491 = vunpack.c.h.b16 %v2202
    %v2492 = vunpack.c.l.b16 %v2203
    %v2493 = vunpack.c.h.b16 %v2203
    %v2494 = vunpack.c.l.b16 %v2204
    %v2495 = vunpack.c.h.b16 %v2204
    %v2496 = vunpack.c.l.b16 %v2205
    %v2497 = vunpack.c.h.b16 %v2205
    %v2498 = vunpack.c.l.b16 %v2206
    %v2499 = vunpack.c.h.b16 %v2206
    %v2500 = vunpack.c.l.b16 %v2207
    %v2501 = vunpack.c.h.b16 %v2207
    %v2502 = vunpack.c.l.b16 %v2208
    %v2503 = vunpack.c.h.b16 %v2208
    %v2504 = vunpack.c.l.b16 %v2209
    %v2505 = vunpack.c.h.b16 %v2209
    %v2506 = vunpack.c.l.b16 %v2210
    %v2507 = vunpack.c.h.b16 %v2210
    %v2508 = vunpack.c.l.b16 %v2211
    %v2509 = vunpack.c.h.b16 %v2211
    %v2510 = vunpack.c.l.b16 %v2212
    %v2511 = vunpack.c.h.b16 %v2212
    %v2512 = vunpack.c.l.b16 %v2213
    %v2513 = vunpack.c.h.b16 %v2213
    %v2514 = vunpack.c.l.b16 %v2214
    %v2515 = vunpack.c.h.b16 %v2214
    %v2516 = vunpack.c.l.b16 %v2215
    %v2517 = vunpack.c.h.b16 %v2215
    %v2518 = vunpack.c.l.b16 %v2216
    %v2519 = vunpack.c.h.b16 %v2216
    %v2520 = vunpack.c.l.b16 %v2217
    %v2521 = vunpack.c.h.b16 %v2217
    %v2522 = vunpack.c.l.b16 %v2218
    %v2523 = vunpack.c.h.b16 %v2218
    %v2524 = vunpack.c.l.b16 %v2219
    %v2525 = vunpack.c.h.b16 %v2219
    %v2526 = vunpack.c.l.b16 %v2220
    %v2527 = vunpack.c.h.b16 %v2220
    %v2528 = vunpack.c.l.b16 %v2221
    %v2529 = vunpack.c.h.b16 %v2221
    %v2530 = vunpack.c.l.b16 %v2222
    %v2531 = vunpack.c.h.b16 %v2222
    %v2532 = vunpack.c.l.b16 %v2223
    %v2533 = vunpack.c.h.b16 %v2223
    %v2534 = vunpack.c.l.b16 %v2224
    %v2535 = vunpack.c.h.b16 %v2224
    %v2536 = vunpack.c.l.b16 %v2225
    %v2537 = vunpack.c.h.b16 %v2225
    %v2538 = vunpack.c.l.b16 %v2226
    %v2539 = vunpack.c.h.b16 %v2226
    %v2540 = vunpack.c.l.b16 %v2227
    %v2541 = vunpack.c.h.b16 %v2227
    %v2542 = vunpack.c.l.b16 %v2228
    %v2543 = vunpack.c.h.b16 %v2228
    %v2544 = vunpack.c.l.b16 %v2229
    %v2545 = vunpack.c.h.b16 %v2229
    %v2546 = vunpack.c.l.b16 %v2230
    %v2547 = vunpack.c.h.b16 %v2230
    %v2548 = vunpack.c.l.b16 %v2231
    %v2549 = vunpack.c.h.b16 %v2231
    %v2550 = vunpack.c.l.b16 %v2232
    %v2551 = vunpack.c.h.b16 %v2232
    %v2552 = vunpack.c.l.b16 %v2233
    %v2553 = vunpack.c.h.b16 %v2233
    %v2554 = vunpack.c.l.b16 %v2234
    %v2555 = vunpack.c.h.b16 %v2234
    %v2556 = vunpack.c.l.b16 %v2235
    %v2557 = vunpack.c.h.b16 %v2235
    %v2558 = vunpack.c.l.b16 %v2236
    %v2559 = vunpack.c.h.b16 %v2236
    %v2560 = vunpack.c.l.b16 %v2237
    %v2561 = vunpack.c.h.b16 %v2237
    %v2562 = vunpack.c.l.b16 %v2238
    %v2563 = vunpack.c.h.b16 %v2238
    %v2564 = vunpack.c.l.b16 %v2239
    %v2565 = vunpack.c.h.b16 %v2239
    %v2566 = vunpack.c.l.b16 %v2240
    %v2567 = vunpack.c.h.b16 %v2240
    %v2568 = vunpack.c.l.b16 %v2241
    %v2569 = vunpack.c.h.b16 %v2241
    %v2570 = vunpack.c.l.b16 %v2242
    %v2571 = vunpack.c.h.b16 %v2242
    %v2572 = vunpack.c.l.b16 %v2243
    %v2573 = vunpack.c.h.b16 %v2243
    %v2574 = vunpack.c.l.b16 %v2244
    %v2575 = vunpack.c.h.b16 %v2244
    %v2576 = vunpack.c.l.b16 %v2245
    %v2577 = vunpack.c.h.b16 %v2245
    %v2578 = vunpack.c.l.b16 %v2246
    %v2579 = vunpack.c.h.b16 %v2246
    %v2580 = vunpack.c.l.b16 %v2247
    %v2581 = vunpack.c.h.b16 %v2247
    %v2582 = vunpack.c.l.b16 %v2248
    %v2583 = vunpack.c.h.b16 %v2248
    %v2584 = vunpack.c.l.b16 %v2249
    %v2585 = vunpack.c.h.b16 %v2249
    %v2586 = vunpack.c.l.b16 %v2250
    %v2587 = vunpack.c.h.b16 %v2250
    %v2588 = vunpack.c.l.b16 %v2251
    %v2589 = vunpack.c.h.b16 %v2251
    %v2590 = vunpack.c.l.b16 %v2252
    %v2591 = vunpack.c.h.b16 %v2252
    %v2592 = vunpack.c.l.b16 %v2253
    %v2593 = vunpack.c.h.b16 %v2253
    %v2594 = vunpack.c.l.b16 %v2254
    %v2595 = vunpack.c.h.b16 %v2254
    %v2596 = vunpack.c.l.b16 %v2255
    %v2597 = vunpack.c.h.b16 %v2255
    %v2598 = vunpack.c.l.b16 %v2256
    %v2599 = vunpack.c.h.b16 %v2256
    %v2600 = vunpack.c.l.b16 %v2257
    %v2601 = vunpack.c.h.b16 %v2257
    %v2602 = vunpack.c.l.b16 %v2258
    %v2603 = vunpack.c.h.b16 %v2258
    %v2604 = vunpack.c.l.b16 %v2259
    %v2605 = vunpack.c.h.b16 %v2259
    %v2606 = vunpack.c.l.b16 %v2260
    %v2607 = vunpack.c.h.b16 %v2260
    %v2608 = vunpack.c.l.b16 %v2261
    %v2609 = vunpack.c.h.b16 %v2261
    %v2610 = vunpack.c.l.b16 %v2262
    %v2611 = vunpack.c.h.b16 %v2262
    %v2612 = vunpack.c.l.b16 %v2263
    %v2613 = vunpack.c.h.b16 %v2263
    %v2614 = vunpack.c.l.b16 %v2264
    %v2615 = vunpack.c.h.b16 %v2264
    %v2616 = vunpack.c.l.b16 %v2265
    %v2617 = vunpack.c.h.b16 %v2265
    %v2618 = vunpack.c.l.b16 %v2266
    %v2619 = vunpack.c.h.b16 %v2266
    %v2620 = vunpack.c.l.b16 %v2267
    %v2621 = vunpack.c.h.b16 %v2267
    %v2622 = vunpack.c.l.b16 %v2268
    %v2623 = vunpack.c.h.b16 %v2268
    %v2624 = vunpack.c.l.b16 %v2269
    %v2625 = vunpack.c.h.b16 %v2269
    %v2626 = vunpack.c.l.b16 %v2270
    %v2627 = vunpack.c.h.b16 %v2270
    %v2628 = vunpack.c.l.b16 %v2271
    %v2629 = vunpack.c.h.b16 %v2271
    %v2630 = vunpack.c.l.b16 %v2272
    %v2631 = vunpack.c.h.b16 %v2272
    %v2632 = vunpack.c.l.b16 %v2273
    %v2633 = vunpack.c.h.b16 %v2273
    %v2634 = vunpack.c.l.b16 %v2274
    %v2635 = vunpack.c.h.b16 %v2274
    %v2636 = vunpack.c.l.b16 %v2275
    %v2637 = vunpack.c.h.b16 %v2275
    %v2638 = vunpack.c.l.b16 %v2276
    %v2639 = vunpack.c.h.b16 %v2276
    %v2640 = vunpack.c.l.b16 %v2277
    %v2641 = vunpack.c.h.b16 %v2277
    %v2642 = vunpack.c.l.b16 %v2278
    %v2643 = vunpack.c.h.b16 %v2278
    %v2644 = vunpack.c.l.b16 %v2279
    %v2645 = vunpack.c.h.b16 %v2279
    %v2646 = vunpack.c.l.b16 %v2280
    %v2647 = vunpack.c.h.b16 %v2280
    %v2648 = vunpack.c.l.b16 %v2281
    %v2649 = vunpack.c.h.b16 %v2281
    %v2650 = vunpack.c.l.b16 %v2282
    %v2651 = vunpack.c.h.b16 %v2282
    %v2652 = vunpack.c.l.b16 %v2283
    %v2653 = vunpack.c.h.b16 %v2283
    %v2654 = vunpack.c.l.b16 %v2284
    %v2655 = vunpack.c.h.b16 %v2284
    %v2656 = vunpack.c.l.b16 %v2285
    %v2657 = vunpack.c.h.b16 %v2285
    %v2658 = vunpack.c.l.b16 %v2286
    %v2659 = vunpack.c.h.b16 %v2286
    %v2660 = vunpack.c.l.b16 %v2287
    %v2661 = vunpack.c.h.b16 %v2287
    %v2662 = vunpack.c.l.b16 %v2288
    %v2663 = vunpack.c.h.b16 %v2288
    %v2664 = vunpack.c.l.b16 %v2289
    %v2665 = vunpack.c.h.b16 %v2289
    %v2666 = vunpack.c.l.b16 %v2290
    %v2667 = vunpack.c.h.b16 %v2290
    %v2668 = vunpack.c.l.b16 %v2291
    %v2669 = vunpack.c.h.b16 %v2291
    %v2670 = vunpack.c.l.b16 %v2292
    %v2671 = vunpack.c.h.b16 %v2292
    %v2672 = vunpack.c.l.b16 %v2293
    %v2673 = vunpack.c.h.b16 %v2293
    %v2674 = vunpack.c.l.b16 %v2294
    %v2675 = vunpack.c.h.b16 %v2294
    %v2676 = vunpack.c.l.b16 %v2295
    %v2677 = vunpack.c.h.b16 %v2295
    %v2678 = vunpack.c.l.b16 %v2296
    %v2679 = vunpack.c.h.b16 %v2296
    %v2680 = vunpack.c.l.b16 %v2297
    %v2681 = vunpack.c.h.b16 %v2297
    %v2682 = vunpack.c.l.b16 %v2298
    %v2683 = vunpack.c.h.b16 %v2298
    %v2684 = vunpack.c.l.b16 %v2299
    %v2685 = vunpack.c.h.b16 %v2299
    %v2686 = vunpack.c.l.b16 %v2300
    %v2687 = vunpack.c.h.b16 %v2300
    %v2688 = vunpack.c.l.b16 %v2301
    %v2689 = vunpack.c.h.b16 %v2301
    %v2690 = vunpack.c.l.b16 %v2302
    %v2691 = vunpack.c.h.b16 %v2302
    %v2692 = vunpack.c.l.b16 %v2303
    %v2693 = vunpack.c.h.b16 %v2303
    %v2694 = vunpack.c.l.b16 %v2304
    %v2695 = vunpack.c.h.b16 %v2304
    %v2696 = vunpack.c.l.b16 %v2305
    %v2697 = vunpack.c.h.b16 %v2305
    %v2698 = vunpack.c.l.b16 %v2306
    %v2699 = vunpack.c.h.b16 %v2306
    %v2700 = vunpack.c.l.b16 %v2307
    %v2701 = vunpack.c.h.b16 %v2307
    %v2702 = vunpack.c.l.b16 %v2308
    %v2703 = vunpack.c.h.b16 %v2308
    %v2704 = vunpack.c.l.b16 %v2309
    %v2705 = vunpack.c.h.b16 %v2309
    %v2706 = vunpack.c.l.b16 %v2310
    %v2707 = vunpack.c.h.b16 %v2310
    %v2708 = vunpack.c.l.b16 %v2311
    %v2709 = vunpack.c.h.b16 %v2311
    %v2710 = vunpack.c.l.b16 %v2312
    %v2711 = vunpack.c.h.b16 %v2312
    %v2712 = vunpack.c.l.b16 %v2313
    %v2713 = vunpack.c.h.b16 %v2313
    %v2714 = vunpack.c.l.b16 %v2314
    %v2715 = vunpack.c.h.b16 %v2314
    %v2716 = vunpack.c.l.b16 %v2315
    %v2717 = vunpack.c.h.b16 %v2315
    %v2718 = vunpack.c.l.b16 %v2316
    %v2719 = vunpack.c.h.b16 %v2316
    %v2720 = vunpack.c.l.b16 %v2317
    %v2721 = vunpack.c.h.b16 %v2317
    %v2722 = vunpack.c.l.b16 %v2318
    %v2723 = vunpack.c.h.b16 %v2318
    %v2724 = vunpack.c.l.b16 %v2319
    %v2725 = vunpack.c.h.b16 %v2319
    %v2726 = vpack.c.b16 %v2474, %v2470
    %v2727 = vpack.c.b16 %v2475, %v2471
    %v2728 = vpack.c.b16 %v2476, %v2472
    %v2729 = vpack.c.b16 %v2477, %v2473
    %v2730 = vpack.c.b16 %v2482, %v2478
    %v2731 = vpack.c.b16 %v2483, %v2479
    %v2732 = vpack.c.b16 %v2484, %v2480
    %v2733 = vpack.c.b16 %v2485, %v2481
    %v2734 = vpack.c.b16 %v2490, %v2486
    %v2735 = vpack.c.b16 %v2491, %v2487
    %v2736 = vpack.c.b16 %v2492, %v2488
    %v2737 = vpack.c.b16 %v2493, %v2489
    %v2738 = vpack.c.b16 %v2498, %v2494
    %v2739 = vpack.c.b16 %v2499, %v2495
    %v2740 = vpack.c.b16 %v2500, %v2496
    %v2741 = vpack.c.b16 %v2501, %v2497
    %v2742 = vpack.c.b16 %v2506, %v2502
    %v2743 = vpack.c.b16 %v2507, %v2503
    %v2744 = vpack.c.b16 %v2508, %v2504
    %v2745 = vpack.c.b16 %v2509, %v2505
    %v2746 = vpack.c.b16 %v2514, %v2510
    %v2747 = vpack.c.b16 %v2515, %v2511
    %v2748 = vpack.c.b16 %v2516, %v2512
    %v2749 = vpack.c.b16 %v2517, %v2513
    %v2750 = vpack.c.b16 %v2522, %v2518
    %v2751 = vpack.c.b16 %v2523, %v2519
    %v2752 = vpack.c.b16 %v2524, %v2520
    %v2753 = vpack.c.b16 %v2525, %v2521
    %v2754 = vpack.c.b16 %v2530, %v2526
    %v2755 = vpack.c.b16 %v2531, %v2527
    %v2756 = vpack.c.b16 %v2532, %v2528
    %v2757 = vpack.c.b16 %v2533, %v2529
    %v2758 = vpack.c.b16 %v2538, %v2534
    %v2759 = vpack.c.b16 %v2539, %v2535
    %v2760 = vpack.c.b16 %v2540, %v2536
    %v2761 = vpack.c.b16 %v2541, %v2537
    %v2762 = vpack.c.b16 %v2546, %v2542
    %v2763 = vpack.c.b16 %v2547, %v2543
    %v2764 = vpack.c.b16 %v2548, %v2544
    %v2765 = vpack.c.b16 %v2549, %v2545
    %v2766 = vpack.c.b16 %v2554, %v2550
    %v2767 = vpack.c.b16 %v2555, %v2551
    %v2768 = vpack.c.b16 %v2556, %v2552
    %v2769 = vpack.c.b16 %v2557, %v2553
    %v2770 = vpack.c.b16 %v2562, %v2558
    %v2771 = vpack.c.b16 %v2563, %v2559
    %v2772 = vpack.c.b16 %v2564, %v2560
    %v2773 = vpack.c.b16 %v2565, %v2561
    %v2774 = vpack.c.b16 %v2570, %v2566
    %v2775 = vpack.c.b16 %v2571, %v2567
    %v2776 = vpack.c.b16 %v2572, %v2568
    %v2777 = vpack.c.b16 %v2573, %v2569
    %v2778 = vpack.c.b16 %v2578, %v2574
    %v2779 = vpack.c.b16 %v2579, %v2575
    %v2780 = vpack.c.b16 %v2580, %v2576
    %v2781 = vpack.c.b16 %v2581, %v2577
    %v2782 = vpack.c.b16 %v2586, %v2582
    %v2783 = vpack.c.b16 %v2587, %v2583
    %v2784 = vpack.c.b16 %v2588, %v2584
    %v2785 = vpack.c.b16 %v2589, %v2585
    %v2786 = vpack.c.b16 %v2594, %v2590
    %v2787 = vpack.c.b16 %v2595, %v2591
    %v2788 = vpack.c.b16 %v2596, %v2592
    %v2789 = vpack.c.b16 %v2597, %v2593
    %v2790 = vpack.c.b16 %v2602, %v2598
    %v2791 = vpack.c.b16 %v2603, %v2599
    %v2792 = vpack.c.b16 %v2604, %v2600
    %v2793 = vpack.c.b16 %v2605, %v2601
    %v2794 = vpack.c.b16 %v2610, %v2606
    %v2795 = vpack.c.b16 %v2611, %v2607
    %v2796 = vpack.c.b16 %v2612, %v2608
    %v2797 = vpack.c.b16 %v2613, %v2609
    %v2798 = vpack.c.b16 %v2618, %v2614
    %v2799 = vpack.c.b16 %v2619, %v2615
    %v2800 = vpack.c.b16 %v2620, %v2616
    %v2801 = vpack.c.b16 %v2621, %v2617
    %v2802 = vpack.c.b16 %v2626, %v2622
    %v2803 = vpack.c.b16 %v2627, %v2623
    %v2804 = vpack.c.b16 %v2628, %v2624
    %v2805 = vpack.c.b16 %v2629, %v2625
    %v2806 = vpack.c.b16 %v2634, %v2630
    %v2807 = vpack.c.b16 %v2635, %v2631
    %v2808 = vpack.c.b16 %v2636, %v2632
    %v2809 = vpack.c.b16 %v2637, %v2633
    %v2810 = vpack.c.b16 %v2642, %v2638
    %v2811 = vpack.c.b16 %v2643, %v2639
    %v2812 = vpack.c.b16 %v2644, %v2640
    %v2813 = vpack.c.b16 %v2645, %v2641
    %v2814 = vpack.c.b16 %v2650, %v2646
    %v2815 = vpack.c.b16 %v2651, %v2647
    %v2816 = vpack.c.b16 %v2652, %v2648
    %v2817 = vpack.c.b16 %v2653, %v2649
    %v2818 = vpack.c.b16 %v2658, %v2654
    %v2819 = vpack.c.b16 %v2659, %v2655
    %v2820 = vpack.c.b16 %v2660, %v2656
    %v2821 = vpack.c.b16 %v2661, %v2657
    %v2822 = vpack.c.b16 %v2666, %v2662
    %v2823 = vpack.c.b16 %v2667, %v2663
    %v2824 = vpack.c.b16 %v2668, %v2664
    %v2825 = vpack.c.b16 %v2669, %v2665
    %v2826 = vpack.c.b16 %v2674, %v2670
    %v2827 = vpack.c.b16 %v2675, %v2671
    %v2828 = vpack.c.b16 %v2676, %v2672
    %v2829 = vpack.c.b16 %v2677, %v2673
    %v2830 = vpack.c.b16 %v2682, %v2678
    %v2831 = vpack.c.b16 %v2683, %v2679
    %v2832 = vpack.c.b16 %v2684, %v2680
    %v2833 = vpack.c.b16 %v2685, %v2681
    %v2834 = vpack.c.b16 %v2690, %v2686
    %v2835 = vpack.c.b16 %v2691, %v2687
    %v2836 = vpack.c.b16 %v2692, %v2688
    %v2837 = vpack.c.b16 %v2693, %v2689
    %v2838 = vpack.c.b16 %v2698, %v2694
    %v2839 = vpack.c.b16 %v2699, %v2695
    %v2840 = vpack.c.b16 %v2700, %v2696
    %v2841 = vpack.c.b16 %v2701, %v2697
    %v2842 = vpack.c.b16 %v2706, %v2702
    %v2843 = vpack.c.b16 %v2707, %v2703
    %v2844 = vpack.c.b16 %v2708, %v2704
    %v2845 = vpack.c.b16 %v2709, %v2705
    %v2846 = vpack.c.b16 %v2714, %v2710
    %v2847 = vpack.c.b16 %v2715, %v2711
    %v2848 = vpack.c.b16 %v2716, %v2712
    %v2849 = vpack.c.b16 %v2717, %v2713
    %v2850 = vpack.c.b16 %v2722, %v2718
    %v2851 = vpack.c.b16 %v2723, %v2719
    %v2852 = vpack.c.b16 %v2724, %v2720
    %v2853 = vpack.c.b16 %v2725, %v2721
    %2982 = vmatprep.subr.bf16.mxu0 %v2755
    %2983 = vmatpush1.bf16.msra.mxu0 %v2754
    %2984 = vmatprep.subr.bf16.mxu0 %v2751
    %2985 = vmatpush1.bf16.msra.mxu0 %v2750
    %2986 = vmatprep.subr.bf16.mxu0 %v2747
    %2987 = vmatpush1.bf16.msra.mxu0 %v2746
    %2988 = vmatprep.subr.bf16.mxu0 %v2743
    %2989 = vmatpush1.bf16.msra.mxu0 %v2742
    %2990 = vmatprep.subr.bf16.mxu0 %v2739
    %2991 = vmatpush1.bf16.msra.mxu0 %v2738
    %2992 = vmatprep.subr.bf16.mxu0 %v2735
    %2993 = vmatpush1.bf16.msra.mxu0 %v2734
    %2994 = vmatprep.subr.bf16.mxu0 %v2731
    %2995 = vmatpush1.bf16.msra.mxu0 %v2730
    %2996 = vmatprep.subr.bf16.mxu0 %v2727
    %2997 = vmatpush1.bf16.msra.mxu0 %v2726
    %2998 = vmatprep.subr.bf16.mxu0 %v2787
    %2999 = vmatpush2.bf16.msra.mxu0 %v2786
    %3000 = vmatprep.subr.bf16.mxu0 %v2783
    %3001 = vmatpush2.bf16.msra.mxu0 %v2782
    %3002 = vmatprep.subr.bf16.mxu0 %v2779
    %3003 = vmatpush2.bf16.msra.mxu0 %v2778
    %3004 = vmatprep.subr.bf16.mxu0 %v2775
    %3005 = vmatpush2.bf16.msra.mxu0 %v2774
    %3006 = vmatprep.subr.bf16.mxu0 %v2771
    %3007 = vmatpush2.bf16.msra.mxu0 %v2770
    %3008 = vmatprep.subr.bf16.mxu0 %v2767
    %3009 = vmatpush2.bf16.msra.mxu0 %v2766
    %3010 = vmatprep.subr.bf16.mxu0 %v2763
    %3011 = vmatpush2.bf16.msra.mxu0 %v2762
    %3012 = vmatprep.subr.bf16.mxu0 %v2759
    %3013 = vmatpush2.bf16.msra.mxu0 %v2758
    %3014 = vmatprep.mubr.bf16.mxu0 %v2189
    %3015 = vmatmul.mubr.bf16.gmra.mxu0 %v2188
    %v3016 = vpop.f32.mrf.mxu0
    %v3017 = vadd.f32 %v2325, %v3016
    %v3018 = vpop.f32.mrf.mxu0
    %v3019 = vadd.f32 %v2329, %v3018
    %v3020 = vpop.f32.mrf.mxu0
    %v3021 = vpop.f32.mrf.mxu0
    %3022 = vdwg.mxu0
    %3023 = vmatprep.subr.bf16.mxu0 %v2819
    %3024 = vmatpush1.bf16.msra.mxu0 %v2818
    %3025 = vmatprep.subr.bf16.mxu0 %v2815
    %3026 = vmatpush1.bf16.msra.mxu0 %v2814
    %3027 = vmatprep.subr.bf16.mxu0 %v2811
    %3028 = vmatpush1.bf16.msra.mxu0 %v2810
    %3029 = vmatprep.subr.bf16.mxu0 %v2807
    %3030 = vmatpush1.bf16.msra.mxu0 %v2806
    %3031 = vmatprep.subr.bf16.mxu0 %v2803
    %3032 = vmatpush1.bf16.msra.mxu0 %v2802
    %3033 = vmatprep.subr.bf16.mxu0 %v2799
    %3034 = vmatpush1.bf16.msra.mxu0 %v2798
    %3035 = vmatprep.subr.bf16.mxu0 %v2795
    %3036 = vmatpush1.bf16.msra.mxu0 %v2794
    %3037 = vmatprep.subr.bf16.mxu0 %v2791
    %3038 = vmatpush1.bf16.msra.mxu0 %v2790
    %3039 = vmatprep.subr.bf16.mxu0 %v2851
    %3040 = vmatpush2.bf16.msra.mxu0 %v2850
    %3041 = vmatprep.subr.bf16.mxu0 %v2847
    %3042 = vmatpush2.bf16.msra.mxu0 %v2846
    %3043 = vmatprep.subr.bf16.mxu0 %v2843
    %3044 = vmatpush2.bf16.msra.mxu0 %v2842
    %3045 = vmatprep.subr.bf16.mxu0 %v2839
    %3046 = vmatpush2.bf16.msra.mxu0 %v2838
    %3047 = vmatprep.subr.bf16.mxu0 %v2835
    %3048 = vmatpush2.bf16.msra.mxu0 %v2834
    %3049 = vmatprep.subr.bf16.mxu0 %v2831
    %3050 = vmatpush2.bf16.msra.mxu0 %v2830
    %3051 = vmatprep.subr.bf16.mxu0 %v2827
    %3052 = vmatpush2.bf16.msra.mxu0 %v2826
    %3053 = vmatprep.subr.bf16.mxu0 %v2823
    %3054 = vmatpush2.bf16.msra.mxu0 %v2822
    %3055 = vmatprep.mubr.bf16.mxu0 %v2191
    %3056 = vmatmul.mubr.bf16.gmra.mxu0 %v2190
    %v3057 = vpop.f32.mrf.mxu0
    %v3058 = vadd.f32 %v3017, %v3057
    %v3059 = vpop.f32.mrf.mxu0
    %v3060 = vadd.f32 %v3019, %v3059
    %v3061 = vpop.f32.mrf.mxu0
    %v3062 = vpop.f32.mrf.mxu0
    %3063 = vdwg.mxu0
    %3064 = vmatprep.subr.bf16.mxu0 %v2757
    %3065 = vmatpush1.bf16.msra.mxu0 %v2756
    %3066 = vmatprep.subr.bf16.mxu0 %v2753
    %3067 = vmatpush1.bf16.msra.mxu0 %v2752
    %3068 = vmatprep.subr.bf16.mxu0 %v2749
    %3069 = vmatpush1.bf16.msra.mxu0 %v2748
    %3070 = vmatprep.subr.bf16.mxu0 %v2745
    %3071 = vmatpush1.bf16.msra.mxu0 %v2744
    %3072 = vmatprep.subr.bf16.mxu0 %v2741
    %3073 = vmatpush1.bf16.msra.mxu0 %v2740
    %3074 = vmatprep.subr.bf16.mxu0 %v2737
    %3075 = vmatpush1.bf16.msra.mxu0 %v2736
    %3076 = vmatprep.subr.bf16.mxu0 %v2733
    %3077 = vmatpush1.bf16.msra.mxu0 %v2732
    %3078 = vmatprep.subr.bf16.mxu0 %v2729
    %3079 = vmatpush1.bf16.msra.mxu0 %v2728
    %3080 = vmatprep.subr.bf16.mxu0 %v2789
    %3081 = vmatpush2.bf16.msra.mxu0 %v2788
    %3082 = vmatprep.subr.bf16.mxu0 %v2785
    %3083 = vmatpush2.bf16.msra.mxu0 %v2784
    %3084 = vmatprep.subr.bf16.mxu0 %v2781
    %3085 = vmatpush2.bf16.msra.mxu0 %v2780
    %3086 = vmatprep.subr.bf16.mxu0 %v2777
    %3087 = vmatpush2.bf16.msra.mxu0 %v2776
    %3088 = vmatprep.subr.bf16.mxu0 %v2773
    %3089 = vmatpush2.bf16.msra.mxu0 %v2772
    %3090 = vmatprep.subr.bf16.mxu0 %v2769
    %3091 = vmatpush2.bf16.msra.mxu0 %v2768
    %3092 = vmatprep.subr.bf16.mxu0 %v2765
    %3093 = vmatpush2.bf16.msra.mxu0 %v2764
    %3094 = vmatprep.subr.bf16.mxu0 %v2761
    %3095 = vmatpush2.bf16.msra.mxu0 %v2760
    %3096 = vmatprep.mubr.bf16.mxu0 %v2189
    %3097 = vmatmul.mubr.bf16.gmra.mxu0 %v2188
    %v3098 = vpop.f32.mrf.mxu0
    %v3099 = vadd.f32 %v2333, %v3098
    %v3100 = vpop.f32.mrf.mxu0
    %v3101 = vadd.f32 %v2337, %v3100
    %v3102 = vpop.f32.mrf.mxu0
    %v3103 = vpop.f32.mrf.mxu0
    %3104 = vdwg.mxu0
    %3105 = vmatprep.subr.bf16.mxu0 %v2821
    %3106 = vmatpush1.bf16.msra.mxu0 %v2820
    %3107 = vmatprep.subr.bf16.mxu0 %v2817
    %3108 = vmatpush1.bf16.msra.mxu0 %v2816
    %3109 = vmatprep.subr.bf16.mxu0 %v2813
    %3110 = vmatpush1.bf16.msra.mxu0 %v2812
    %3111 = vmatprep.subr.bf16.mxu0 %v2809
    %3112 = vmatpush1.bf16.msra.mxu0 %v2808
    %3113 = vmatprep.subr.bf16.mxu0 %v2805
    %3114 = vmatpush1.bf16.msra.mxu0 %v2804
    %3115 = vmatprep.subr.bf16.mxu0 %v2801
    %3116 = vmatpush1.bf16.msra.mxu0 %v2800
    %3117 = vmatprep.subr.bf16.mxu0 %v2797
    %3118 = vmatpush1.bf16.msra.mxu0 %v2796
    %3119 = vmatprep.subr.bf16.mxu0 %v2793
    %3120 = vmatpush1.bf16.msra.mxu0 %v2792
    %3121 = vmatprep.subr.bf16.mxu0 %v2853
    %3122 = vmatpush2.bf16.msra.mxu0 %v2852
    %3123 = vmatprep.subr.bf16.mxu0 %v2849
    %3124 = vmatpush2.bf16.msra.mxu0 %v2848
    %3125 = vmatprep.subr.bf16.mxu0 %v2845
    %3126 = vmatpush2.bf16.msra.mxu0 %v2844
    %3127 = vmatprep.subr.bf16.mxu0 %v2841
    %3128 = vmatpush2.bf16.msra.mxu0 %v2840
    %3129 = vmatprep.subr.bf16.mxu0 %v2837
    %3130 = vmatpush2.bf16.msra.mxu0 %v2836
    %3131 = vmatprep.subr.bf16.mxu0 %v2833
    %3132 = vmatpush2.bf16.msra.mxu0 %v2832
    %3133 = vmatprep.subr.bf16.mxu0 %v2829
    %3134 = vmatpush2.bf16.msra.mxu0 %v2828
    %3135 = vmatprep.subr.bf16.mxu0 %v2825
    %3136 = vmatpush2.bf16.msra.mxu0 %v2824
    %3137 = vmatprep.mubr.bf16.mxu0 %v2191
    %3138 = vmatmul.mubr.bf16.gmra.mxu0 %v2190
    %v3139 = vpop.f32.mrf.mxu0
    %v3140 = vadd.f32 %v3099, %v3139
    %v3141 = vpop.f32.mrf.mxu0
    %v3142 = vadd.f32 %v3101, %v3141
    %v3143 = vpop.f32.mrf.mxu0
    %v3144 = vpop.f32.mrf.mxu0
    %3145 = vdwg.mxu0
    %vm3146 = vcmp.ge.f32.partialorder %v3058, 0.0
    %vm3147 = vcmp.ge.f32.partialorder %v3060, 0.0
    %vm3148 = vcmp.ge.f32.partialorder %v3140, 0.0
    %vm3149 = vcmp.ge.f32.partialorder %v3142, 0.0
    %v3150 = vmul.f32 %v3058, 0.01
    %v3151 = vmul.f32 %v3060, 0.01
    %v3152 = vmul.f32 %v3140, 0.01
    %v3153 = vmul.f32 %v3142, 0.01
    %v3154 = vsel %vm3146, %v3058, %v3150
    %v3155 = vsel %vm3147, %v3060, %v3151
    %v3156 = vsel %vm3148, %v3140, %v3152
    %v3157 = vsel %vm3149, %v3142, %v3153
    %v3158 = vpack.c.bf16 %v3154, %v3154
    %v3159 = vpack.c.bf16 %v3155, %v3155
    %v3160 = vpack.c.bf16 %v3156, %v3156
    %v3161 = vpack.c.bf16 %v3157, %v3157
    %v3162 = vld [vmem:[#allocation11] sm:$0xff]
    %v3163 = vld [vmem:[#allocation11 + $0x8] sm:$0xff]
    %v3164 = vld [vmem:[#allocation11 + $0x10] sm:$0xff]
    %v3165 = vld [vmem:[#allocation11 + $0x18] sm:$0xff]
    %v3166 = vld [vmem:[#allocation11 + $0x20] sm:$0xff]
    %v3167 = vld [vmem:[#allocation11 + $0x28] sm:$0xff]
    %v3168 = vld [vmem:[#allocation11 + $0x30] sm:$0xff]
    %v3169 = vld [vmem:[#allocation11 + $0x38] sm:$0xff]
    %v3170 = vld [vmem:[#allocation11 + $0x40] sm:$0xff]
    %v3171 = vld [vmem:[#allocation11 + $0x48] sm:$0xff]
    %v3172 = vld [vmem:[#allocation11 + $0x50] sm:$0xff]
    %v3173 = vld [vmem:[#allocation11 + $0x58] sm:$0xff]
    %v3174 = vld [vmem:[#allocation11 + $0x60] sm:$0xff]
    %v3175 = vld [vmem:[#allocation11 + $0x68] sm:$0xff]
    %v3176 = vld [vmem:[#allocation11 + $0x70] sm:$0xff]
    %v3177 = vld [vmem:[#allocation11 + $0x78] sm:$0xff]
    %v3178 = vld [vmem:[#allocation11 + $0x80] sm:$0xff]
    %v3179 = vld [vmem:[#allocation11 + $0x88] sm:$0xff]
    %v3180 = vld [vmem:[#allocation11 + $0x90] sm:$0xff]
    %v3181 = vld [vmem:[#allocation11 + $0x98] sm:$0xff]
    %v3182 = vld [vmem:[#allocation11 + $0xa0] sm:$0xff]
    %v3183 = vld [vmem:[#allocation11 + $0xa8] sm:$0xff]
    %v3184 = vld [vmem:[#allocation11 + $0xb0] sm:$0xff]
    %v3185 = vld [vmem:[#allocation11 + $0xb8] sm:$0xff]
    %v3186 = vld [vmem:[#allocation11 + $0xc0] sm:$0xff]
    %v3187 = vld [vmem:[#allocation11 + $0xc8] sm:$0xff]
    %v3188 = vld [vmem:[#allocation11 + $0xd0] sm:$0xff]
    %v3189 = vld [vmem:[#allocation11 + $0xd8] sm:$0xff]
    %v3190 = vld [vmem:[#allocation11 + $0xe0] sm:$0xff]
    %v3191 = vld [vmem:[#allocation11 + $0xe8] sm:$0xff]
    %v3192 = vld [vmem:[#allocation11 + $0xf0] sm:$0xff]
    %v3193 = vld [vmem:[#allocation11 + $0xf8] sm:$0xff]
    %v3194 = vld [vmem:[#allocation11 + $0x100] sm:$0xff]
    %v3195 = vld [vmem:[#allocation11 + $0x108] sm:$0xff]
    %v3196 = vld [vmem:[#allocation11 + $0x110] sm:$0xff]
    %v3197 = vld [vmem:[#allocation11 + $0x118] sm:$0xff]
    %v3198 = vld [vmem:[#allocation11 + $0x120] sm:$0xff]
    %v3199 = vld [vmem:[#allocation11 + $0x128] sm:$0xff]
    %v3200 = vld [vmem:[#allocation11 + $0x130] sm:$0xff]
    %v3201 = vld [vmem:[#allocation11 + $0x138] sm:$0xff]
    %v3202 = vld [vmem:[#allocation11 + $0x140] sm:$0xff]
    %v3203 = vld [vmem:[#allocation11 + $0x148] sm:$0xff]
    %v3204 = vld [vmem:[#allocation11 + $0x150] sm:$0xff]
    %v3205 = vld [vmem:[#allocation11 + $0x158] sm:$0xff]
    %v3206 = vld [vmem:[#allocation11 + $0x160] sm:$0xff]
    %v3207 = vld [vmem:[#allocation11 + $0x168] sm:$0xff]
    %v3208 = vld [vmem:[#allocation11 + $0x170] sm:$0xff]
    %v3209 = vld [vmem:[#allocation11 + $0x178] sm:$0xff]
    %v3210 = vld [vmem:[#allocation11 + $0x180] sm:$0xff]
    %v3211 = vld [vmem:[#allocation11 + $0x188] sm:$0xff]
    %v3212 = vld [vmem:[#allocation11 + $0x190] sm:$0xff]
    %v3213 = vld [vmem:[#allocation11 + $0x198] sm:$0xff]
    %v3214 = vld [vmem:[#allocation11 + $0x1a0] sm:$0xff]
    %v3215 = vld [vmem:[#allocation11 + $0x1a8] sm:$0xff]
    %v3216 = vld [vmem:[#allocation11 + $0x1b0] sm:$0xff]
    %v3217 = vld [vmem:[#allocation11 + $0x1b8] sm:$0xff]
    %v3218 = vld [vmem:[#allocation11 + $0x1c0] sm:$0xff]
    %v3219 = vld [vmem:[#allocation11 + $0x1c8] sm:$0xff]
    %v3220 = vld [vmem:[#allocation11 + $0x1d0] sm:$0xff]
    %v3221 = vld [vmem:[#allocation11 + $0x1d8] sm:$0xff]
    %v3222 = vld [vmem:[#allocation11 + $0x1e0] sm:$0xff]
    %v3223 = vld [vmem:[#allocation11 + $0x1e8] sm:$0xff]
    %v3224 = vld [vmem:[#allocation11 + $0x1f0] sm:$0xff]
    %v3225 = vld [vmem:[#allocation11 + $0x1f8] sm:$0xff]
    %v3226 = vld [vmem:[#allocation11 + $0x200] sm:$0xff]
    %v3227 = vld [vmem:[#allocation11 + $0x208] sm:$0xff]
    %v3228 = vld [vmem:[#allocation11 + $0x210] sm:$0xff]
    %v3229 = vld [vmem:[#allocation11 + $0x218] sm:$0xff]
    %v3230 = vld [vmem:[#allocation11 + $0x220] sm:$0xff]
    %v3231 = vld [vmem:[#allocation11 + $0x228] sm:$0xff]
    %v3232 = vld [vmem:[#allocation11 + $0x230] sm:$0xff]
    %v3233 = vld [vmem:[#allocation11 + $0x238] sm:$0xff]
    %v3234 = vld [vmem:[#allocation11 + $0x240] sm:$0xff]
    %v3235 = vld [vmem:[#allocation11 + $0x248] sm:$0xff]
    %v3236 = vld [vmem:[#allocation11 + $0x250] sm:$0xff]
    %v3237 = vld [vmem:[#allocation11 + $0x258] sm:$0xff]
    %v3238 = vld [vmem:[#allocation11 + $0x260] sm:$0xff]
    %v3239 = vld [vmem:[#allocation11 + $0x268] sm:$0xff]
    %v3240 = vld [vmem:[#allocation11 + $0x270] sm:$0xff]
    %v3241 = vld [vmem:[#allocation11 + $0x278] sm:$0xff]
    %v3242 = vld [vmem:[#allocation11 + $0x280] sm:$0xff]
    %v3243 = vld [vmem:[#allocation11 + $0x288] sm:$0xff]
    %v3244 = vld [vmem:[#allocation11 + $0x290] sm:$0xff]
    %v3245 = vld [vmem:[#allocation11 + $0x298] sm:$0xff]
    %v3246 = vld [vmem:[#allocation11 + $0x2a0] sm:$0xff]
    %v3247 = vld [vmem:[#allocation11 + $0x2a8] sm:$0xff]
    %v3248 = vld [vmem:[#allocation11 + $0x2b0] sm:$0xff]
    %v3249 = vld [vmem:[#allocation11 + $0x2b8] sm:$0xff]
    %v3250 = vld [vmem:[#allocation11 + $0x2c0] sm:$0xff]
    %v3251 = vld [vmem:[#allocation11 + $0x2c8] sm:$0xff]
    %v3252 = vld [vmem:[#allocation11 + $0x2d0] sm:$0xff]
    %v3253 = vld [vmem:[#allocation11 + $0x2d8] sm:$0xff]
    %v3254 = vld [vmem:[#allocation11 + $0x2e0] sm:$0xff]
    %v3255 = vld [vmem:[#allocation11 + $0x2e8] sm:$0xff]
    %v3256 = vld [vmem:[#allocation11 + $0x2f0] sm:$0xff]
    %v3257 = vld [vmem:[#allocation11 + $0x2f8] sm:$0xff]
    %v3258 = vld [vmem:[#allocation11 + $0x300] sm:$0xff]
    %v3259 = vld [vmem:[#allocation11 + $0x308] sm:$0xff]
    %v3260 = vld [vmem:[#allocation11 + $0x310] sm:$0xff]
    %v3261 = vld [vmem:[#allocation11 + $0x318] sm:$0xff]
    %v3262 = vld [vmem:[#allocation11 + $0x320] sm:$0xff]
    %v3263 = vld [vmem:[#allocation11 + $0x328] sm:$0xff]
    %v3264 = vld [vmem:[#allocation11 + $0x330] sm:$0xff]
    %v3265 = vld [vmem:[#allocation11 + $0x338] sm:$0xff]
    %v3266 = vld [vmem:[#allocation11 + $0x340] sm:$0xff]
    %v3267 = vld [vmem:[#allocation11 + $0x348] sm:$0xff]
    %v3268 = vld [vmem:[#allocation11 + $0x350] sm:$0xff]
    %v3269 = vld [vmem:[#allocation11 + $0x358] sm:$0xff]
    %v3270 = vld [vmem:[#allocation11 + $0x360] sm:$0xff]
    %v3271 = vld [vmem:[#allocation11 + $0x368] sm:$0xff]
    %v3272 = vld [vmem:[#allocation11 + $0x370] sm:$0xff]
    %v3273 = vld [vmem:[#allocation11 + $0x378] sm:$0xff]
    %v3274 = vld [vmem:[#allocation11 + $0x380] sm:$0xff]
    %v3275 = vld [vmem:[#allocation11 + $0x388] sm:$0xff]
    %v3276 = vld [vmem:[#allocation11 + $0x390] sm:$0xff]
    %v3277 = vld [vmem:[#allocation11 + $0x398] sm:$0xff]
    %v3278 = vld [vmem:[#allocation11 + $0x3a0] sm:$0xff]
    %v3279 = vld [vmem:[#allocation11 + $0x3a8] sm:$0xff]
    %v3280 = vld [vmem:[#allocation11 + $0x3b0] sm:$0xff]
    %v3281 = vld [vmem:[#allocation11 + $0x3b8] sm:$0xff]
    %v3282 = vld [vmem:[#allocation11 + $0x3c0] sm:$0xff]
    %v3283 = vld [vmem:[#allocation11 + $0x3c8] sm:$0xff]
    %v3284 = vld [vmem:[#allocation11 + $0x3d0] sm:$0xff]
    %v3285 = vld [vmem:[#allocation11 + $0x3d8] sm:$0xff]
    %v3286 = vld [vmem:[#allocation11 + $0x3e0] sm:$0xff]
    %v3287 = vld [vmem:[#allocation11 + $0x3e8] sm:$0xff]
    %v3288 = vld [vmem:[#allocation11 + $0x3f0] sm:$0xff]
    %v3289 = vld [vmem:[#allocation11 + $0x3f8] sm:$0xff]
    %v3290 = vld [vmem:[%s8] sm:$0xf]
    %v3292 = vlaneseq
    %v3293 = vshrl.u32 %v3292, 7
    %v3294 = vsub.s32 0, %v3293
    %v3295 = vrot.slane %v3290, %v3294
    %v3296 = vlaneseq
    %v3297 = vshrl.u32 %v3296, 7
    %v3298 = vsub.s32 1, %v3297
    %v3299 = vrot.slane %v3290, %v3298
    %v3300 = vlaneseq
    %v3301 = vshrl.u32 %v3300, 7
    %v3302 = vsub.s32 2, %v3301
    %v3303 = vrot.slane %v3290, %v3302
    %v3304 = vlaneseq
    %v3305 = vshrl.u32 %v3304, 7
    %v3306 = vsub.s32 3, %v3305
    %v3307 = vrot.slane %v3290, %v3306
    %v3440 = vunpack.c.l.b16 %v3162
    %v3441 = vunpack.c.h.b16 %v3162
    %v3442 = vunpack.c.l.b16 %v3163
    %v3443 = vunpack.c.h.b16 %v3163
    %v3444 = vunpack.c.l.b16 %v3164
    %v3445 = vunpack.c.h.b16 %v3164
    %v3446 = vunpack.c.l.b16 %v3165
    %v3447 = vunpack.c.h.b16 %v3165
    %v3448 = vunpack.c.l.b16 %v3166
    %v3449 = vunpack.c.h.b16 %v3166
    %v3450 = vunpack.c.l.b16 %v3167
    %v3451 = vunpack.c.h.b16 %v3167
    %v3452 = vunpack.c.l.b16 %v3168
    %v3453 = vunpack.c.h.b16 %v3168
    %v3454 = vunpack.c.l.b16 %v3169
    %v3455 = vunpack.c.h.b16 %v3169
    %v3456 = vunpack.c.l.b16 %v3170
    %v3457 = vunpack.c.h.b16 %v3170
    %v3458 = vunpack.c.l.b16 %v3171
    %v3459 = vunpack.c.h.b16 %v3171
    %v3460 = vunpack.c.l.b16 %v3172
    %v3461 = vunpack.c.h.b16 %v3172
    %v3462 = vunpack.c.l.b16 %v3173
    %v3463 = vunpack.c.h.b16 %v3173
    %v3464 = vunpack.c.l.b16 %v3174
    %v3465 = vunpack.c.h.b16 %v3174
    %v3466 = vunpack.c.l.b16 %v3175
    %v3467 = vunpack.c.h.b16 %v3175
    %v3468 = vunpack.c.l.b16 %v3176
    %v3469 = vunpack.c.h.b16 %v3176
    %v3470 = vunpack.c.l.b16 %v3177
    %v3471 = vunpack.c.h.b16 %v3177
    %v3472 = vunpack.c.l.b16 %v3178
    %v3473 = vunpack.c.h.b16 %v3178
    %v3474 = vunpack.c.l.b16 %v3179
    %v3475 = vunpack.c.h.b16 %v3179
    %v3476 = vunpack.c.l.b16 %v3180
    %v3477 = vunpack.c.h.b16 %v3180
    %v3478 = vunpack.c.l.b16 %v3181
    %v3479 = vunpack.c.h.b16 %v3181
    %v3480 = vunpack.c.l.b16 %v3182
    %v3481 = vunpack.c.h.b16 %v3182
    %v3482 = vunpack.c.l.b16 %v3183
    %v3483 = vunpack.c.h.b16 %v3183
    %v3484 = vunpack.c.l.b16 %v3184
    %v3485 = vunpack.c.h.b16 %v3184
    %v3486 = vunpack.c.l.b16 %v3185
    %v3487 = vunpack.c.h.b16 %v3185
    %v3488 = vunpack.c.l.b16 %v3186
    %v3489 = vunpack.c.h.b16 %v3186
    %v3490 = vunpack.c.l.b16 %v3187
    %v3491 = vunpack.c.h.b16 %v3187
    %v3492 = vunpack.c.l.b16 %v3188
    %v3493 = vunpack.c.h.b16 %v3188
    %v3494 = vunpack.c.l.b16 %v3189
    %v3495 = vunpack.c.h.b16 %v3189
    %v3496 = vunpack.c.l.b16 %v3190
    %v3497 = vunpack.c.h.b16 %v3190
    %v3498 = vunpack.c.l.b16 %v3191
    %v3499 = vunpack.c.h.b16 %v3191
    %v3500 = vunpack.c.l.b16 %v3192
    %v3501 = vunpack.c.h.b16 %v3192
    %v3502 = vunpack.c.l.b16 %v3193
    %v3503 = vunpack.c.h.b16 %v3193
    %v3504 = vunpack.c.l.b16 %v3194
    %v3505 = vunpack.c.h.b16 %v3194
    %v3506 = vunpack.c.l.b16 %v3195
    %v3507 = vunpack.c.h.b16 %v3195
    %v3508 = vunpack.c.l.b16 %v3196
    %v3509 = vunpack.c.h.b16 %v3196
    %v3510 = vunpack.c.l.b16 %v3197
    %v3511 = vunpack.c.h.b16 %v3197
    %v3512 = vunpack.c.l.b16 %v3198
    %v3513 = vunpack.c.h.b16 %v3198
    %v3514 = vunpack.c.l.b16 %v3199
    %v3515 = vunpack.c.h.b16 %v3199
    %v3516 = vunpack.c.l.b16 %v3200
    %v3517 = vunpack.c.h.b16 %v3200
    %v3518 = vunpack.c.l.b16 %v3201
    %v3519 = vunpack.c.h.b16 %v3201
    %v3520 = vunpack.c.l.b16 %v3202
    %v3521 = vunpack.c.h.b16 %v3202
    %v3522 = vunpack.c.l.b16 %v3203
    %v3523 = vunpack.c.h.b16 %v3203
    %v3524 = vunpack.c.l.b16 %v3204
    %v3525 = vunpack.c.h.b16 %v3204
    %v3526 = vunpack.c.l.b16 %v3205
    %v3527 = vunpack.c.h.b16 %v3205
    %v3528 = vunpack.c.l.b16 %v3206
    %v3529 = vunpack.c.h.b16 %v3206
    %v3530 = vunpack.c.l.b16 %v3207
    %v3531 = vunpack.c.h.b16 %v3207
    %v3532 = vunpack.c.l.b16 %v3208
    %v3533 = vunpack.c.h.b16 %v3208
    %v3534 = vunpack.c.l.b16 %v3209
    %v3535 = vunpack.c.h.b16 %v3209
    %v3536 = vunpack.c.l.b16 %v3210
    %v3537 = vunpack.c.h.b16 %v3210
    %v3538 = vunpack.c.l.b16 %v3211
    %v3539 = vunpack.c.h.b16 %v3211
    %v3540 = vunpack.c.l.b16 %v3212
    %v3541 = vunpack.c.h.b16 %v3212
    %v3542 = vunpack.c.l.b16 %v3213
    %v3543 = vunpack.c.h.b16 %v3213
    %v3544 = vunpack.c.l.b16 %v3214
    %v3545 = vunpack.c.h.b16 %v3214
    %v3546 = vunpack.c.l.b16 %v3215
    %v3547 = vunpack.c.h.b16 %v3215
    %v3548 = vunpack.c.l.b16 %v3216
    %v3549 = vunpack.c.h.b16 %v3216
    %v3550 = vunpack.c.l.b16 %v3217
    %v3551 = vunpack.c.h.b16 %v3217
    %v3552 = vunpack.c.l.b16 %v3218
    %v3553 = vunpack.c.h.b16 %v3218
    %v3554 = vunpack.c.l.b16 %v3219
    %v3555 = vunpack.c.h.b16 %v3219
    %v3556 = vunpack.c.l.b16 %v3220
    %v3557 = vunpack.c.h.b16 %v3220
    %v3558 = vunpack.c.l.b16 %v3221
    %v3559 = vunpack.c.h.b16 %v3221
    %v3560 = vunpack.c.l.b16 %v3222
    %v3561 = vunpack.c.h.b16 %v3222
    %v3562 = vunpack.c.l.b16 %v3223
    %v3563 = vunpack.c.h.b16 %v3223
    %v3564 = vunpack.c.l.b16 %v3224
    %v3565 = vunpack.c.h.b16 %v3224
    %v3566 = vunpack.c.l.b16 %v3225
    %v3567 = vunpack.c.h.b16 %v3225
    %v3568 = vunpack.c.l.b16 %v3226
    %v3569 = vunpack.c.h.b16 %v3226
    %v3570 = vunpack.c.l.b16 %v3227
    %v3571 = vunpack.c.h.b16 %v3227
    %v3572 = vunpack.c.l.b16 %v3228
    %v3573 = vunpack.c.h.b16 %v3228
    %v3574 = vunpack.c.l.b16 %v3229
    %v3575 = vunpack.c.h.b16 %v3229
    %v3576 = vunpack.c.l.b16 %v3230
    %v3577 = vunpack.c.h.b16 %v3230
    %v3578 = vunpack.c.l.b16 %v3231
    %v3579 = vunpack.c.h.b16 %v3231
    %v3580 = vunpack.c.l.b16 %v3232
    %v3581 = vunpack.c.h.b16 %v3232
    %v3582 = vunpack.c.l.b16 %v3233
    %v3583 = vunpack.c.h.b16 %v3233
    %v3584 = vunpack.c.l.b16 %v3234
    %v3585 = vunpack.c.h.b16 %v3234
    %v3586 = vunpack.c.l.b16 %v3235
    %v3587 = vunpack.c.h.b16 %v3235
    %v3588 = vunpack.c.l.b16 %v3236
    %v3589 = vunpack.c.h.b16 %v3236
    %v3590 = vunpack.c.l.b16 %v3237
    %v3591 = vunpack.c.h.b16 %v3237
    %v3592 = vunpack.c.l.b16 %v3238
    %v3593 = vunpack.c.h.b16 %v3238
    %v3594 = vunpack.c.l.b16 %v3239
    %v3595 = vunpack.c.h.b16 %v3239
    %v3596 = vunpack.c.l.b16 %v3240
    %v3597 = vunpack.c.h.b16 %v3240
    %v3598 = vunpack.c.l.b16 %v3241
    %v3599 = vunpack.c.h.b16 %v3241
    %v3600 = vunpack.c.l.b16 %v3242
    %v3601 = vunpack.c.h.b16 %v3242
    %v3602 = vunpack.c.l.b16 %v3243
    %v3603 = vunpack.c.h.b16 %v3243
    %v3604 = vunpack.c.l.b16 %v3244
    %v3605 = vunpack.c.h.b16 %v3244
    %v3606 = vunpack.c.l.b16 %v3245
    %v3607 = vunpack.c.h.b16 %v3245
    %v3608 = vunpack.c.l.b16 %v3246
    %v3609 = vunpack.c.h.b16 %v3246
    %v3610 = vunpack.c.l.b16 %v3247
    %v3611 = vunpack.c.h.b16 %v3247
    %v3612 = vunpack.c.l.b16 %v3248
    %v3613 = vunpack.c.h.b16 %v3248
    %v3614 = vunpack.c.l.b16 %v3249
    %v3615 = vunpack.c.h.b16 %v3249
    %v3616 = vunpack.c.l.b16 %v3250
    %v3617 = vunpack.c.h.b16 %v3250
    %v3618 = vunpack.c.l.b16 %v3251
    %v3619 = vunpack.c.h.b16 %v3251
    %v3620 = vunpack.c.l.b16 %v3252
    %v3621 = vunpack.c.h.b16 %v3252
    %v3622 = vunpack.c.l.b16 %v3253
    %v3623 = vunpack.c.h.b16 %v3253
    %v3624 = vunpack.c.l.b16 %v3254
    %v3625 = vunpack.c.h.b16 %v3254
    %v3626 = vunpack.c.l.b16 %v3255
    %v3627 = vunpack.c.h.b16 %v3255
    %v3628 = vunpack.c.l.b16 %v3256
    %v3629 = vunpack.c.h.b16 %v3256
    %v3630 = vunpack.c.l.b16 %v3257
    %v3631 = vunpack.c.h.b16 %v3257
    %v3632 = vunpack.c.l.b16 %v3258
    %v3633 = vunpack.c.h.b16 %v3258
    %v3634 = vunpack.c.l.b16 %v3259
    %v3635 = vunpack.c.h.b16 %v3259
    %v3636 = vunpack.c.l.b16 %v3260
    %v3637 = vunpack.c.h.b16 %v3260
    %v3638 = vunpack.c.l.b16 %v3261
    %v3639 = vunpack.c.h.b16 %v3261
    %v3640 = vunpack.c.l.b16 %v3262
    %v3641 = vunpack.c.h.b16 %v3262
    %v3642 = vunpack.c.l.b16 %v3263
    %v3643 = vunpack.c.h.b16 %v3263
    %v3644 = vunpack.c.l.b16 %v3264
    %v3645 = vunpack.c.h.b16 %v3264
    %v3646 = vunpack.c.l.b16 %v3265
    %v3647 = vunpack.c.h.b16 %v3265
    %v3648 = vunpack.c.l.b16 %v3266
    %v3649 = vunpack.c.h.b16 %v3266
    %v3650 = vunpack.c.l.b16 %v3267
    %v3651 = vunpack.c.h.b16 %v3267
    %v3652 = vunpack.c.l.b16 %v3268
    %v3653 = vunpack.c.h.b16 %v3268
    %v3654 = vunpack.c.l.b16 %v3269
    %v3655 = vunpack.c.h.b16 %v3269
    %v3656 = vunpack.c.l.b16 %v3270
    %v3657 = vunpack.c.h.b16 %v3270
    %v3658 = vunpack.c.l.b16 %v3271
    %v3659 = vunpack.c.h.b16 %v3271
    %v3660 = vunpack.c.l.b16 %v3272
    %v3661 = vunpack.c.h.b16 %v3272
    %v3662 = vunpack.c.l.b16 %v3273
    %v3663 = vunpack.c.h.b16 %v3273
    %v3664 = vunpack.c.l.b16 %v3274
    %v3665 = vunpack.c.h.b16 %v3274
    %v3666 = vunpack.c.l.b16 %v3275
    %v3667 = vunpack.c.h.b16 %v3275
    %v3668 = vunpack.c.l.b16 %v3276
    %v3669 = vunpack.c.h.b16 %v3276
    %v3670 = vunpack.c.l.b16 %v3277
    %v3671 = vunpack.c.h.b16 %v3277
    %v3672 = vunpack.c.l.b16 %v3278
    %v3673 = vunpack.c.h.b16 %v3278
    %v3674 = vunpack.c.l.b16 %v3279
    %v3675 = vunpack.c.h.b16 %v3279
    %v3676 = vunpack.c.l.b16 %v3280
    %v3677 = vunpack.c.h.b16 %v3280
    %v3678 = vunpack.c.l.b16 %v3281
    %v3679 = vunpack.c.h.b16 %v3281
    %v3680 = vunpack.c.l.b16 %v3282
    %v3681 = vunpack.c.h.b16 %v3282
    %v3682 = vunpack.c.l.b16 %v3283
    %v3683 = vunpack.c.h.b16 %v3283
    %v3684 = vunpack.c.l.b16 %v3284
    %v3685 = vunpack.c.h.b16 %v3284
    %v3686 = vunpack.c.l.b16 %v3285
    %v3687 = vunpack.c.h.b16 %v3285
    %v3688 = vunpack.c.l.b16 %v3286
    %v3689 = vunpack.c.h.b16 %v3286
    %v3690 = vunpack.c.l.b16 %v3287
    %v3691 = vunpack.c.h.b16 %v3287
    %v3692 = vunpack.c.l.b16 %v3288
    %v3693 = vunpack.c.h.b16 %v3288
    %v3694 = vunpack.c.l.b16 %v3289
    %v3695 = vunpack.c.h.b16 %v3289
    %v3696 = vpack.c.b16 %v3444, %v3440
    %v3697 = vpack.c.b16 %v3445, %v3441
    %v3698 = vpack.c.b16 %v3446, %v3442
    %v3699 = vpack.c.b16 %v3447, %v3443
    %v3700 = vpack.c.b16 %v3452, %v3448
    %v3701 = vpack.c.b16 %v3453, %v3449
    %v3702 = vpack.c.b16 %v3454, %v3450
    %v3703 = vpack.c.b16 %v3455, %v3451
    %v3704 = vpack.c.b16 %v3460, %v3456
    %v3705 = vpack.c.b16 %v3461, %v3457
    %v3706 = vpack.c.b16 %v3462, %v3458
    %v3707 = vpack.c.b16 %v3463, %v3459
    %v3708 = vpack.c.b16 %v3468, %v3464
    %v3709 = vpack.c.b16 %v3469, %v3465
    %v3710 = vpack.c.b16 %v3470, %v3466
    %v3711 = vpack.c.b16 %v3471, %v3467
    %v3712 = vpack.c.b16 %v3476, %v3472
    %v3713 = vpack.c.b16 %v3477, %v3473
    %v3714 = vpack.c.b16 %v3478, %v3474
    %v3715 = vpack.c.b16 %v3479, %v3475
    %v3716 = vpack.c.b16 %v3484, %v3480
    %v3717 = vpack.c.b16 %v3485, %v3481
    %v3718 = vpack.c.b16 %v3486, %v3482
    %v3719 = vpack.c.b16 %v3487, %v3483
    %v3720 = vpack.c.b16 %v3492, %v3488
    %v3721 = vpack.c.b16 %v3493, %v3489
    %v3722 = vpack.c.b16 %v3494, %v3490
    %v3723 = vpack.c.b16 %v3495, %v3491
    %v3724 = vpack.c.b16 %v3500, %v3496
    %v3725 = vpack.c.b16 %v3501, %v3497
    %v3726 = vpack.c.b16 %v3502, %v3498
    %v3727 = vpack.c.b16 %v3503, %v3499
    %v3728 = vpack.c.b16 %v3508, %v3504
    %v3729 = vpack.c.b16 %v3509, %v3505
    %v3730 = vpack.c.b16 %v3510, %v3506
    %v3731 = vpack.c.b16 %v3511, %v3507
    %v3732 = vpack.c.b16 %v3516, %v3512
    %v3733 = vpack.c.b16 %v3517, %v3513
    %v3734 = vpack.c.b16 %v3518, %v3514
    %v3735 = vpack.c.b16 %v3519, %v3515
    %v3736 = vpack.c.b16 %v3524, %v3520
    %v3737 = vpack.c.b16 %v3525, %v3521
    %v3738 = vpack.c.b16 %v3526, %v3522
    %v3739 = vpack.c.b16 %v3527, %v3523
    %v3740 = vpack.c.b16 %v3532, %v3528
    %v3741 = vpack.c.b16 %v3533, %v3529
    %v3742 = vpack.c.b16 %v3534, %v3530
    %v3743 = vpack.c.b16 %v3535, %v3531
    %v3744 = vpack.c.b16 %v3540, %v3536
    %v3745 = vpack.c.b16 %v3541, %v3537
    %v3746 = vpack.c.b16 %v3542, %v3538
    %v3747 = vpack.c.b16 %v3543, %v3539
    %v3748 = vpack.c.b16 %v3548, %v3544
    %v3749 = vpack.c.b16 %v3549, %v3545
    %v3750 = vpack.c.b16 %v3550, %v3546
    %v3751 = vpack.c.b16 %v3551, %v3547
    %v3752 = vpack.c.b16 %v3556, %v3552
    %v3753 = vpack.c.b16 %v3557, %v3553
    %v3754 = vpack.c.b16 %v3558, %v3554
    %v3755 = vpack.c.b16 %v3559, %v3555
    %v3756 = vpack.c.b16 %v3564, %v3560
    %v3757 = vpack.c.b16 %v3565, %v3561
    %v3758 = vpack.c.b16 %v3566, %v3562
    %v3759 = vpack.c.b16 %v3567, %v3563
    %v3760 = vpack.c.b16 %v3572, %v3568
    %v3761 = vpack.c.b16 %v3573, %v3569
    %v3762 = vpack.c.b16 %v3574, %v3570
    %v3763 = vpack.c.b16 %v3575, %v3571
    %v3764 = vpack.c.b16 %v3580, %v3576
    %v3765 = vpack.c.b16 %v3581, %v3577
    %v3766 = vpack.c.b16 %v3582, %v3578
    %v3767 = vpack.c.b16 %v3583, %v3579
    %v3768 = vpack.c.b16 %v3588, %v3584
    %v3769 = vpack.c.b16 %v3589, %v3585
    %v3770 = vpack.c.b16 %v3590, %v3586
    %v3771 = vpack.c.b16 %v3591, %v3587
    %v3772 = vpack.c.b16 %v3596, %v3592
    %v3773 = vpack.c.b16 %v3597, %v3593
    %v3774 = vpack.c.b16 %v3598, %v3594
    %v3775 = vpack.c.b16 %v3599, %v3595
    %v3776 = vpack.c.b16 %v3604, %v3600
    %v3777 = vpack.c.b16 %v3605, %v3601
    %v3778 = vpack.c.b16 %v3606, %v3602
    %v3779 = vpack.c.b16 %v3607, %v3603
    %v3780 = vpack.c.b16 %v3612, %v3608
    %v3781 = vpack.c.b16 %v3613, %v3609
    %v3782 = vpack.c.b16 %v3614, %v3610
    %v3783 = vpack.c.b16 %v3615, %v3611
    %v3784 = vpack.c.b16 %v3620, %v3616
    %v3785 = vpack.c.b16 %v3621, %v3617
    %v3786 = vpack.c.b16 %v3622, %v3618
    %v3787 = vpack.c.b16 %v3623, %v3619
    %v3788 = vpack.c.b16 %v3628, %v3624
    %v3789 = vpack.c.b16 %v3629, %v3625
    %v3790 = vpack.c.b16 %v3630, %v3626
    %v3791 = vpack.c.b16 %v3631, %v3627
    %v3792 = vpack.c.b16 %v3636, %v3632
    %v3793 = vpack.c.b16 %v3637, %v3633
    %v3794 = vpack.c.b16 %v3638, %v3634
    %v3795 = vpack.c.b16 %v3639, %v3635
    %v3796 = vpack.c.b16 %v3644, %v3640
    %v3797 = vpack.c.b16 %v3645, %v3641
    %v3798 = vpack.c.b16 %v3646, %v3642
    %v3799 = vpack.c.b16 %v3647, %v3643
    %v3800 = vpack.c.b16 %v3652, %v3648
    %v3801 = vpack.c.b16 %v3653, %v3649
    %v3802 = vpack.c.b16 %v3654, %v3650
    %v3803 = vpack.c.b16 %v3655, %v3651
    %v3804 = vpack.c.b16 %v3660, %v3656
    %v3805 = vpack.c.b16 %v3661, %v3657
    %v3806 = vpack.c.b16 %v3662, %v3658
    %v3807 = vpack.c.b16 %v3663, %v3659
    %v3808 = vpack.c.b16 %v3668, %v3664
    %v3809 = vpack.c.b16 %v3669, %v3665
    %v3810 = vpack.c.b16 %v3670, %v3666
    %v3811 = vpack.c.b16 %v3671, %v3667
    %v3812 = vpack.c.b16 %v3676, %v3672
    %v3813 = vpack.c.b16 %v3677, %v3673
    %v3814 = vpack.c.b16 %v3678, %v3674
    %v3815 = vpack.c.b16 %v3679, %v3675
    %v3816 = vpack.c.b16 %v3684, %v3680
    %v3817 = vpack.c.b16 %v3685, %v3681
    %v3818 = vpack.c.b16 %v3686, %v3682
    %v3819 = vpack.c.b16 %v3687, %v3683
    %v3820 = vpack.c.b16 %v3692, %v3688
    %v3821 = vpack.c.b16 %v3693, %v3689
    %v3822 = vpack.c.b16 %v3694, %v3690
    %v3823 = vpack.c.b16 %v3695, %v3691
    %3952 = vmatprep.subr.bf16.mxu0 %v3725
    %3953 = vmatpush1.bf16.msra.mxu0 %v3724
    %3954 = vmatprep.subr.bf16.mxu0 %v3721
    %3955 = vmatpush1.bf16.msra.mxu0 %v3720
    %3956 = vmatprep.subr.bf16.mxu0 %v3717
    %3957 = vmatpush1.bf16.msra.mxu0 %v3716
    %3958 = vmatprep.subr.bf16.mxu0 %v3713
    %3959 = vmatpush1.bf16.msra.mxu0 %v3712
    %3960 = vmatprep.subr.bf16.mxu0 %v3709
    %3961 = vmatpush1.bf16.msra.mxu0 %v3708
    %3962 = vmatprep.subr.bf16.mxu0 %v3705
    %3963 = vmatpush1.bf16.msra.mxu0 %v3704
    %3964 = vmatprep.subr.bf16.mxu0 %v3701
    %3965 = vmatpush1.bf16.msra.mxu0 %v3700
    %3966 = vmatprep.subr.bf16.mxu0 %v3697
    %3967 = vmatpush1.bf16.msra.mxu0 %v3696
    %3968 = vmatprep.subr.bf16.mxu0 %v3757
    %3969 = vmatpush2.bf16.msra.mxu0 %v3756
    %3970 = vmatprep.subr.bf16.mxu0 %v3753
    %3971 = vmatpush2.bf16.msra.mxu0 %v3752
    %3972 = vmatprep.subr.bf16.mxu0 %v3749
    %3973 = vmatpush2.bf16.msra.mxu0 %v3748
    %3974 = vmatprep.subr.bf16.mxu0 %v3745
    %3975 = vmatpush2.bf16.msra.mxu0 %v3744
    %3976 = vmatprep.subr.bf16.mxu0 %v3741
    %3977 = vmatpush2.bf16.msra.mxu0 %v3740
    %3978 = vmatprep.subr.bf16.mxu0 %v3737
    %3979 = vmatpush2.bf16.msra.mxu0 %v3736
    %3980 = vmatprep.subr.bf16.mxu0 %v3733
    %3981 = vmatpush2.bf16.msra.mxu0 %v3732
    %3982 = vmatprep.subr.bf16.mxu0 %v3729
    %3983 = vmatpush2.bf16.msra.mxu0 %v3728
    %3984 = vmatprep.mubr.bf16.mxu0 %v3159
    %3985 = vmatmul.mubr.bf16.gmra.mxu0 %v3158
    %v3986 = vpop.f32.mrf.mxu0
    %v3987 = vadd.f32 %v3295, %v3986
    %v3988 = vpop.f32.mrf.mxu0
    %v3989 = vadd.f32 %v3299, %v3988
    %v3990 = vpop.f32.mrf.mxu0
    %v3991 = vpop.f32.mrf.mxu0
    %3992 = vdwg.mxu0
    %3993 = vmatprep.subr.bf16.mxu0 %v3789
    %3994 = vmatpush1.bf16.msra.mxu0 %v3788
    %3995 = vmatprep.subr.bf16.mxu0 %v3785
    %3996 = vmatpush1.bf16.msra.mxu0 %v3784
    %3997 = vmatprep.subr.bf16.mxu0 %v3781
    %3998 = vmatpush1.bf16.msra.mxu0 %v3780
    %3999 = vmatprep.subr.bf16.mxu0 %v3777
    %4000 = vmatpush1.bf16.msra.mxu0 %v3776
    %4001 = vmatprep.subr.bf16.mxu0 %v3773
    %4002 = vmatpush1.bf16.msra.mxu0 %v3772
    %4003 = vmatprep.subr.bf16.mxu0 %v3769
    %4004 = vmatpush1.bf16.msra.mxu0 %v3768
    %4005 = vmatprep.subr.bf16.mxu0 %v3765
    %4006 = vmatpush1.bf16.msra.mxu0 %v3764
    %4007 = vmatprep.subr.bf16.mxu0 %v3761
    %4008 = vmatpush1.bf16.msra.mxu0 %v3760
    %4009 = vmatprep.subr.bf16.mxu0 %v3821
    %4010 = vmatpush2.bf16.msra.mxu0 %v3820
    %4011 = vmatprep.subr.bf16.mxu0 %v3817
    %4012 = vmatpush2.bf16.msra.mxu0 %v3816
    %4013 = vmatprep.subr.bf16.mxu0 %v3813
    %4014 = vmatpush2.bf16.msra.mxu0 %v3812
    %4015 = vmatprep.subr.bf16.mxu0 %v3809
    %4016 = vmatpush2.bf16.msra.mxu0 %v3808
    %4017 = vmatprep.subr.bf16.mxu0 %v3805
    %4018 = vmatpush2.bf16.msra.mxu0 %v3804
    %4019 = vmatprep.subr.bf16.mxu0 %v3801
    %4020 = vmatpush2.bf16.msra.mxu0 %v3800
    %4021 = vmatprep.subr.bf16.mxu0 %v3797
    %4022 = vmatpush2.bf16.msra.mxu0 %v3796
    %4023 = vmatprep.subr.bf16.mxu0 %v3793
    %4024 = vmatpush2.bf16.msra.mxu0 %v3792
    %4025 = vmatprep.mubr.bf16.mxu0 %v3161
    %4026 = vmatmul.mubr.bf16.gmra.mxu0 %v3160
    %v4027 = vpop.f32.mrf.mxu0
    %v4028 = vadd.f32 %v3987, %v4027
    %v4029 = vpop.f32.mrf.mxu0
    %v4030 = vadd.f32 %v3989, %v4029
    %v4031 = vpop.f32.mrf.mxu0
    %v4032 = vpop.f32.mrf.mxu0
    %4033 = vdwg.mxu0
    %4034 = vmatprep.subr.bf16.mxu0 %v3727
    %4035 = vmatpush1.bf16.msra.mxu0 %v3726
    %4036 = vmatprep.subr.bf16.mxu0 %v3723
    %4037 = vmatpush1.bf16.msra.mxu0 %v3722
    %4038 = vmatprep.subr.bf16.mxu0 %v3719
    %4039 = vmatpush1.bf16.msra.mxu0 %v3718
    %4040 = vmatprep.subr.bf16.mxu0 %v3715
    %4041 = vmatpush1.bf16.msra.mxu0 %v3714
    %4042 = vmatprep.subr.bf16.mxu0 %v3711
    %4043 = vmatpush1.bf16.msra.mxu0 %v3710
    %4044 = vmatprep.subr.bf16.mxu0 %v3707
    %4045 = vmatpush1.bf16.msra.mxu0 %v3706
    %4046 = vmatprep.subr.bf16.mxu0 %v3703
    %4047 = vmatpush1.bf16.msra.mxu0 %v3702
    %4048 = vmatprep.subr.bf16.mxu0 %v3699
    %4049 = vmatpush1.bf16.msra.mxu0 %v3698
    %4050 = vmatprep.subr.bf16.mxu0 %v3759
    %4051 = vmatpush2.bf16.msra.mxu0 %v3758
    %4052 = vmatprep.subr.bf16.mxu0 %v3755
    %4053 = vmatpush2.bf16.msra.mxu0 %v3754
    %4054 = vmatprep.subr.bf16.mxu0 %v3751
    %4055 = vmatpush2.bf16.msra.mxu0 %v3750
    %4056 = vmatprep.subr.bf16.mxu0 %v3747
    %4057 = vmatpush2.bf16.msra.mxu0 %v3746
    %4058 = vmatprep.subr.bf16.mxu0 %v3743
    %4059 = vmatpush2.bf16.msra.mxu0 %v3742
    %4060 = vmatprep.subr.bf16.mxu0 %v3739
    %4061 = vmatpush2.bf16.msra.mxu0 %v3738
    %4062 = vmatprep.subr.bf16.mxu0 %v3735
    %4063 = vmatpush2.bf16.msra.mxu0 %v3734
    %4064 = vmatprep.subr.bf16.mxu0 %v3731
    %4065 = vmatpush2.bf16.msra.mxu0 %v3730
    %4066 = vmatprep.mubr.bf16.mxu0 %v3159
    %4067 = vmatmul.mubr.bf16.gmra.mxu0 %v3158
    %v4068 = vpop.f32.mrf.mxu0
    %v4069 = vadd.f32 %v3303, %v4068
    %v4070 = vpop.f32.mrf.mxu0
    %v4071 = vadd.f32 %v3307, %v4070
    %v4072 = vpop.f32.mrf.mxu0
    %v4073 = vpop.f32.mrf.mxu0
    %4074 = vdwg.mxu0
    %4075 = vmatprep.subr.bf16.mxu0 %v3791
    %4076 = vmatpush1.bf16.msra.mxu0 %v3790
    %4077 = vmatprep.subr.bf16.mxu0 %v3787
    %4078 = vmatpush1.bf16.msra.mxu0 %v3786
    %4079 = vmatprep.subr.bf16.mxu0 %v3783
    %4080 = vmatpush1.bf16.msra.mxu0 %v3782
    %4081 = vmatprep.subr.bf16.mxu0 %v3779
    %4082 = vmatpush1.bf16.msra.mxu0 %v3778
    %4083 = vmatprep.subr.bf16.mxu0 %v3775
    %4084 = vmatpush1.bf16.msra.mxu0 %v3774
    %4085 = vmatprep.subr.bf16.mxu0 %v3771
    %4086 = vmatpush1.bf16.msra.mxu0 %v3770
    %4087 = vmatprep.subr.bf16.mxu0 %v3767
    %4088 = vmatpush1.bf16.msra.mxu0 %v3766
    %4089 = vmatprep.subr.bf16.mxu0 %v3763
    %4090 = vmatpush1.bf16.msra.mxu0 %v3762
    %4091 = vmatprep.subr.bf16.mxu0 %v3823
    %4092 = vmatpush2.bf16.msra.mxu0 %v3822
    %4093 = vmatprep.subr.bf16.mxu0 %v3819
    %4094 = vmatpush2.bf16.msra.mxu0 %v3818
    %4095 = vmatprep.subr.bf16.mxu0 %v3815
    %4096 = vmatpush2.bf16.msra.mxu0 %v3814
    %4097 = vmatprep.subr.bf16.mxu0 %v3811
    %4098 = vmatpush2.bf16.msra.mxu0 %v3810
    %4099 = vmatprep.subr.bf16.mxu0 %v3807
    %4100 = vmatpush2.bf16.msra.mxu0 %v3806
    %4101 = vmatprep.subr.bf16.mxu0 %v3803
    %4102 = vmatpush2.bf16.msra.mxu0 %v3802
    %4103 = vmatprep.subr.bf16.mxu0 %v3799
    %4104 = vmatpush2.bf16.msra.mxu0 %v3798
    %4105 = vmatprep.subr.bf16.mxu0 %v3795
    %4106 = vmatpush2.bf16.msra.mxu0 %v3794
    %4107 = vmatprep.mubr.bf16.mxu0 %v3161
    %4108 = vmatmul.mubr.bf16.gmra.mxu0 %v3160
    %v4109 = vpop.f32.mrf.mxu0
    %v4110 = vadd.f32 %v4069, %v4109
    %v4111 = vpop.f32.mrf.mxu0
    %v4112 = vadd.f32 %v4071, %v4111
    %v4113 = vpop.f32.mrf.mxu0
    %v4114 = vpop.f32.mrf.mxu0
    %4115 = vdwg.mxu0
    %vm4116 = vcmp.ge.f32.partialorder %v4028, 0.0
    %vm4117 = vcmp.ge.f32.partialorder %v4030, 0.0
    %vm4118 = vcmp.ge.f32.partialorder %v4110, 0.0
    %vm4119 = vcmp.ge.f32.partialorder %v4112, 0.0
    %v4120 = vmul.f32 %v4028, 0.01
    %v4121 = vmul.f32 %v4030, 0.01
    %v4122 = vmul.f32 %v4110, 0.01
    %v4123 = vmul.f32 %v4112, 0.01
    %v4124 = vsel %vm4116, %v4028, %v4120
    %v4125 = vsel %vm4117, %v4030, %v4121
    %v4126 = vsel %vm4118, %v4110, %v4122
    %v4127 = vsel %vm4119, %v4112, %v4123
    %v4128 = vld [vmem:[%s9] sm:$0xf]
    %v4129 = vunpack.c.l.bf16 %v4128
    %v4131 = vlaneseq
    %v4132 = vshrl.u32 %v4131, 7
    %v4133 = vsub.s32 0, %v4132
    %v4134 = vrot.slane %v4129, %v4133
    %v4135 = vlaneseq
    %v4136 = vshrl.u32 %v4135, 7
    %v4137 = vsub.s32 2, %v4136
    %v4138 = vrot.slane %v4129, %v4137
    %v4139 = vlaneseq
    %v4140 = vshrl.u32 %v4139, 7
    %v4141 = vsub.s32 4, %v4140
    %v4142 = vrot.slane %v4129, %v4141
    %v4143 = vlaneseq
    %v4144 = vshrl.u32 %v4143, 7
    %v4145 = vsub.s32 6, %v4144
    %v4146 = vrot.slane %v4129, %v4145
    %v4151 = vlaneseq
    %v4152 = vshrl.u32 %v4151, 7
    %v4153 = vsub.s32 0, %v4152
    %v4154 = vrot.slane %v4134, %v4153
    %v4155 = vlaneseq
    %v4156 = vshrl.u32 %v4155, 7
    %v4157 = vsub.s32 0, %v4156
    %v4158 = vrot.slane %v4138, %v4157
    %v4159 = vlaneseq
    %v4160 = vshrl.u32 %v4159, 7
    %v4161 = vsub.s32 0, %v4160
    %v4162 = vrot.slane %v4142, %v4161
    %v4163 = vlaneseq
    %v4164 = vshrl.u32 %v4163, 7
    %v4165 = vsub.s32 0, %v4164
    %v4166 = vrot.slane %v4146, %v4165
    %v4167 = vmul.f32 %v4124, %v4154
    %v4168 = vmul.f32 %v4125, %v4158
    %v4169 = vmul.f32 %v4126, %v4162
    %v4170 = vmul.f32 %v4127, %v4166
    %v4171 = vadd.f32 %v4167, %v4168
    %v4172 = vadd.f32 %v4171, %v4169
    %v4173 = vadd.f32 %v4172, %v4170
    %4174 = vadd.xlane.f32.xlu0 %v4173
    %v4175 = vpop.xlane.xlu0 %4174
    %v4176 = vld [vmem:[#allocation2] sm:$0x1]
    %v4178 = vlaneseq
    %v4179 = vshrl.u32 %v4178, 7
    %v4180 = vsub.s32 0, %v4179
    %v4181 = vrot.slane %v4176, %v4180
    %v4183 = vadd.f32 %v4175, %v4181
    %vm4184 = vcmask 7168
    %4185 = vst.msk [vmem:[%s11] sm:$0xff] %vm4184, %v4183
    // Predicated region
    $region70: #{tpu_custom_call.1} parent=1 // pred_check
      _
    $region71: #{tpu_custom_call.1} parent=1 // pred_check_branch
      %4187 = sbr.rel (0) target = $region73
    $region72: #{tpu_custom_call.1} parent=1 // pred_region
      _
    $region73: #{tpu_custom_call.1} parent=1 // pred_fallthru
      _
    // Predicated region
    $region74: #{tpu_custom_call.1} parent=1 // pred_check
      _
    $region75: #{tpu_custom_call.1} parent=1 // pred_check_branch
      %4189 = sbr.rel (0) target = $region77
    $region76: #{tpu_custom_call.1} parent=1 // pred_region
      _
    $region77: #{tpu_custom_call.1} parent=1 // pred_fallthru
      _
    %4190 = vsyncpa [#allocation4], 1
    %4191 = vsyncpa [#allocation6], 1
    %4192 = vsyncpa [#allocation9], 1
    %4193 = vsyncpa [#allocation12], 1

</llo_original>
